<compile_context>
chip_gen: v5e
topology: v5e:2x2
jax: 0.10.0
libtpu: 0.0.40
codegen_flags: <defaults>
</compile_context>

<pallas_src>
import functools

import jax
import jax.numpy as jnp
from jax.experimental import pallas as pl
from jax.experimental.pallas import tpu as pltpu


def _round_up(x: int, m: int) -> int:
    return ((x + m - 1) // m) * m


def _anr_aie_kernel(A, h1, h2, ui_ref, i_ref, wbig_ref, mask_ref, whu_ref, whi_ref,
                    out_ref):
    f32 = jnp.float32
    bf16 = jnp.bfloat16

    ui = ui_ref[...]          # (R, 2*h1)        bf16, R = Bt*A (batch folded in rows)
    i2 = i_ref[...]           # (R, h1)          bf16
    W_big = wbig_ref[...]     # (2*h1, h1+2*h2)  bf16 block-diagonal fused weight
    mask = mask_ref[...]      # (R, R)           f32, 1.0 on per-element diag blocks

    R = ui.shape[0]
    Bt = R // A

    # (1) All shared-weight products in a single MXU pass:
    #     cols [0:h1]        = u @ W_a
    #     cols [h1:h1+h2]    = u @ W_u^T
    #     cols [h1+h2:     ] = i @ W_i^T
    big = jnp.dot(ui, W_big, preferred_element_type=f32)      # (R, h1+2*h2) f32
    uWa = big[:, :h1]                                          # (R, h1)
    Xu = big[:, h1:h1 + h2]                                    # (R, h2)
    Xi = big[:, h1 + h2:h1 + 2 * h2]                           # (R, h2)

    # (2) One cross-affinity matmul for the whole batch tile; the block-diagonal
    #     mask keeps only each element's own (A, A) affinity block.
    C = jnp.einsum('rm,sm->rs', uWa.astype(bf16), i2,
                   preferred_element_type=f32)                 # (R, R) f32
    affm = mask * jnp.maximum(C, 0.0)                          # (R, R) f32

    affm_bf = affm.astype(bf16)
    affm_t_bf = affm.T.astype(bf16)     # XLU transpose (slack) instead of 2nd matmul
    Xu_bf = Xu.astype(bf16)
    Xi_bf = Xi.astype(bf16)

    # (3) H_u^T = relu(Xu + aff @ Xi), H_i^T = relu(Xi + aff^T @ Xu) for all batch
    #     elements at once (block-diagonal aff => no cross-element mixing).
    Hu = jnp.maximum(Xu + jnp.dot(affm_bf, Xi_bf, preferred_element_type=f32), 0.0)
    Hi = jnp.maximum(Xi + jnp.dot(affm_t_bf, Xu_bf, preferred_element_type=f32), 0.0)

    # (4) Rank-1 projections on the VPU: broadcast multiply + lane reduction over h2.
    w_hu = whu_ref[...].reshape(1, 1, h2)
    w_hi = whi_ref[...].reshape(1, 1, h2)
    u_logits = jnp.sum(Hu.reshape(Bt, A, h2) * w_hu, axis=-1)   # (Bt, A)
    i_logits = jnp.sum(Hi.reshape(Bt, A, h2) * w_hi, axis=-1)   # (Bt, A)

    # (5) Merged stable softmax over aspects; one output store; reciprocal -> EUP.
    logits = jnp.stack([u_logits, i_logits], axis=0)            # (2, Bt, A)
    logits = logits - jnp.max(logits, axis=-1, keepdims=True)
    e = jnp.exp(logits)
    out_ref[...] = e * pl.reciprocal(jnp.sum(e, axis=-1, keepdims=True), approx=True)


def anr_aie_forward(userAspRep, itemAspRep, W_a, W_u, w_hu, W_i, w_hi,
                    *, block_bsz=32):
    """Pallas TPU forward for ANR_AIE. Returns (userAspImpt, itemAspImpt)."""
    userAspRep = jnp.asarray(userAspRep, jnp.float32)
    itemAspRep = jnp.asarray(itemAspRep, jnp.float32)
    bsz, A, h1 = userAspRep.shape
    h2 = W_u.shape[0]

    # Batch tile: multiple of 16 so R = Bt*A hits native tiles; kept moderate because
    # the masked cross-affinity matmul does O(Bt) redundant work per element.
    Bt = _round_up(max(16, min(int(block_bsz), 128)), 16)
    if bsz < Bt:
        Bt = _round_up(max(bsz, 16), 16)
    padded = _round_up(bsz, Bt)
    n_blocks = padded // Bt
    R = Bt * A

    # bf16 activations for the MXU (halves HBM traffic; f32 accumulation in-kernel).
    u_b = userAspRep.astype(jnp.bfloat16)
    i_b = itemAspRep.astype(jnp.bfloat16)
    if padded != bsz:
        pad = padded - bsz
        u_b = jnp.pad(u_b, ((0, pad), (0, 0), (0, 0)))
        i_b = jnp.pad(i_b, ((0, pad), (0, 0), (0, 0)))

    ui_cat = jnp.concatenate([u_b, i_b], axis=-1).reshape(padded * A, 2 * h1)
    i2 = i_b.reshape(padded * A, h1)

    # Block-diagonal fused weight: [[W_a, W_u^T, 0], [0, 0, W_i^T]].
    W_a = jnp.asarray(W_a, jnp.float32)
    W_uT = jnp.asarray(W_u, jnp.float32).T
    W_iT = jnp.asarray(W_i, jnp.float32).T
    Ncat = h1 + 2 * h2
    W_big = jnp.zeros((2 * h1, Ncat), jnp.float32)
    W_big = W_big.at[:h1, :h1].set(W_a)
    W_big = W_big.at[:h1, h1:h1 + h2].set(W_uT)
    W_big = W_big.at[h1:, h1 + h2:].set(W_iT)
    W_big = W_big.astype(jnp.bfloat16)

    w_hu_row = jnp.asarray(w_hu, jnp.float32).reshape(1, h2)
    w_hi_row = jnp.asarray(w_hi, jnp.float32).reshape(1, h2)

    # Block-diagonal mask built once outside the kernel (no in-kernel iota/div).
    blk_id = jnp.arange(R, dtype=jnp.int32) // A
    mask = (blk_id[:, None] == blk_id[None, :]).astype(jnp.float32)   # (R, R)

    grid_spec = pltpu.PrefetchScalarGridSpec(
        num_scalar_prefetch=0,
        grid=(n_blocks,),
        in_specs=[
            pl.BlockSpec((R, 2 * h1), lambda b: (b, 0)),     # [u | i] rows, bf16
            pl.BlockSpec((R, h1), lambda b: (b, 0)),         # item rows, bf16
            pl.BlockSpec((2 * h1, Ncat), lambda b: (0, 0)),  # fused weight
            pl.BlockSpec((R, R), lambda b: (0, 0)),          # block-diagonal mask
            pl.BlockSpec((1, h2), lambda b: (0, 0)),         # w_hu row
            pl.BlockSpec((1, h2), lambda b: (0, 0)),         # w_hi row
        ],
        out_specs=pl.BlockSpec((2, Bt, A), lambda b: (0, b, 0)),
    )

    flops_step = (2 * R * (2 * h1) * Ncat      # fused shared matmul
                  + 2 * R * h1 * R             # cross affinity
                  + 2 * (2 * R * R * h2)       # aff @ Xi and aff^T @ Xu
                  + 4 * R * h2)                # rank-1 projections
    cost = pl.CostEstimate(
        flops=int(flops_step * n_blocks),
        transcendentals=int(2 * padded * A),
        bytes_accessed=int(2 * padded * A * 3 * h1      # bf16 activations
                           + 4 * 2 * padded * A         # f32 outputs
                           + 4 * R * R                  # mask
                           + 2 * (2 * h1) * Ncat + 4 * 2 * h2),
    )

    out = pl.pallas_call(
        functools.partial(_anr_aie_kernel, A, h1, h2),
        out_shape=jax.ShapeDtypeStruct((2, padded, A), jnp.float32),
        grid_spec=grid_spec,
        compiler_params=pltpu.CompilerParams(
            dimension_semantics=("parallel",)),
        cost_estimate=cost,
    )(ui_cat, i2, W_big, mask, w_hu_row, w_hi_row)

    return out[0, :bsz], out[1, :bsz]


def _reference_forward(userAspRep, itemAspRep, W_a, W_u, w_hu, W_i, w_hi):
    # Pure-JAX reference mirroring the PyTorch forward (all f32).
    uT = jnp.swapaxes(userAspRep, 1, 2)
    iT = jnp.swapaxes(itemAspRep, 1, 2)
    aff = jnp.maximum(jnp.matmul(jnp.matmul(userAspRep, W_a), iT), 0.0)
    H_u = jnp.maximum(jnp.matmul(W_u, uT)
                      + jnp.matmul(jnp.matmul(W_i, iT), jnp.swapaxes(aff, 1, 2)), 0.0)
    u_imp = jnp.matmul(w_hu.T, H_u)                 # (bsz, 1, A)
    u_imp = jax.nn.softmax(jnp.swapaxes(u_imp, 1, 2), axis=1)[:, :, 0]
    H_i = jnp.maximum(jnp.matmul(W_i, iT)
                      + jnp.matmul(jnp.matmul(W_u, uT), aff), 0.0)
    i_imp = jnp.matmul(w_hi.T, H_i)
    i_imp = jax.nn.softmax(jnp.swapaxes(i_imp, 1, 2), axis=1)[:, :, 0]
    return u_imp, i_imp


if __name__ == "__main__":
    # Small but batched shapes: exercises padding (100 -> 128) and a 4-step grid.
    bsz, num_aspects, h1, h2 = 100, 8, 32, 16

    key = jax.random.PRNGKey(0)
    k = jax.random.split(key, 7)
    userAspRep = jax.random.normal(k[0], (bsz, num_aspects, h1), jnp.float32)
    itemAspRep = jax.random.normal(k[1], (bsz, num_aspects, h1), jnp.float32)
    # Parameters: uniform(-0.01, 0.01), same init distribution as the module.
    W_a = jax.random.uniform(k[2], (h1, h1), jnp.float32, -0.01, 0.01)
    W_u = jax.random.uniform(k[3], (h2, h1), jnp.float32, -0.01, 0.01)
    w_hu = jax.random.uniform(k[4], (h2, 1), jnp.float32, -0.01, 0.01)
    W_i = jax.random.uniform(k[5], (h2, h1), jnp.float32, -0.01, 0.01)
    w_hi = jax.random.uniform(k[6], (h2, 1), jnp.float32, -0.01, 0.01)

    user_imp, item_imp = anr_aie_forward(
        userAspRep, itemAspRep, W_a, W_u, w_hu, W_i, w_hi, block_bsz=32)
    jax.block_until_ready((user_imp, item_imp))

    ref_u, ref_i = _reference_forward(
        userAspRep, itemAspRep, W_a, W_u, w_hu, W_i, w_hi)

    assert user_imp.shape == (bsz, num_aspects)
    assert item_imp.shape == (bsz, num_aspects)
    # Tolerance covers bf16 MXU operands + the EUP approximate reciprocal.
    assert jnp.allclose(user_imp, ref_u, atol=2e-3, rtol=2e-3)
    assert jnp.allclose(item_imp, ref_i, atol=2e-3, rtol=2e-3)

    print("KERNEL_OK")
</pallas_src>

<mosaic_0001>
module attributes {stable_mosaic.version = 11 : i64} {
  func.func @_anr_aie_kernel(%arg0: i32, %arg1: memref<256x64xbf16, #tpu.memory_space<vmem>>, %arg2: memref<256x32xbf16, #tpu.memory_space<vmem>>, %arg3: memref<64x64xbf16, #tpu.memory_space<vmem>>, %arg4: memref<256x256xf32, #tpu.memory_space<vmem>>, %arg5: memref<1x16xf32, #tpu.memory_space<vmem>>, %arg6: memref<1x16xf32, #tpu.memory_space<vmem>>, %arg7: memref<2x32x8xf32, #tpu.memory_space<vmem>>) attributes {dimension_semantics = [#tpu.dimension_semantics<parallel>], iteration_bounds = array<i64: 4>, scalar_prefetch = 0 : i64, scratch_operands = 0 : i64, tpu.core_type = #tpu.core_type<tc>, window_params = [{transform_indices = @transform_0, window_bounds = array<i64: 256, 64>}, {transform_indices = @transform_1, window_bounds = array<i64: 256, 32>}, {pipeline_mode = #tpu.pipeline_mode<synchronous>, transform_indices = @transform_2, window_bounds = array<i64: 64, 64>}, {pipeline_mode = #tpu.pipeline_mode<synchronous>, transform_indices = @transform_3, window_bounds = array<i64: 256, 256>}, {pipeline_mode = #tpu.pipeline_mode<synchronous>, transform_indices = @transform_4, window_bounds = array<i64: 1, 16>}, {pipeline_mode = #tpu.pipeline_mode<synchronous>, transform_indices = @transform_5, window_bounds = array<i64: 1, 16>}, {transform_indices = @transform_6, window_bounds = array<i64: 2, 32, 8>}]} {
    %c0 = arith.constant 0 : index
    %c0_0 = arith.constant 0 : index
    %0 = vector.load %arg1[%c0, %c0_0] : memref<256x64xbf16, #tpu.memory_space<vmem>>, vector<256x64xbf16>
    %c0_1 = arith.constant 0 : index
    %c0_2 = arith.constant 0 : index
    %1 = vector.load %arg2[%c0_1, %c0_2] : memref<256x32xbf16, #tpu.memory_space<vmem>>, vector<256x32xbf16>
    %c0_3 = arith.constant 0 : index
    %c0_4 = arith.constant 0 : index
    %2 = vector.load %arg3[%c0_3, %c0_4] : memref<64x64xbf16, #tpu.memory_space<vmem>>, vector<64x64xbf16>
    %c0_5 = arith.constant 0 : index
    %c0_6 = arith.constant 0 : index
    %3 = vector.load %arg4[%c0_5, %c0_6] : memref<256x256xf32, #tpu.memory_space<vmem>>, vector<256x256xf32>
    %cst = arith.constant dense<0.000000e+00> : vector<256x64xf32>
    %4 = tpu.matmul %0, %2, %cst {dimension_numbers = #tpu.dot_dimension_numbers<[1], [0], [0], [1], [0, 0, 1, 1], [], []>} : vector<256x64xbf16>, vector<64x64xbf16>, vector<256x64xf32> -> vector<256x64xf32>
    %5 = vector.extract_strided_slice %4 {offsets = [0, 0], sizes = [256, 32], strides = [1, 1]} : vector<256x64xf32> to vector<256x32xf32>
    %6 = vector.extract_strided_slice %4 {offsets = [0, 32], sizes = [256, 16], strides = [1, 1]} : vector<256x64xf32> to vector<256x16xf32>
    %7 = vector.extract_strided_slice %4 {offsets = [0, 48], sizes = [256, 16], strides = [1, 1]} : vector<256x64xf32> to vector<256x16xf32>
    %8 = arith.truncf %5 : vector<256x32xf32> to vector<256x32xbf16>
    "tpu.trace_start"() <{level = 10 : i32, message = "rm,sm->rs"}> : () -> ()
    %cst_7 = arith.constant dense<0.000000e+00> : vector<256x256xf32>
    %9 = tpu.matmul %8, %1, %cst_7 {dimension_numbers = #tpu.dot_dimension_numbers<[1], [1], [0], [0], [0, 0, 1, 0], [], []>} : vector<256x32xbf16>, vector<256x32xbf16>, vector<256x256xf32> -> vector<256x256xf32>
    "tpu.trace_stop"() : () -> ()
    %cst_8 = arith.constant 0.000000e+00 : f32
    %10 = vector.broadcast %cst_8 : f32 to vector<256x256xf32>
    %11 = arith.maximumf %9, %10 : vector<256x256xf32>
    %12 = arith.mulf %3, %11 : vector<256x256xf32>
    %13 = arith.truncf %12 : vector<256x256xf32> to vector<256x256xbf16>
    %14 = tpu.transpose %12, [1, 0] : vector<256x256xf32> -> vector<256x256xf32>
    %15 = arith.truncf %14 : vector<256x256xf32> to vector<256x256xbf16>
    %16 = arith.truncf %6 : vector<256x16xf32> to vector<256x16xbf16>
    %17 = arith.truncf %7 : vector<256x16xf32> to vector<256x16xbf16>
    %cst_9 = arith.constant dense<0.000000e+00> : vector<256x16xf32>
    %18 = tpu.matmul %13, %17, %cst_9 {dimension_numbers = #tpu.dot_dimension_numbers<[1], [0], [0], [1], [0, 0, 1, 1], [], []>} : vector<256x256xbf16>, vector<256x16xbf16>, vector<256x16xf32> -> vector<256x16xf32>
    %19 = arith.addf %6, %18 : vector<256x16xf32>
    %cst_10 = arith.constant 0.000000e+00 : f32
    %20 = vector.broadcast %cst_10 : f32 to vector<256x16xf32>
    %21 = arith.maximumf %19, %20 : vector<256x16xf32>
    %cst_11 = arith.constant dense<0.000000e+00> : vector<256x16xf32>
    %22 = tpu.matmul %15, %16, %cst_11 {dimension_numbers = #tpu.dot_dimension_numbers<[1], [0], [0], [1], [0, 0, 1, 1], [], []>} : vector<256x256xbf16>, vector<256x16xbf16>, vector<256x16xf32> -> vector<256x16xf32>
    %23 = arith.addf %7, %22 : vector<256x16xf32>
    %cst_12 = arith.constant 0.000000e+00 : f32
    %24 = vector.broadcast %cst_12 : f32 to vector<256x16xf32>
    %25 = arith.maximumf %23, %24 : vector<256x16xf32>
    %c0_13 = arith.constant 0 : index
    %c0_14 = arith.constant 0 : index
    %26 = vector.load %arg5[%c0_13, %c0_14] : memref<1x16xf32, #tpu.memory_space<vmem>>, vector<1x16xf32>
    %27 = vector.shape_cast %26 : vector<1x16xf32> to vector<1x1x16xf32>
    %c0_15 = arith.constant 0 : index
    %c0_16 = arith.constant 0 : index
    %28 = vector.load %arg6[%c0_15, %c0_16] : memref<1x16xf32, #tpu.memory_space<vmem>>, vector<1x16xf32>
    %29 = vector.shape_cast %28 : vector<1x16xf32> to vector<1x1x16xf32>
    %30 = vector.shape_cast %21 : vector<256x16xf32> to vector<32x8x16xf32>
    %31 = vector.broadcast %27 : vector<1x1x16xf32> to vector<32x8x16xf32>
    %32 = arith.mulf %30, %31 : vector<32x8x16xf32>
    %cst_17 = arith.constant dense<0.000000e+00> : vector<32x8xf32>
    %33 = vector.multi_reduction <add>, %32, %cst_17 [2] : vector<32x8x16xf32> to vector<32x8xf32>
    %34 = vector.shape_cast %25 : vector<256x16xf32> to vector<32x8x16xf32>
    %35 = vector.broadcast %29 : vector<1x1x16xf32> to vector<32x8x16xf32>
    %36 = arith.mulf %34, %35 : vector<32x8x16xf32>
    %cst_18 = arith.constant dense<0.000000e+00> : vector<32x8xf32>
    %37 = vector.multi_reduction <add>, %36, %cst_18 [2] : vector<32x8x16xf32> to vector<32x8xf32>
    %38 = vector.shape_cast %33 : vector<32x8xf32> to vector<1x32x8xf32>
    %39 = vector.shape_cast %37 : vector<32x8xf32> to vector<1x32x8xf32>
    %40 = tpu.concatenate %38, %39 in 0 : vector<1x32x8xf32>, vector<1x32x8xf32> -> vector<2x32x8xf32>
    %cst_19 = arith.constant dense<0xFF800000> : vector<2x32xf32>
    %41 = vector.multi_reduction <maximumf>, %40, %cst_19 [2] : vector<2x32x8xf32> to vector<2x32xf32>
    %42 = vector.shape_cast %41 : vector<2x32xf32> to vector<2x32x1xf32>
    %43 = vector.broadcast %42 : vector<2x32x1xf32> to vector<2x32x8xf32>
    %44 = arith.subf %40, %43 : vector<2x32x8xf32>
    %45 = math.exp %44 : vector<2x32x8xf32>
    %cst_20 = arith.constant dense<0.000000e+00> : vector<2x32xf32>
    %46 = vector.multi_reduction <add>, %45, %cst_20 [2] : vector<2x32x8xf32> to vector<2x32xf32>
    %47 = vector.shape_cast %46 : vector<2x32xf32> to vector<2x32x1xf32>
    %48 = tpu.reciprocal %47 {approx = true} : vector<2x32x1xf32> -> vector<2x32x1xf32>
    %49 = vector.broadcast %48 : vector<2x32x1xf32> to vector<2x32x8xf32>
    %50 = arith.mulf %45, %49 : vector<2x32x8xf32>
    %c0_21 = arith.constant 0 : index
    %c0_22 = arith.constant 0 : index
    %c0_23 = arith.constant 0 : index
    %51 = vector.load %arg7[%c0_21, %c0_22, %c0_23] : memref<2x32x8xf32, #tpu.memory_space<vmem>>, vector<2x32x8xf32>
    tpu.vector_store %arg7[%c0_21, %c0_22, %c0_23], %50 {strides = array<i32>} : memref<2x32x8xf32, #tpu.memory_space<vmem>>, vector<2x32x8xf32>,
    return
  }
  func.func @transform_0(%arg0: i32) -> (i32, i32) {
    %c0_i32 = arith.constant 0 : i32
    %c0_i32_0 = arith.constant 0 : i32
    return %arg0, %c0_i32 : i32, i32
  }
  func.func @transform_1(%arg0: i32) -> (i32, i32) {
    %c0_i32 = arith.constant 0 : i32
    %c0_i32_0 = arith.constant 0 : i32
    return %arg0, %c0_i32 : i32, i32
  }
  func.func @transform_2(%arg0: i32) -> (i32, i32) {
    %c0_i32 = arith.constant 0 : i32
    %c0_i32_0 = arith.constant 0 : i32
    %c0_i32_1 = arith.constant 0 : i32
    return %c0_i32, %c0_i32_0 : i32, i32
  }
  func.func @transform_3(%arg0: i32) -> (i32, i32) {
    %c0_i32 = arith.constant 0 : i32
    %c0_i32_0 = arith.constant 0 : i32
    %c0_i32_1 = arith.constant 0 : i32
    return %c0_i32, %c0_i32_0 : i32, i32
  }
  func.func @transform_4(%arg0: i32) -> (i32, i32) {
    %c0_i32 = arith.constant 0 : i32
    %c0_i32_0 = arith.constant 0 : i32
    %c0_i32_1 = arith.constant 0 : i32
    return %c0_i32, %c0_i32_0 : i32, i32
  }
  func.func @transform_5(%arg0: i32) -> (i32, i32) {
    %c0_i32 = arith.constant 0 : i32
    %c0_i32_0 = arith.constant 0 : i32
    %c0_i32_1 = arith.constant 0 : i32
    return %c0_i32, %c0_i32_0 : i32, i32
  }
  func.func @transform_6(%arg0: i32) -> (i32, i32, i32) {
    %c0_i32 = arith.constant 0 : i32
    %c0_i32_0 = arith.constant 0 : i32
    %c0_i32_1 = arith.constant 0 : i32
    return %c0_i32, %arg0, %c0_i32_0 : i32, i32, i32
  }
}

</mosaic_0001>

<llo_original>
// kernel: tpu_custom_call.1
$region0: #{tpu_custom_call.1}
  #allocation0 [shape = 'u32[]', space=smem, size = 0x4, offset = 0x4, fixed_abs, tag = 'smem constant byte address 0x4 - core index']
  #allocation1 [shape = 'u32[72,128]{1,0:T(1,128)}', space=vmem, size = 0x9000, scoped, tag = 'internal scratch']
  %s0 = inlined_call_operand.vmem [shape: bf16[1024,64], index: 0, kind: input, shape index: {}]
  %s1 = inlined_call_operand.vmem [shape: bf16[1024,32], index: 1, kind: input, shape index: {}]
  %s2 = inlined_call_operand.vmem [shape: bf16[64,64], index: 2, kind: input, shape index: {}]
  %s3 = inlined_call_operand.vmem [shape: f32[256,256], index: 3, kind: input, shape index: {}]
  %s4 = inlined_call_operand.vmem [shape: f32[1,16], index: 4, kind: input, shape index: {}]
  %s5 = inlined_call_operand.vmem [shape: f32[1,16], index: 5, kind: input, shape index: {}]
  %s6 = inlined_call_operand.vmem [shape: f32[2,128,8], index: 6, kind: output, shape index: {}]
  %s7 = sld [smem:[#allocation0]]
  $region91: #{tpu_custom_call.1} parent=0
    _
  %s9 = ssub.s32 1, %s7
  %s10 = scalar_select 0, %s9, %s7
  $region1: #{tpu_custom_call.1} parent=0
    #allocation2 [shape = 'u8[65536]{0}', space=vmem, size = 0x10000, scoped, tag = 'output window, operand 0']
    loop: start=0, step=1, limit=6
    $region2: #{tpu_custom_call.1} parent=1 // loop_pre_header
      _
    $region3: #{tpu_custom_call.1} parent=1 // loop_header
      %s12 = sphi 0, %s16
      %p13 = scmp.ge.s32.totalorder %s12, 6
      %s22 = sphi 0, %s24
      %s25 = sphi 0, %s22
      %s26 = sphi 0, %s25
      %s42 = sphi 0, %s26
      %s48 = sphi 0, %s50
      %s51 = sphi 0, %s48
      %s52 = sphi 0, %s51
      %s68 = sphi 0, %s52
      %s72 = sphi 0, %s72
      %s74 = sphi 0, %s72
      %s75 = sphi 0, %s74
      %s89 = sphi 0, %s75
      %s93 = sphi 0, %s93
      %s95 = sphi 0, %s93
      %s96 = sphi 0, %s95
      %s110 = sphi 0, %s96
      %s114 = sphi 0, %s114
      %s116 = sphi 0, %s114
      %s117 = sphi 0, %s116
      %s131 = sphi 0, %s117
      %s135 = sphi 0, %s135
      %s137 = sphi 0, %s135
      %s138 = sphi 0, %s137
      %s152 = sphi 0, %s138
      %s158 = sphi 0, %s160
      %s161 = sphi 0, %s158
      %s162 = sphi 0, %s161
      %s178 = sphi 0, %s162
    $region4: #{tpu_custom_call.1} parent=1 // loop_header_branch
      %15 = sbr.rel (%p13) target = $region8
    $region5: #{tpu_custom_call.1} parent=1 // loop_body
      %s17 = ssub.s32 %s12, 1
      %s18 = ssub.s32 %s12, 2
      %s19 = sadd.s32 %s12, 1
      %s20 = ssub.s32 %s12, %s19
      %p21 = scmp.eq.s32.totalorder %s20, 0
      %s23 = sadd.s32 %s22, 1
      %s24 = scalar_select %p21, %s22, %s23
      %p27 = pneg %p21
      %p28 = scmp.eq.s32.totalorder %s12, 3
      %p29 = por %p27, %p28
      %p30 = scmp.ne.s32.totalorder %s22, %s25
      %p31 = scmp.eq.s32.totalorder %s12, 0
      %p32 = por %p30, %p31
      %p33 = scmp.ne.s32.totalorder %s22, %s25
      %p34 = scmp.eq.s32.totalorder %s17, 3
      %p35 = por %p33, %p34
      %p36 = scmp.ne.s32.totalorder %s25, %s26
      %p37 = scmp.eq.s32.totalorder %s17, 0
      %p38 = por %p36, %p37
      %p39 = scmp.ne.s32.totalorder %s25, %s26
      %p40 = scmp.eq.s32.totalorder %s18, 3
      %p41 = por %p39, %p40
      %p43 = scmp.ne.s32.totalorder %s26, %s42
      %p44 = scmp.eq.s32.totalorder %s18, 0
      %p45 = por %p43, %p44
      %s46 = ssub.s32 %s12, %s19
      %p47 = scmp.eq.s32.totalorder %s46, 0
      %s49 = sadd.s32 %s48, 1
      %s50 = scalar_select %p47, %s48, %s49
      %p53 = pneg %p47
      %p54 = scmp.eq.s32.totalorder %s12, 3
      %p55 = por %p53, %p54
      %p56 = scmp.ne.s32.totalorder %s48, %s51
      %p57 = scmp.eq.s32.totalorder %s12, 0
      %p58 = por %p56, %p57
      %p59 = scmp.ne.s32.totalorder %s48, %s51
      %p60 = scmp.eq.s32.totalorder %s17, 3
      %p61 = por %p59, %p60
      %p62 = scmp.ne.s32.totalorder %s51, %s52
      %p63 = scmp.eq.s32.totalorder %s17, 0
      %p64 = por %p62, %p63
      %p65 = scmp.ne.s32.totalorder %s51, %s52
      %p66 = scmp.eq.s32.totalorder %s18, 3
      %p67 = por %p65, %p66
      %p69 = scmp.ne.s32.totalorder %s52, %s68
      %p70 = scmp.eq.s32.totalorder %s18, 0
      %p71 = por %p69, %p70
      %s73 = sadd.s32 %s72, 1
      %p76 = scmp.eq.s32.totalorder %s12, 3
      %p77 = scmp.ne.s32.totalorder %s72, %s74
      %p78 = scmp.eq.s32.totalorder %s12, 0
      %p79 = por %p77, %p78
      %p80 = scmp.ne.s32.totalorder %s72, %s74
      %p81 = scmp.eq.s32.totalorder %s17, 3
      %p82 = por %p80, %p81
      %p83 = scmp.ne.s32.totalorder %s74, %s75
      %p84 = scmp.eq.s32.totalorder %s17, 0
      %p85 = por %p83, %p84
      %p86 = scmp.ne.s32.totalorder %s74, %s75
      %p87 = scmp.eq.s32.totalorder %s18, 3
      %p88 = por %p86, %p87
      %p90 = scmp.ne.s32.totalorder %s75, %s89
      %p91 = scmp.eq.s32.totalorder %s18, 0
      %p92 = por %p90, %p91
      %s94 = sadd.s32 %s93, 1
      %p97 = scmp.eq.s32.totalorder %s12, 3
      %p98 = scmp.ne.s32.totalorder %s93, %s95
      %p99 = scmp.eq.s32.totalorder %s12, 0
      %p100 = por %p98, %p99
      %p101 = scmp.ne.s32.totalorder %s93, %s95
      %p102 = scmp.eq.s32.totalorder %s17, 3
      %p103 = por %p101, %p102
      %p104 = scmp.ne.s32.totalorder %s95, %s96
      %p105 = scmp.eq.s32.totalorder %s17, 0
      %p106 = por %p104, %p105
      %p107 = scmp.ne.s32.totalorder %s95, %s96
      %p108 = scmp.eq.s32.totalorder %s18, 3
      %p109 = por %p107, %p108
      %p111 = scmp.ne.s32.totalorder %s96, %s110
      %p112 = scmp.eq.s32.totalorder %s18, 0
      %p113 = por %p111, %p112
      %s115 = sadd.s32 %s114, 1
      %p118 = scmp.eq.s32.totalorder %s12, 3
      %p119 = scmp.ne.s32.totalorder %s114, %s116
      %p120 = scmp.eq.s32.totalorder %s12, 0
      %p121 = por %p119, %p120
      %p122 = scmp.ne.s32.totalorder %s114, %s116
      %p123 = scmp.eq.s32.totalorder %s17, 3
      %p124 = por %p122, %p123
      %p125 = scmp.ne.s32.totalorder %s116, %s117
      %p126 = scmp.eq.s32.totalorder %s17, 0
      %p127 = por %p125, %p126
      %p128 = scmp.ne.s32.totalorder %s116, %s117
      %p129 = scmp.eq.s32.totalorder %s18, 3
      %p130 = por %p128, %p129
      %p132 = scmp.ne.s32.totalorder %s117, %s131
      %p133 = scmp.eq.s32.totalorder %s18, 0
      %p134 = por %p132, %p133
      %s136 = sadd.s32 %s135, 1
      %p139 = scmp.eq.s32.totalorder %s12, 3
      %p140 = scmp.ne.s32.totalorder %s135, %s137
      %p141 = scmp.eq.s32.totalorder %s12, 0
      %p142 = por %p140, %p141
      %p143 = scmp.ne.s32.totalorder %s135, %s137
      %p144 = scmp.eq.s32.totalorder %s17, 3
      %p145 = por %p143, %p144
      %p146 = scmp.ne.s32.totalorder %s137, %s138
      %p147 = scmp.eq.s32.totalorder %s17, 0
      %p148 = por %p146, %p147
      %p149 = scmp.ne.s32.totalorder %s137, %s138
      %p150 = scmp.eq.s32.totalorder %s18, 3
      %p151 = por %p149, %p150
      %p153 = scmp.ne.s32.totalorder %s138, %s152
      %p154 = scmp.eq.s32.totalorder %s18, 0
      %p155 = por %p153, %p154
      %s156 = ssub.s32 %s12, %s19
      %p157 = scmp.eq.s32.totalorder %s156, 0
      %s159 = sadd.s32 %s158, 1
      %s160 = scalar_select %p157, %s158, %s159
      %p163 = pneg %p157
      %p164 = scmp.eq.s32.totalorder %s12, 3
      %p165 = por %p163, %p164
      %p166 = scmp.ne.s32.totalorder %s158, %s161
      %p167 = scmp.eq.s32.totalorder %s12, 0
      %p168 = por %p166, %p167
      %p169 = scmp.ne.s32.totalorder %s158, %s161
      %p170 = scmp.eq.s32.totalorder %s17, 3
      %p171 = por %p169, %p170
      %p172 = scmp.ne.s32.totalorder %s161, %s162
      %p173 = scmp.eq.s32.totalorder %s17, 0
      %p174 = por %p172, %p173
      %p175 = scmp.ne.s32.totalorder %s161, %s162
      %p176 = scmp.eq.s32.totalorder %s18, 3
      %p177 = por %p175, %p176
      %p179 = scmp.ne.s32.totalorder %s162, %s178
      %p180 = scmp.eq.s32.totalorder %s18, 0
      %p181 = por %p179, %p180
      %p182 = scmp.le.s32.totalorder 1, %s12
      %p183 = scmp.lt.s32.totalorder %s12, 5
      %p184 = pnand %p182, %p183
      %p185 = pneg %p184
      // Predicated region
      $region9: #{tpu_custom_call.1} parent=5 // pred_check
        _
      $region10: #{tpu_custom_call.1} parent=5 // pred_check_branch
        %187 = sbr.rel (%p184) target = $region12
      $region11: #{tpu_custom_call.1} parent=5 // pred_region
        %s188 = ssub.s32 %s12, 1
        // Predicated region
        $region13: #{tpu_custom_call.1} parent=11 // pred_check
          %p189 = pneg %p85
        $region14: #{tpu_custom_call.1} parent=11 // pred_check_branch
          %191 = sbr.rel (%p189) target = $region16
        $region15: #{tpu_custom_call.1} parent=11 // pred_region
          _
        $region16: #{tpu_custom_call.1} parent=11 // pred_fallthru
          _
        // Predicated region
        $region17: #{tpu_custom_call.1} parent=11 // pred_check
          %p192 = pneg %p106
        $region18: #{tpu_custom_call.1} parent=11 // pred_check_branch
          %194 = sbr.rel (%p192) target = $region20
        $region19: #{tpu_custom_call.1} parent=11 // pred_region
          _
        $region20: #{tpu_custom_call.1} parent=11 // pred_fallthru
          _
        // Predicated region
        $region21: #{tpu_custom_call.1} parent=11 // pred_check
          %p195 = pneg %p127
        $region22: #{tpu_custom_call.1} parent=11 // pred_check_branch
          %197 = sbr.rel (%p195) target = $region24
        $region23: #{tpu_custom_call.1} parent=11 // pred_region
          _
        $region24: #{tpu_custom_call.1} parent=11 // pred_fallthru
          _
        // Predicated region
        $region25: #{tpu_custom_call.1} parent=11 // pred_check
          %p198 = pneg %p148
        $region26: #{tpu_custom_call.1} parent=11 // pred_check_branch
          %200 = sbr.rel (%p198) target = $region28
        $region27: #{tpu_custom_call.1} parent=11 // pred_region
          _
        $region28: #{tpu_custom_call.1} parent=11 // pred_fallthru
          _
      $region12: #{tpu_custom_call.1} parent=5 // pred_fallthru
        _
      %p201 = scmp.lt.s32.totalorder %s12, 4
      // Predicated region
      $region29: #{tpu_custom_call.1} parent=5 // pred_check
        %p202 = pneg %p201
      $region30: #{tpu_custom_call.1} parent=5 // pred_check_branch
        %204 = sbr.rel (%p202) target = $region32
      $region31: #{tpu_custom_call.1} parent=5 // pred_region
        // Predicated region
        $region33: #{tpu_custom_call.1} parent=31 // pred_check
          %p205 = pneg %p32
        $region34: #{tpu_custom_call.1} parent=31 // pred_check_branch
          %207 = sbr.rel (%p205) target = $region36
        $region35: #{tpu_custom_call.1} parent=31 // pred_region
          %s208 = smul.u32 32, %s12
          %p209 = scmp.lt.s32.totalorder %s208, 127
          %s210 = scalar_select %p209, %s208, 127
          %s211 = smul.addr %s210, 4
          %s212 = scalar_lea.vmem %s0, %s211
          %s213 = smul.u32 32, %s12
        $region36: #{tpu_custom_call.1} parent=31 // pred_fallthru
          _
        // Predicated region
        $region37: #{tpu_custom_call.1} parent=31 // pred_check
          %p214 = pneg %p58
        $region38: #{tpu_custom_call.1} parent=31 // pred_check_branch
          %216 = sbr.rel (%p214) target = $region40
        $region39: #{tpu_custom_call.1} parent=31 // pred_region
          %s217 = smul.u32 32, %s12
          %p218 = scmp.lt.s32.totalorder %s217, 127
          %s219 = scalar_select %p218, %s217, 127
          %s220 = smul.addr %s219, 4
          %s221 = scalar_lea.vmem %s1, %s220
          %s222 = smul.u32 32, %s12
        $region40: #{tpu_custom_call.1} parent=31 // pred_fallthru
          _
      $region32: #{tpu_custom_call.1} parent=5 // pred_fallthru
        _
      %p223 = scmp.le.s32.totalorder 1, %s12
      %p224 = scmp.lt.s32.totalorder %s12, 5
      %p225 = pnand %p223, %p224
      %p226 = pneg %p225
      // Predicated region
      $region41: #{tpu_custom_call.1} parent=5 // pred_check
        _
      $region42: #{tpu_custom_call.1} parent=5 // pred_check_branch
        %228 = sbr.rel (%p225) target = $region44
      $region43: #{tpu_custom_call.1} parent=5 // pred_region
        %s229 = ssub.s32 %s12, 1
        %s230 = smul.u32 32, %s17
        %p231 = scmp.lt.s32.totalorder %s230, 127
        %s232 = scalar_select %p231, %s230, 127
        %s233 = smul.addr %s232, 4
        %s234 = scalar_lea.vmem %s0, %s233
        %p235 = pneg %p38
        %p236 = pneg %p35
        %s237 = smul.u32 32, %s17
        %p238 = scmp.lt.s32.totalorder %s237, 127
        %s239 = scalar_select %p238, %s237, 127
        %s240 = smul.addr %s239, 4
        %s241 = scalar_lea.vmem %s1, %s240
        %p242 = pneg %p64
        %p243 = pneg %p61
        %p244 = pneg %p85
        %p245 = pneg %p82
        %p246 = pneg %p106
        %p247 = pneg %p103
        %p248 = pneg %p127
        %p249 = pneg %p124
        %p250 = pneg %p148
        %p251 = pneg %p145
        %p252 = pneg %p174
        %p253 = pneg %p171
        %s254 = sand.u32 %s161, 1
        %s255 = sand.u32 %s161, 1
        %s256 = smul.addr %s255, 64
        %s257 = scalar_lea.vmem [#allocation2], %s256
        %s258 = smul.u32 32, %s17
        %p259 = scmp.lt.s32.totalorder %s258, 127
        %s260 = scalar_select %p259, %s258, 127
        %s261 = smul.addr %s260, 4
        %s262 = scalar_lea.vmem %s0, %s261
        %s263 = smul.u32 32, %s17
        %s264 = smul.u32 32, %s17
        %p265 = scmp.lt.s32.totalorder %s264, 127
        %s266 = scalar_select %p265, %s264, 127
        %s267 = smul.addr %s266, 4
        %s268 = scalar_lea.vmem %s1, %s267
        %s269 = smul.u32 32, %s17
        %s270 = smul.u32 4, %s17
        %v272 = vld [vmem:[%s262] sm:$0xf]
        %v273 = vld [vmem:[%s262 + $0x4] sm:$0xf]
        %v274 = vld [vmem:[%s262 + $0x8] sm:$0xf]
        %v275 = vld [vmem:[%s262 + $0xc] sm:$0xf]
        %v276 = vld [vmem:[%s262 + $0x10] sm:$0xf]
        %v277 = vld [vmem:[%s262 + $0x14] sm:$0xf]
        %v278 = vld [vmem:[%s262 + $0x18] sm:$0xf]
        %v279 = vld [vmem:[%s262 + $0x1c] sm:$0xf]
        %v280 = vld [vmem:[%s262 + $0x20] sm:$0xf]
        %v281 = vld [vmem:[%s262 + $0x24] sm:$0xf]
        %v282 = vld [vmem:[%s262 + $0x28] sm:$0xf]
        %v283 = vld [vmem:[%s262 + $0x2c] sm:$0xf]
        %v284 = vld [vmem:[%s262 + $0x30] sm:$0xf]
        %v285 = vld [vmem:[%s262 + $0x34] sm:$0xf]
        %v286 = vld [vmem:[%s262 + $0x38] sm:$0xf]
        %v287 = vld [vmem:[%s262 + $0x3c] sm:$0xf]
        %v288 = vld [vmem:[%s262 + $0x40] sm:$0xf]
        %v289 = vld [vmem:[%s262 + $0x44] sm:$0xf]
        %v290 = vld [vmem:[%s262 + $0x48] sm:$0xf]
        %v291 = vld [vmem:[%s262 + $0x4c] sm:$0xf]
        %v292 = vld [vmem:[%s262 + $0x50] sm:$0xf]
        %v293 = vld [vmem:[%s262 + $0x54] sm:$0xf]
        %v294 = vld [vmem:[%s262 + $0x58] sm:$0xf]
        %v295 = vld [vmem:[%s262 + $0x5c] sm:$0xf]
        %v296 = vld [vmem:[%s262 + $0x60] sm:$0xf]
        %v297 = vld [vmem:[%s262 + $0x64] sm:$0xf]
        %v298 = vld [vmem:[%s262 + $0x68] sm:$0xf]
        %v299 = vld [vmem:[%s262 + $0x6c] sm:$0xf]
        %v300 = vld [vmem:[%s262 + $0x70] sm:$0xf]
        %v301 = vld [vmem:[%s262 + $0x74] sm:$0xf]
        %v302 = vld [vmem:[%s262 + $0x78] sm:$0xf]
        %v303 = vld [vmem:[%s262 + $0x7c] sm:$0xf]
        %v304 = vld [vmem:[%s268] sm:$0xf]
        %v305 = vld [vmem:[%s268 + $0x4] sm:$0xf]
        %v306 = vld [vmem:[%s268 + $0x8] sm:$0xf]
        %v307 = vld [vmem:[%s268 + $0xc] sm:$0xf]
        %v308 = vld [vmem:[%s268 + $0x10] sm:$0xf]
        %v309 = vld [vmem:[%s268 + $0x14] sm:$0xf]
        %v310 = vld [vmem:[%s268 + $0x18] sm:$0xf]
        %v311 = vld [vmem:[%s268 + $0x1c] sm:$0xf]
        %v312 = vld [vmem:[%s268 + $0x20] sm:$0xf]
        %v313 = vld [vmem:[%s268 + $0x24] sm:$0xf]
        %v314 = vld [vmem:[%s268 + $0x28] sm:$0xf]
        %v315 = vld [vmem:[%s268 + $0x2c] sm:$0xf]
        %v316 = vld [vmem:[%s268 + $0x30] sm:$0xf]
        %v317 = vld [vmem:[%s268 + $0x34] sm:$0xf]
        %v318 = vld [vmem:[%s268 + $0x38] sm:$0xf]
        %v319 = vld [vmem:[%s268 + $0x3c] sm:$0xf]
        %v320 = vld [vmem:[%s268 + $0x40] sm:$0xf]
        %v321 = vld [vmem:[%s268 + $0x44] sm:$0xf]
        %v322 = vld [vmem:[%s268 + $0x48] sm:$0xf]
        %v323 = vld [vmem:[%s268 + $0x4c] sm:$0xf]
        %v324 = vld [vmem:[%s268 + $0x50] sm:$0xf]
        %v325 = vld [vmem:[%s268 + $0x54] sm:$0xf]
        %v326 = vld [vmem:[%s268 + $0x58] sm:$0xf]
        %v327 = vld [vmem:[%s268 + $0x5c] sm:$0xf]
        %v328 = vld [vmem:[%s268 + $0x60] sm:$0xf]
        %v329 = vld [vmem:[%s268 + $0x64] sm:$0xf]
        %v330 = vld [vmem:[%s268 + $0x68] sm:$0xf]
        %v331 = vld [vmem:[%s268 + $0x6c] sm:$0xf]
        %v332 = vld [vmem:[%s268 + $0x70] sm:$0xf]
        %v333 = vld [vmem:[%s268 + $0x74] sm:$0xf]
        %v334 = vld [vmem:[%s268 + $0x78] sm:$0xf]
        %v335 = vld [vmem:[%s268 + $0x7c] sm:$0xf]
        %v336 = vld [vmem:[%s2] sm:$0xf]
        %v337 = vld [vmem:[%s2 + $0x4] sm:$0xf]
        %v338 = vld [vmem:[%s2 + $0x8] sm:$0xf]
        %v339 = vld [vmem:[%s2 + $0xc] sm:$0xf]
        %v340 = vld [vmem:[%s2 + $0x10] sm:$0xf]
        %v341 = vld [vmem:[%s2 + $0x14] sm:$0xf]
        %v342 = vld [vmem:[%s2 + $0x18] sm:$0xf]
        %v343 = vld [vmem:[%s2 + $0x1c] sm:$0xf]
        %v344 = vld [vmem:[%s3] sm:$0xff]
        %v345 = vld [vmem:[%s3 + $0x8] sm:$0xff]
        %v346 = vld [vmem:[%s3 + $0x10] sm:$0xff]
        %v347 = vld [vmem:[%s3 + $0x18] sm:$0xff]
        %v348 = vld [vmem:[%s3 + $0x20] sm:$0xff]
        %v349 = vld [vmem:[%s3 + $0x28] sm:$0xff]
        %v350 = vld [vmem:[%s3 + $0x30] sm:$0xff]
        %v351 = vld [vmem:[%s3 + $0x38] sm:$0xff]
        %v352 = vld [vmem:[%s3 + $0x40] sm:$0xff]
        %v353 = vld [vmem:[%s3 + $0x48] sm:$0xff]
        %v354 = vld [vmem:[%s3 + $0x50] sm:$0xff]
        %v355 = vld [vmem:[%s3 + $0x58] sm:$0xff]
        %v356 = vld [vmem:[%s3 + $0x60] sm:$0xff]
        %v357 = vld [vmem:[%s3 + $0x68] sm:$0xff]
        %v358 = vld [vmem:[%s3 + $0x70] sm:$0xff]
        %v359 = vld [vmem:[%s3 + $0x78] sm:$0xff]
        %v360 = vld [vmem:[%s3 + $0x80] sm:$0xff]
        %v361 = vld [vmem:[%s3 + $0x88] sm:$0xff]
        %v362 = vld [vmem:[%s3 + $0x90] sm:$0xff]
        %v363 = vld [vmem:[%s3 + $0x98] sm:$0xff]
        %v364 = vld [vmem:[%s3 + $0xa0] sm:$0xff]
        %v365 = vld [vmem:[%s3 + $0xa8] sm:$0xff]
        %v366 = vld [vmem:[%s3 + $0xb0] sm:$0xff]
        %v367 = vld [vmem:[%s3 + $0xb8] sm:$0xff]
        %v368 = vld [vmem:[%s3 + $0xc0] sm:$0xff]
        %v369 = vld [vmem:[%s3 + $0xc8] sm:$0xff]
        %v370 = vld [vmem:[%s3 + $0xd0] sm:$0xff]
        %v371 = vld [vmem:[%s3 + $0xd8] sm:$0xff]
        %v372 = vld [vmem:[%s3 + $0xe0] sm:$0xff]
        %v373 = vld [vmem:[%s3 + $0xe8] sm:$0xff]
        %v374 = vld [vmem:[%s3 + $0xf0] sm:$0xff]
        %v375 = vld [vmem:[%s3 + $0xf8] sm:$0xff]
        %v376 = vld [vmem:[%s3 + $0x100] sm:$0xff]
        %v377 = vld [vmem:[%s3 + $0x108] sm:$0xff]
        %v378 = vld [vmem:[%s3 + $0x110] sm:$0xff]
        %v379 = vld [vmem:[%s3 + $0x118] sm:$0xff]
        %v380 = vld [vmem:[%s3 + $0x120] sm:$0xff]
        %v381 = vld [vmem:[%s3 + $0x128] sm:$0xff]
        %v382 = vld [vmem:[%s3 + $0x130] sm:$0xff]
        %v383 = vld [vmem:[%s3 + $0x138] sm:$0xff]
        %v384 = vld [vmem:[%s3 + $0x140] sm:$0xff]
        %v385 = vld [vmem:[%s3 + $0x148] sm:$0xff]
        %v386 = vld [vmem:[%s3 + $0x150] sm:$0xff]
        %v387 = vld [vmem:[%s3 + $0x158] sm:$0xff]
        %v388 = vld [vmem:[%s3 + $0x160] sm:$0xff]
        %v389 = vld [vmem:[%s3 + $0x168] sm:$0xff]
        %v390 = vld [vmem:[%s3 + $0x170] sm:$0xff]
        %v391 = vld [vmem:[%s3 + $0x178] sm:$0xff]
        %v392 = vld [vmem:[%s3 + $0x180] sm:$0xff]
        %v393 = vld [vmem:[%s3 + $0x188] sm:$0xff]
        %v394 = vld [vmem:[%s3 + $0x190] sm:$0xff]
        %v395 = vld [vmem:[%s3 + $0x198] sm:$0xff]
        %v396 = vld [vmem:[%s3 + $0x1a0] sm:$0xff]
        %v397 = vld [vmem:[%s3 + $0x1a8] sm:$0xff]
        %v398 = vld [vmem:[%s3 + $0x1b0] sm:$0xff]
        %v399 = vld [vmem:[%s3 + $0x1b8] sm:$0xff]
        %v400 = vld [vmem:[%s3 + $0x1c0] sm:$0xff]
        %v401 = vld [vmem:[%s3 + $0x1c8] sm:$0xff]
        %v402 = vld [vmem:[%s3 + $0x1d0] sm:$0xff]
        %v403 = vld [vmem:[%s3 + $0x1d8] sm:$0xff]
        %v404 = vld [vmem:[%s3 + $0x1e0] sm:$0xff]
        %v405 = vld [vmem:[%s3 + $0x1e8] sm:$0xff]
        %v406 = vld [vmem:[%s3 + $0x1f0] sm:$0xff]
        %v407 = vld [vmem:[%s3 + $0x1f8] sm:$0xff]
        %v440 = vunpack.c.l.b16 %v272
        %v441 = vunpack.c.l.b16 %v273
        %v442 = vunpack.c.l.b16 %v274
        %v443 = vunpack.c.l.b16 %v275
        %v444 = vunpack.c.l.b16 %v276
        %v445 = vunpack.c.l.b16 %v277
        %v446 = vunpack.c.l.b16 %v278
        %v447 = vunpack.c.l.b16 %v279
        %v448 = vunpack.c.l.b16 %v280
        %v449 = vunpack.c.l.b16 %v281
        %v450 = vunpack.c.l.b16 %v282
        %v451 = vunpack.c.l.b16 %v283
        %v452 = vunpack.c.l.b16 %v284
        %v453 = vunpack.c.l.b16 %v285
        %v454 = vunpack.c.l.b16 %v286
        %v455 = vunpack.c.l.b16 %v287
        %v456 = vunpack.c.l.b16 %v288
        %v457 = vunpack.c.l.b16 %v289
        %v458 = vunpack.c.l.b16 %v290
        %v459 = vunpack.c.l.b16 %v291
        %v460 = vunpack.c.l.b16 %v292
        %v461 = vunpack.c.l.b16 %v293
        %v462 = vunpack.c.l.b16 %v294
        %v463 = vunpack.c.l.b16 %v295
        %v464 = vunpack.c.l.b16 %v296
        %v465 = vunpack.c.l.b16 %v297
        %v466 = vunpack.c.l.b16 %v298
        %v467 = vunpack.c.l.b16 %v299
        %v468 = vunpack.c.l.b16 %v300
        %v469 = vunpack.c.l.b16 %v301
        %v470 = vunpack.c.l.b16 %v302
        %v471 = vunpack.c.l.b16 %v303
        %v472 = vpack.c.b16 %v441, %v440
        %v473 = vpack.c.b16 %v443, %v442
        %v474 = vpack.c.b16 %v445, %v444
        %v475 = vpack.c.b16 %v447, %v446
        %v476 = vpack.c.b16 %v449, %v448
        %v477 = vpack.c.b16 %v451, %v450
        %v478 = vpack.c.b16 %v453, %v452
        %v479 = vpack.c.b16 %v455, %v454
        %v480 = vpack.c.b16 %v457, %v456
        %v481 = vpack.c.b16 %v459, %v458
        %v482 = vpack.c.b16 %v461, %v460
        %v483 = vpack.c.b16 %v463, %v462
        %v484 = vpack.c.b16 %v465, %v464
        %v485 = vpack.c.b16 %v467, %v466
        %v486 = vpack.c.b16 %v469, %v468
        %v487 = vpack.c.b16 %v471, %v470
        %v496 = vunpack.c.l.b16 %v336
        %v497 = vunpack.c.l.b16 %v337
        %v498 = vunpack.c.l.b16 %v338
        %v499 = vunpack.c.l.b16 %v339
        %v500 = vunpack.c.l.b16 %v340
        %v501 = vunpack.c.l.b16 %v341
        %v502 = vunpack.c.l.b16 %v342
        %v503 = vunpack.c.l.b16 %v343
        %v504 = vpack.c.b16 %v497, %v496
        %v505 = vpack.c.b16 %v499, %v498
        %v506 = vpack.c.b16 %v501, %v500
        %v507 = vpack.c.b16 %v503, %v502
        %vm512 = vcmask 523264
        %v514 = vsel %vm512, %v472, 0
        %v517 = vsel %vm512, %v473, 0
        %v520 = vsel %vm512, %v474, 0
        %v523 = vsel %vm512, %v475, 0
        %v526 = vsel %vm512, %v476, 0
        %v529 = vsel %vm512, %v477, 0
        %v532 = vsel %vm512, %v478, 0
        %v535 = vsel %vm512, %v479, 0
        %v538 = vsel %vm512, %v480, 0
        %v541 = vsel %vm512, %v481, 0
        %v544 = vsel %vm512, %v482, 0
        %v547 = vsel %vm512, %v483, 0
        %v550 = vsel %vm512, %v484, 0
        %v553 = vsel %vm512, %v485, 0
        %v556 = vsel %vm512, %v486, 0
        %v559 = vsel %vm512, %v487, 0
        %561 = vmatpush.bf16.msra.mxu0 0
        %562 = vmatpush.bf16.msra.mxu0 0
        %563 = vmatpush.bf16.msra.mxu0 0
        %564 = vmatpush.bf16.msra.mxu0 0
        %565 = vmatpush.bf16.msra.mxu0 %v507
        %566 = vmatpush.bf16.msra.mxu0 %v506
        %567 = vmatpush.bf16.msra.mxu0 %v505
        %568 = vmatpush.bf16.msra.mxu0 %v504
        %569 = vmatmul.bf16.gmra.mxu0 %v514
        %v570 = vpop.f32.mrf.mxu0
        %v571 = vadd.f32 0.0, %v570
        %v572 = vpop.f32.mrf.mxu0
        %v573 = vadd.f32 0.0, %v572
        %574 = vmatmul.bf16.gmra.mxu0 %v517
        %v575 = vpop.f32.mrf.mxu0
        %v576 = vadd.f32 0.0, %v575
        %v577 = vpop.f32.mrf.mxu0
        %v578 = vadd.f32 0.0, %v577
        %579 = vmatmul.bf16.gmra.mxu0 %v520
        %v580 = vpop.f32.mrf.mxu0
        %v581 = vadd.f32 0.0, %v580
        %v582 = vpop.f32.mrf.mxu0
        %v583 = vadd.f32 0.0, %v582
        %584 = vmatmul.bf16.gmra.mxu0 %v523
        %v585 = vpop.f32.mrf.mxu0
        %v586 = vadd.f32 0.0, %v585
        %v587 = vpop.f32.mrf.mxu0
        %v588 = vadd.f32 0.0, %v587
        %589 = vmatmul.bf16.gmra.mxu0 %v526
        %v590 = vpop.f32.mrf.mxu0
        %v591 = vadd.f32 0.0, %v590
        %v592 = vpop.f32.mrf.mxu0
        %v593 = vadd.f32 0.0, %v592
        %594 = vmatmul.bf16.gmra.mxu0 %v529
        %v595 = vpop.f32.mrf.mxu0
        %v596 = vadd.f32 0.0, %v595
        %v597 = vpop.f32.mrf.mxu0
        %v598 = vadd.f32 0.0, %v597
        %599 = vmatmul.bf16.gmra.mxu0 %v532
        %v600 = vpop.f32.mrf.mxu0
        %v601 = vadd.f32 0.0, %v600
        %v602 = vpop.f32.mrf.mxu0
        %v603 = vadd.f32 0.0, %v602
        %604 = vmatmul.bf16.gmra.mxu0 %v535
        %v605 = vpop.f32.mrf.mxu0
        %v606 = vadd.f32 0.0, %v605
        %v607 = vpop.f32.mrf.mxu0
        %v608 = vadd.f32 0.0, %v607
        %609 = vmatmul.bf16.gmra.mxu0 %v538
        %v610 = vpop.f32.mrf.mxu0
        %v611 = vadd.f32 0.0, %v610
        %v612 = vpop.f32.mrf.mxu0
        %v613 = vadd.f32 0.0, %v612
        %614 = vmatmul.bf16.gmra.mxu0 %v541
        %v615 = vpop.f32.mrf.mxu0
        %v616 = vadd.f32 0.0, %v615
        %v617 = vpop.f32.mrf.mxu0
        %v618 = vadd.f32 0.0, %v617
        %619 = vmatmul.bf16.gmra.mxu0 %v544
        %v620 = vpop.f32.mrf.mxu0
        %v621 = vadd.f32 0.0, %v620
        %v622 = vpop.f32.mrf.mxu0
        %v623 = vadd.f32 0.0, %v622
        %624 = vmatmul.bf16.gmra.mxu0 %v547
        %v625 = vpop.f32.mrf.mxu0
        %v626 = vadd.f32 0.0, %v625
        %v627 = vpop.f32.mrf.mxu0
        %v628 = vadd.f32 0.0, %v627
        %629 = vmatmul.bf16.gmra.mxu0 %v550
        %v630 = vpop.f32.mrf.mxu0
        %v631 = vadd.f32 0.0, %v630
        %v632 = vpop.f32.mrf.mxu0
        %v633 = vadd.f32 0.0, %v632
        %634 = vmatmul.bf16.gmra.mxu0 %v553
        %v635 = vpop.f32.mrf.mxu0
        %v636 = vadd.f32 0.0, %v635
        %v637 = vpop.f32.mrf.mxu0
        %v638 = vadd.f32 0.0, %v637
        %639 = vmatmul.bf16.gmra.mxu0 %v556
        %v640 = vpop.f32.mrf.mxu0
        %v641 = vadd.f32 0.0, %v640
        %v642 = vpop.f32.mrf.mxu0
        %v643 = vadd.f32 0.0, %v642
        %644 = vmatmul.bf16.gmra.mxu0 %v559
        %v645 = vpop.f32.mrf.mxu0
        %v646 = vadd.f32 0.0, %v645
        %v647 = vpop.f32.mrf.mxu0
        %v648 = vadd.f32 0.0, %v647
        %649 = vdwg.mxu0
        %v650 = vpack.c.bf16 %v573, %v571
        %v651 = vpack.c.bf16 %v578, %v576
        %v652 = vpack.c.bf16 %v583, %v581
        %v653 = vpack.c.bf16 %v588, %v586
        %v654 = vpack.c.bf16 %v593, %v591
        %v655 = vpack.c.bf16 %v598, %v596
        %v656 = vpack.c.bf16 %v603, %v601
        %v657 = vpack.c.bf16 %v608, %v606
        %v658 = vpack.c.bf16 %v613, %v611
        %v659 = vpack.c.bf16 %v618, %v616
        %v660 = vpack.c.bf16 %v623, %v621
        %v661 = vpack.c.bf16 %v628, %v626
        %v662 = vpack.c.bf16 %v633, %v631
        %v663 = vpack.c.bf16 %v638, %v636
        %v664 = vpack.c.bf16 %v643, %v641
        %v665 = vpack.c.bf16 %v648, %v646
        %v698 = vunpack.c.l.b16 %v304
        %v699 = vunpack.c.l.b16 %v305
        %v700 = vunpack.c.l.b16 %v306
        %v701 = vunpack.c.l.b16 %v307
        %v702 = vunpack.c.l.b16 %v308
        %v703 = vunpack.c.l.b16 %v309
        %v704 = vunpack.c.l.b16 %v310
        %v705 = vunpack.c.l.b16 %v311
        %v706 = vunpack.c.l.b16 %v312
        %v707 = vunpack.c.l.b16 %v313
        %v708 = vunpack.c.l.b16 %v314
        %v709 = vunpack.c.l.b16 %v315
        %v710 = vunpack.c.l.b16 %v316
        %v711 = vunpack.c.l.b16 %v317
        %v712 = vunpack.c.l.b16 %v318
        %v713 = vunpack.c.l.b16 %v319
        %v714 = vunpack.c.l.b16 %v320
        %v715 = vunpack.c.l.b16 %v321
        %v716 = vunpack.c.l.b16 %v322
        %v717 = vunpack.c.l.b16 %v323
        %v718 = vunpack.c.l.b16 %v324
        %v719 = vunpack.c.l.b16 %v325
        %v720 = vunpack.c.l.b16 %v326
        %v721 = vunpack.c.l.b16 %v327
        %v722 = vunpack.c.l.b16 %v328
        %v723 = vunpack.c.l.b16 %v329
        %v724 = vunpack.c.l.b16 %v330
        %v725 = vunpack.c.l.b16 %v331
        %v726 = vunpack.c.l.b16 %v332
        %v727 = vunpack.c.l.b16 %v333
        %v728 = vunpack.c.l.b16 %v334
        %v729 = vunpack.c.l.b16 %v335
        %v730 = vpack.c.b16 %v699, %v698
        %v731 = vpack.c.b16 %v701, %v700
        %v732 = vpack.c.b16 %v703, %v702
        %v733 = vpack.c.b16 %v705, %v704
        %v734 = vpack.c.b16 %v707, %v706
        %v735 = vpack.c.b16 %v709, %v708
        %v736 = vpack.c.b16 %v711, %v710
        %v737 = vpack.c.b16 %v713, %v712
        %v738 = vpack.c.b16 %v715, %v714
        %v739 = vpack.c.b16 %v717, %v716
        %v740 = vpack.c.b16 %v719, %v718
        %v741 = vpack.c.b16 %v721, %v720
        %v742 = vpack.c.b16 %v723, %v722
        %v743 = vpack.c.b16 %v725, %v724
        %v744 = vpack.c.b16 %v727, %v726
        %v745 = vpack.c.b16 %v729, %v728
        %vm746 = vcmask 261120
        %v748 = vsel %vm746, %v650, 0
        %v751 = vsel %vm746, %v651, 0
        %v754 = vsel %vm746, %v652, 0
        %v757 = vsel %vm746, %v653, 0
        %v760 = vsel %vm746, %v654, 0
        %v763 = vsel %vm746, %v655, 0
        %v766 = vsel %vm746, %v656, 0
        %v769 = vsel %vm746, %v657, 0
        %v772 = vsel %vm746, %v658, 0
        %v775 = vsel %vm746, %v659, 0
        %v778 = vsel %vm746, %v660, 0
        %v781 = vsel %vm746, %v661, 0
        %v784 = vsel %vm746, %v662, 0
        %v787 = vsel %vm746, %v663, 0
        %v790 = vsel %vm746, %v664, 0
        %v793 = vsel %vm746, %v665, 0
        %v796 = vsel %vm746, %v730, 0
        %v799 = vsel %vm746, %v731, 0
        %v802 = vsel %vm746, %v732, 0
        %v805 = vsel %vm746, %v733, 0
        %v808 = vsel %vm746, %v734, 0
        %v811 = vsel %vm746, %v735, 0
        %v814 = vsel %vm746, %v736, 0
        %v817 = vsel %vm746, %v737, 0
        %v820 = vsel %vm746, %v738, 0
        %v823 = vsel %vm746, %v739, 0
        %v826 = vsel %vm746, %v740, 0
        %v829 = vsel %vm746, %v741, 0
        %v832 = vsel %vm746, %v742, 0
        %v835 = vsel %vm746, %v743, 0
        %v838 = vsel %vm746, %v744, 0
        %v841 = vsel %vm746, %v745, 0
        %843 = vmatpush.bf16.xpose.msra.mxu0 %v817
        %844 = vmatpush.bf16.xpose.msra.mxu0 %v814
        %845 = vmatpush.bf16.xpose.msra.mxu0 %v811
        %846 = vmatpush.bf16.xpose.msra.mxu0 %v808
        %847 = vmatpush.bf16.xpose.msra.mxu0 %v805
        %848 = vmatpush.bf16.xpose.msra.mxu0 %v802
        %849 = vmatpush.bf16.xpose.msra.mxu0 %v799
        %850 = vmatpush.bf16.xpose.msra.mxu0 %v796
        %851 = vmatmul.bf16.gmra.mxu0 %v748
        %v852 = vpop.f32.mrf.mxu0
        %v853 = vadd.f32 0.0, %v852
        %v854 = vpop.f32.mrf.mxu0
        %v855 = vadd.f32 0.0, %v854
        %856 = vmatmul.bf16.gmra.mxu0 %v751
        %v857 = vpop.f32.mrf.mxu0
        %v858 = vadd.f32 0.0, %v857
        %v859 = vpop.f32.mrf.mxu0
        %v860 = vadd.f32 0.0, %v859
        %861 = vmatmul.bf16.gmra.mxu0 %v754
        %v862 = vpop.f32.mrf.mxu0
        %v863 = vadd.f32 0.0, %v862
        %v864 = vpop.f32.mrf.mxu0
        %v865 = vadd.f32 0.0, %v864
        %866 = vmatmul.bf16.gmra.mxu0 %v757
        %v867 = vpop.f32.mrf.mxu0
        %v868 = vadd.f32 0.0, %v867
        %v869 = vpop.f32.mrf.mxu0
        %v870 = vadd.f32 0.0, %v869
        %871 = vmatmul.bf16.gmra.mxu0 %v760
        %v872 = vpop.f32.mrf.mxu0
        %v873 = vadd.f32 0.0, %v872
        %v874 = vpop.f32.mrf.mxu0
        %v875 = vadd.f32 0.0, %v874
        %876 = vmatmul.bf16.gmra.mxu0 %v763
        %v877 = vpop.f32.mrf.mxu0
        %v878 = vadd.f32 0.0, %v877
        %v879 = vpop.f32.mrf.mxu0
        %v880 = vadd.f32 0.0, %v879
        %881 = vmatmul.bf16.gmra.mxu0 %v766
        %v882 = vpop.f32.mrf.mxu0
        %v883 = vadd.f32 0.0, %v882
        %v884 = vpop.f32.mrf.mxu0
        %v885 = vadd.f32 0.0, %v884
        %886 = vmatmul.bf16.gmra.mxu0 %v769
        %v887 = vpop.f32.mrf.mxu0
        %v888 = vadd.f32 0.0, %v887
        %v889 = vpop.f32.mrf.mxu0
        %v890 = vadd.f32 0.0, %v889
        %891 = vmatmul.bf16.gmra.mxu0 %v772
        %v892 = vpop.f32.mrf.mxu0
        %v893 = vadd.f32 0.0, %v892
        %v894 = vpop.f32.mrf.mxu0
        %v895 = vadd.f32 0.0, %v894
        %896 = vmatmul.bf16.gmra.mxu0 %v775
        %v897 = vpop.f32.mrf.mxu0
        %v898 = vadd.f32 0.0, %v897
        %v899 = vpop.f32.mrf.mxu0
        %v900 = vadd.f32 0.0, %v899
        %901 = vmatmul.bf16.gmra.mxu0 %v778
        %v902 = vpop.f32.mrf.mxu0
        %v903 = vadd.f32 0.0, %v902
        %v904 = vpop.f32.mrf.mxu0
        %v905 = vadd.f32 0.0, %v904
        %906 = vmatmul.bf16.gmra.mxu0 %v781
        %v907 = vpop.f32.mrf.mxu0
        %v908 = vadd.f32 0.0, %v907
        %v909 = vpop.f32.mrf.mxu0
        %v910 = vadd.f32 0.0, %v909
        %911 = vmatmul.bf16.gmra.mxu0 %v784
        %v912 = vpop.f32.mrf.mxu0
        %v913 = vadd.f32 0.0, %v912
        %v914 = vpop.f32.mrf.mxu0
        %v915 = vadd.f32 0.0, %v914
        %916 = vmatmul.bf16.gmra.mxu0 %v787
        %v917 = vpop.f32.mrf.mxu0
        %v918 = vadd.f32 0.0, %v917
        %v919 = vpop.f32.mrf.mxu0
        %v920 = vadd.f32 0.0, %v919
        %921 = vmatmul.bf16.gmra.mxu0 %v790
        %v922 = vpop.f32.mrf.mxu0
        %v923 = vadd.f32 0.0, %v922
        %v924 = vpop.f32.mrf.mxu0
        %v925 = vadd.f32 0.0, %v924
        %926 = vmatmul.bf16.gmra.mxu0 %v793
        %v927 = vpop.f32.mrf.mxu0
        %v928 = vadd.f32 0.0, %v927
        %v929 = vpop.f32.mrf.mxu0
        %v930 = vadd.f32 0.0, %v929
        %931 = vdwg.mxu0
        %932 = vmatpush.bf16.xpose.msra.mxu0 %v841
        %933 = vmatpush.bf16.xpose.msra.mxu0 %v838
        %934 = vmatpush.bf16.xpose.msra.mxu0 %v835
        %935 = vmatpush.bf16.xpose.msra.mxu0 %v832
        %936 = vmatpush.bf16.xpose.msra.mxu0 %v829
        %937 = vmatpush.bf16.xpose.msra.mxu0 %v826
        %938 = vmatpush.bf16.xpose.msra.mxu0 %v823
        %939 = vmatpush.bf16.xpose.msra.mxu0 %v820
        %940 = vmatmul.bf16.gmra.mxu0 %v748
        %v941 = vpop.f32.mrf.mxu0
        %v942 = vadd.f32 0.0, %v941
        %v943 = vpop.f32.mrf.mxu0
        %v944 = vadd.f32 0.0, %v943
        %945 = vmatmul.bf16.gmra.mxu0 %v751
        %v946 = vpop.f32.mrf.mxu0
        %v947 = vadd.f32 0.0, %v946
        %v948 = vpop.f32.mrf.mxu0
        %v949 = vadd.f32 0.0, %v948
        %950 = vmatmul.bf16.gmra.mxu0 %v754
        %v951 = vpop.f32.mrf.mxu0
        %v952 = vadd.f32 0.0, %v951
        %v953 = vpop.f32.mrf.mxu0
        %v954 = vadd.f32 0.0, %v953
        %955 = vmatmul.bf16.gmra.mxu0 %v757
        %v956 = vpop.f32.mrf.mxu0
        %v957 = vadd.f32 0.0, %v956
        %v958 = vpop.f32.mrf.mxu0
        %v959 = vadd.f32 0.0, %v958
        %960 = vmatmul.bf16.gmra.mxu0 %v760
        %v961 = vpop.f32.mrf.mxu0
        %v962 = vadd.f32 0.0, %v961
        %v963 = vpop.f32.mrf.mxu0
        %v964 = vadd.f32 0.0, %v963
        %965 = vmatmul.bf16.gmra.mxu0 %v763
        %v966 = vpop.f32.mrf.mxu0
        %v967 = vadd.f32 0.0, %v966
        %v968 = vpop.f32.mrf.mxu0
        %v969 = vadd.f32 0.0, %v968
        %970 = vmatmul.bf16.gmra.mxu0 %v766
        %v971 = vpop.f32.mrf.mxu0
        %v972 = vadd.f32 0.0, %v971
        %v973 = vpop.f32.mrf.mxu0
        %v974 = vadd.f32 0.0, %v973
        %975 = vmatmul.bf16.gmra.mxu0 %v769
        %v976 = vpop.f32.mrf.mxu0
        %v977 = vadd.f32 0.0, %v976
        %v978 = vpop.f32.mrf.mxu0
        %v979 = vadd.f32 0.0, %v978
        %980 = vmatmul.bf16.gmra.mxu0 %v772
        %v981 = vpop.f32.mrf.mxu0
        %v982 = vadd.f32 0.0, %v981
        %v983 = vpop.f32.mrf.mxu0
        %v984 = vadd.f32 0.0, %v983
        %985 = vmatmul.bf16.gmra.mxu0 %v775
        %v986 = vpop.f32.mrf.mxu0
        %v987 = vadd.f32 0.0, %v986
        %v988 = vpop.f32.mrf.mxu0
        %v989 = vadd.f32 0.0, %v988
        %990 = vmatmul.bf16.gmra.mxu0 %v778
        %v991 = vpop.f32.mrf.mxu0
        %v992 = vadd.f32 0.0, %v991
        %v993 = vpop.f32.mrf.mxu0
        %v994 = vadd.f32 0.0, %v993
        %995 = vmatmul.bf16.gmra.mxu0 %v781
        %v996 = vpop.f32.mrf.mxu0
        %v997 = vadd.f32 0.0, %v996
        %v998 = vpop.f32.mrf.mxu0
        %v999 = vadd.f32 0.0, %v998
        %1000 = vmatmul.bf16.gmra.mxu0 %v784
        %v1001 = vpop.f32.mrf.mxu0
        %v1002 = vadd.f32 0.0, %v1001
        %v1003 = vpop.f32.mrf.mxu0
        %v1004 = vadd.f32 0.0, %v1003
        %1005 = vmatmul.bf16.gmra.mxu0 %v787
        %v1006 = vpop.f32.mrf.mxu0
        %v1007 = vadd.f32 0.0, %v1006
        %v1008 = vpop.f32.mrf.mxu0
        %v1009 = vadd.f32 0.0, %v1008
        %1010 = vmatmul.bf16.gmra.mxu0 %v790
        %v1011 = vpop.f32.mrf.mxu0
        %v1012 = vadd.f32 0.0, %v1011
        %v1013 = vpop.f32.mrf.mxu0
        %v1014 = vadd.f32 0.0, %v1013
        %1015 = vmatmul.bf16.gmra.mxu0 %v793
        %v1016 = vpop.f32.mrf.mxu0
        %v1017 = vadd.f32 0.0, %v1016
        %v1018 = vpop.f32.mrf.mxu0
        %v1019 = vadd.f32 0.0, %v1018
        %1020 = vdwg.mxu0
        %v1021 = vmax.f32 %v853, 0.0
        %v1022 = vmax.f32 %v942, 0.0
        %v1023 = vmax.f32 %v855, 0.0
        %v1024 = vmax.f32 %v944, 0.0
        %v1025 = vmax.f32 %v858, 0.0
        %v1026 = vmax.f32 %v947, 0.0
        %v1027 = vmax.f32 %v860, 0.0
        %v1028 = vmax.f32 %v949, 0.0
        %v1029 = vmax.f32 %v863, 0.0
        %v1030 = vmax.f32 %v952, 0.0
        %v1031 = vmax.f32 %v865, 0.0
        %v1032 = vmax.f32 %v954, 0.0
        %v1033 = vmax.f32 %v868, 0.0
        %v1034 = vmax.f32 %v957, 0.0
        %v1035 = vmax.f32 %v870, 0.0
        %v1036 = vmax.f32 %v959, 0.0
        %v1037 = vmax.f32 %v873, 0.0
        %v1038 = vmax.f32 %v962, 0.0
        %v1039 = vmax.f32 %v875, 0.0
        %v1040 = vmax.f32 %v964, 0.0
        %v1041 = vmax.f32 %v878, 0.0
        %v1042 = vmax.f32 %v967, 0.0
        %v1043 = vmax.f32 %v880, 0.0
        %v1044 = vmax.f32 %v969, 0.0
        %v1045 = vmax.f32 %v883, 0.0
        %v1046 = vmax.f32 %v972, 0.0
        %v1047 = vmax.f32 %v885, 0.0
        %v1048 = vmax.f32 %v974, 0.0
        %v1049 = vmax.f32 %v888, 0.0
        %v1050 = vmax.f32 %v977, 0.0
        %v1051 = vmax.f32 %v890, 0.0
        %v1052 = vmax.f32 %v979, 0.0
        %v1053 = vmax.f32 %v893, 0.0
        %v1054 = vmax.f32 %v982, 0.0
        %v1055 = vmax.f32 %v895, 0.0
        %v1056 = vmax.f32 %v984, 0.0
        %v1057 = vmax.f32 %v898, 0.0
        %v1058 = vmax.f32 %v987, 0.0
        %v1059 = vmax.f32 %v900, 0.0
        %v1060 = vmax.f32 %v989, 0.0
        %v1061 = vmax.f32 %v903, 0.0
        %v1062 = vmax.f32 %v992, 0.0
        %v1063 = vmax.f32 %v905, 0.0
        %v1064 = vmax.f32 %v994, 0.0
        %v1065 = vmax.f32 %v908, 0.0
        %v1066 = vmax.f32 %v997, 0.0
        %v1067 = vmax.f32 %v910, 0.0
        %v1068 = vmax.f32 %v999, 0.0
        %v1069 = vmax.f32 %v913, 0.0
        %v1070 = vmax.f32 %v1002, 0.0
        %v1071 = vmax.f32 %v915, 0.0
        %v1072 = vmax.f32 %v1004, 0.0
        %v1073 = vmax.f32 %v918, 0.0
        %v1074 = vmax.f32 %v1007, 0.0
        %v1075 = vmax.f32 %v920, 0.0
        %v1076 = vmax.f32 %v1009, 0.0
        %v1077 = vmax.f32 %v923, 0.0
        %v1078 = vmax.f32 %v1012, 0.0
        %v1079 = vmax.f32 %v925, 0.0
        %v1080 = vmax.f32 %v1014, 0.0
        %v1081 = vmax.f32 %v928, 0.0
        %v1082 = vmax.f32 %v1017, 0.0
        %v1083 = vmax.f32 %v930, 0.0
        %v1084 = vmax.f32 %v1019, 0.0
        %v1085 = vmul.f32 %v344, %v1021
        %v1086 = vmul.f32 %v345, %v1022
        %v1087 = vmul.f32 %v346, %v1023
        %v1088 = vmul.f32 %v347, %v1024
        %v1089 = vmul.f32 %v348, %v1025
        %v1090 = vmul.f32 %v349, %v1026
        %v1091 = vmul.f32 %v350, %v1027
        %v1092 = vmul.f32 %v351, %v1028
        %v1093 = vmul.f32 %v352, %v1029
        %v1094 = vmul.f32 %v353, %v1030
        %v1095 = vmul.f32 %v354, %v1031
        %v1096 = vmul.f32 %v355, %v1032
        %v1097 = vmul.f32 %v356, %v1033
        %v1098 = vmul.f32 %v357, %v1034
        %v1099 = vmul.f32 %v358, %v1035
        %v1100 = vmul.f32 %v359, %v1036
        %v1101 = vmul.f32 %v360, %v1037
        %v1102 = vmul.f32 %v361, %v1038
        %v1103 = vmul.f32 %v362, %v1039
        %v1104 = vmul.f32 %v363, %v1040
        %v1105 = vmul.f32 %v364, %v1041
        %v1106 = vmul.f32 %v365, %v1042
        %v1107 = vmul.f32 %v366, %v1043
        %v1108 = vmul.f32 %v367, %v1044
        %v1109 = vmul.f32 %v368, %v1045
        %v1110 = vmul.f32 %v369, %v1046
        %v1111 = vmul.f32 %v370, %v1047
        %v1112 = vmul.f32 %v371, %v1048
        %v1113 = vmul.f32 %v372, %v1049
        %v1114 = vmul.f32 %v373, %v1050
        %v1115 = vmul.f32 %v374, %v1051
        %v1116 = vmul.f32 %v375, %v1052
        %v1117 = vmul.f32 %v376, %v1053
        %v1118 = vmul.f32 %v377, %v1054
        %v1119 = vmul.f32 %v378, %v1055
        %v1120 = vmul.f32 %v379, %v1056
        %v1121 = vmul.f32 %v380, %v1057
        %v1122 = vmul.f32 %v381, %v1058
        %v1123 = vmul.f32 %v382, %v1059
        %v1124 = vmul.f32 %v383, %v1060
        %v1125 = vmul.f32 %v384, %v1061
        %v1126 = vmul.f32 %v385, %v1062
        %v1127 = vmul.f32 %v386, %v1063
        %v1128 = vmul.f32 %v387, %v1064
        %v1129 = vmul.f32 %v388, %v1065
        %v1130 = vmul.f32 %v389, %v1066
        %v1131 = vmul.f32 %v390, %v1067
        %v1132 = vmul.f32 %v391, %v1068
        %v1133 = vmul.f32 %v392, %v1069
        %v1134 = vmul.f32 %v393, %v1070
        %v1135 = vmul.f32 %v394, %v1071
        %v1136 = vmul.f32 %v395, %v1072
        %v1137 = vmul.f32 %v396, %v1073
        %v1138 = vmul.f32 %v397, %v1074
        %v1139 = vmul.f32 %v398, %v1075
        %v1140 = vmul.f32 %v399, %v1076
        %v1141 = vmul.f32 %v400, %v1077
        %v1142 = vmul.f32 %v401, %v1078
        %v1143 = vmul.f32 %v402, %v1079
        %v1144 = vmul.f32 %v403, %v1080
        %v1145 = vmul.f32 %v404, %v1081
        %v1146 = vmul.f32 %v405, %v1082
        %v1147 = vmul.f32 %v406, %v1083
        %v1148 = vmul.f32 %v407, %v1084
        %v1149 = vpack.c.bf16 %v1087, %v1085
        %v1150 = vpack.c.bf16 %v1088, %v1086
        %v1151 = vpack.c.bf16 %v1091, %v1089
        %v1152 = vpack.c.bf16 %v1092, %v1090
        %v1153 = vpack.c.bf16 %v1095, %v1093
        %v1154 = vpack.c.bf16 %v1096, %v1094
        %v1155 = vpack.c.bf16 %v1099, %v1097
        %v1156 = vpack.c.bf16 %v1100, %v1098
        %v1157 = vpack.c.bf16 %v1103, %v1101
        %v1158 = vpack.c.bf16 %v1104, %v1102
        %v1159 = vpack.c.bf16 %v1107, %v1105
        %v1160 = vpack.c.bf16 %v1108, %v1106
        %v1161 = vpack.c.bf16 %v1111, %v1109
        %v1162 = vpack.c.bf16 %v1112, %v1110
        %v1163 = vpack.c.bf16 %v1115, %v1113
        %v1164 = vpack.c.bf16 %v1116, %v1114
        %v1165 = vpack.c.bf16 %v1119, %v1117
        %v1166 = vpack.c.bf16 %v1120, %v1118
        %v1167 = vpack.c.bf16 %v1123, %v1121
        %v1168 = vpack.c.bf16 %v1124, %v1122
        %v1169 = vpack.c.bf16 %v1127, %v1125
        %v1170 = vpack.c.bf16 %v1128, %v1126
        %v1171 = vpack.c.bf16 %v1131, %v1129
        %v1172 = vpack.c.bf16 %v1132, %v1130
        %v1173 = vpack.c.bf16 %v1135, %v1133
        %v1174 = vpack.c.bf16 %v1136, %v1134
        %v1175 = vpack.c.bf16 %v1139, %v1137
        %v1176 = vpack.c.bf16 %v1140, %v1138
        %v1177 = vpack.c.bf16 %v1143, %v1141
        %v1178 = vpack.c.bf16 %v1144, %v1142
        %v1179 = vpack.c.bf16 %v1147, %v1145
        %v1180 = vpack.c.bf16 %v1148, %v1146
        %1181 = vxpose.xlu0.b32.start [1/16] %v1085, 128
        %1182 = vxpose.xlu0.b32.cont [2/16] %v1087, 128
        %1183 = vxpose.xlu0.b32.cont [3/16] %v1089, 128
        %1184 = vxpose.xlu0.b32.cont [4/16] %v1091, 128
        %1185 = vxpose.xlu0.b32.cont [5/16] %v1093, 128
        %1186 = vxpose.xlu0.b32.cont [6/16] %v1095, 128
        %1187 = vxpose.xlu0.b32.cont [7/16] %v1097, 128
        %1188 = vxpose.xlu0.b32.cont [8/16] %v1099, 128
        %1189 = vxpose.xlu0.b32.cont [9/16] %v1101, 128
        %1190 = vxpose.xlu0.b32.cont [10/16] %v1103, 128
        %1191 = vxpose.xlu0.b32.cont [11/16] %v1105, 128
        %1192 = vxpose.xlu0.b32.cont [12/16] %v1107, 128
        %1193 = vxpose.xlu0.b32.cont [13/16] %v1109, 128
        %1194 = vxpose.xlu0.b32.cont [14/16] %v1111, 128
        %1195 = vxpose.xlu0.b32.cont [15/16] %v1113, 128
        %1196 = vxpose.xlu0.b32.end [16/16] %v1115, 128
        %v1197 = vpop.trf.xlu0
        %v1198 = vpop.trf.xlu0
        %v1199 = vpop.trf.xlu0
        %v1200 = vpop.trf.xlu0
        %v1201 = vpop.trf.xlu0
        %v1202 = vpop.trf.xlu0
        %v1203 = vpop.trf.xlu0
        %v1204 = vpop.trf.xlu0
        %v1205 = vpop.trf.xlu0
        %v1206 = vpop.trf.xlu0
        %v1207 = vpop.trf.xlu0
        %v1208 = vpop.trf.xlu0
        %v1209 = vpop.trf.xlu0
        %v1210 = vpop.trf.xlu0
        %v1211 = vpop.trf.xlu0
        %v1212 = vpop.trf.xlu0
        %1213 = vxpose.xlu0.b32.start [1/16] %v1086, 128
        %1214 = vxpose.xlu0.b32.cont [2/16] %v1088, 128
        %1215 = vxpose.xlu0.b32.cont [3/16] %v1090, 128
        %1216 = vxpose.xlu0.b32.cont [4/16] %v1092, 128
        %1217 = vxpose.xlu0.b32.cont [5/16] %v1094, 128
        %1218 = vxpose.xlu0.b32.cont [6/16] %v1096, 128
        %1219 = vxpose.xlu0.b32.cont [7/16] %v1098, 128
        %1220 = vxpose.xlu0.b32.cont [8/16] %v1100, 128
        %1221 = vxpose.xlu0.b32.cont [9/16] %v1102, 128
        %1222 = vxpose.xlu0.b32.cont [10/16] %v1104, 128
        %1223 = vxpose.xlu0.b32.cont [11/16] %v1106, 128
        %1224 = vxpose.xlu0.b32.cont [12/16] %v1108, 128
        %1225 = vxpose.xlu0.b32.cont [13/16] %v1110, 128
        %1226 = vxpose.xlu0.b32.cont [14/16] %v1112, 128
        %1227 = vxpose.xlu0.b32.cont [15/16] %v1114, 128
        %1228 = vxpose.xlu0.b32.end [16/16] %v1116, 128
        %v1229 = vpop.trf.xlu0
        %v1230 = vpop.trf.xlu0
        %v1231 = vpop.trf.xlu0
        %v1232 = vpop.trf.xlu0
        %v1233 = vpop.trf.xlu0
        %v1234 = vpop.trf.xlu0
        %v1235 = vpop.trf.xlu0
        %v1236 = vpop.trf.xlu0
        %v1237 = vpop.trf.xlu0
        %v1238 = vpop.trf.xlu0
        %v1239 = vpop.trf.xlu0
        %v1240 = vpop.trf.xlu0
        %v1241 = vpop.trf.xlu0
        %v1242 = vpop.trf.xlu0
        %v1243 = vpop.trf.xlu0
        %v1244 = vpop.trf.xlu0
        %1245 = vxpose.xlu0.b32.start [1/16] %v1117, 128
        %1246 = vxpose.xlu0.b32.cont [2/16] %v1119, 128
        %1247 = vxpose.xlu0.b32.cont [3/16] %v1121, 128
        %1248 = vxpose.xlu0.b32.cont [4/16] %v1123, 128
        %1249 = vxpose.xlu0.b32.cont [5/16] %v1125, 128
        %1250 = vxpose.xlu0.b32.cont [6/16] %v1127, 128
        %1251 = vxpose.xlu0.b32.cont [7/16] %v1129, 128
        %1252 = vxpose.xlu0.b32.cont [8/16] %v1131, 128
        %1253 = vxpose.xlu0.b32.cont [9/16] %v1133, 128
        %1254 = vxpose.xlu0.b32.cont [10/16] %v1135, 128
        %1255 = vxpose.xlu0.b32.cont [11/16] %v1137, 128
        %1256 = vxpose.xlu0.b32.cont [12/16] %v1139, 128
        %1257 = vxpose.xlu0.b32.cont [13/16] %v1141, 128
        %1258 = vxpose.xlu0.b32.cont [14/16] %v1143, 128
        %1259 = vxpose.xlu0.b32.cont [15/16] %v1145, 128
        %1260 = vxpose.xlu0.b32.end [16/16] %v1147, 128
        %v1261 = vpop.trf.xlu0
        %v1262 = vpop.trf.xlu0
        %v1263 = vpop.trf.xlu0
        %v1264 = vpop.trf.xlu0
        %v1265 = vpop.trf.xlu0
        %v1266 = vpop.trf.xlu0
        %v1267 = vpop.trf.xlu0
        %v1268 = vpop.trf.xlu0
        %v1269 = vpop.trf.xlu0
        %v1270 = vpop.trf.xlu0
        %v1271 = vpop.trf.xlu0
        %v1272 = vpop.trf.xlu0
        %v1273 = vpop.trf.xlu0
        %v1274 = vpop.trf.xlu0
        %v1275 = vpop.trf.xlu0
        %v1276 = vpop.trf.xlu0
        %1277 = vxpose.xlu0.b32.start [1/16] %v1118, 128
        %1278 = vxpose.xlu0.b32.cont [2/16] %v1120, 128
        %1279 = vxpose.xlu0.b32.cont [3/16] %v1122, 128
        %1280 = vxpose.xlu0.b32.cont [4/16] %v1124, 128
        %1281 = vxpose.xlu0.b32.cont [5/16] %v1126, 128
        %1282 = vxpose.xlu0.b32.cont [6/16] %v1128, 128
        %1283 = vxpose.xlu0.b32.cont [7/16] %v1130, 128
        %1284 = vxpose.xlu0.b32.cont [8/16] %v1132, 128
        %1285 = vxpose.xlu0.b32.cont [9/16] %v1134, 128
        %1286 = vxpose.xlu0.b32.cont [10/16] %v1136, 128
        %1287 = vxpose.xlu0.b32.cont [11/16] %v1138, 128
        %1288 = vxpose.xlu0.b32.cont [12/16] %v1140, 128
        %1289 = vxpose.xlu0.b32.cont [13/16] %v1142, 128
        %1290 = vxpose.xlu0.b32.cont [14/16] %v1144, 128
        %1291 = vxpose.xlu0.b32.cont [15/16] %v1146, 128
        %1292 = vxpose.xlu0.b32.end [16/16] %v1148, 128
        %v1293 = vpop.trf.xlu0
        %v1294 = vpop.trf.xlu0
        %v1295 = vpop.trf.xlu0
        %v1296 = vpop.trf.xlu0
        %v1297 = vpop.trf.xlu0
        %v1298 = vpop.trf.xlu0
        %v1299 = vpop.trf.xlu0
        %v1300 = vpop.trf.xlu0
        %v1301 = vpop.trf.xlu0
        %v1302 = vpop.trf.xlu0
        %v1303 = vpop.trf.xlu0
        %v1304 = vpop.trf.xlu0
        %v1305 = vpop.trf.xlu0
        %v1306 = vpop.trf.xlu0
        %v1307 = vpop.trf.xlu0
        %v1308 = vpop.trf.xlu0
        %v1309 = vpack.c.bf16 %v1198, %v1197
        %v1310 = vpack.c.bf16 %v1262, %v1261
        %v1311 = vpack.c.bf16 %v1200, %v1199
        %v1312 = vpack.c.bf16 %v1264, %v1263
        %v1313 = vpack.c.bf16 %v1202, %v1201
        %v1314 = vpack.c.bf16 %v1266, %v1265
        %v1315 = vpack.c.bf16 %v1204, %v1203
        %v1316 = vpack.c.bf16 %v1268, %v1267
        %v1317 = vpack.c.bf16 %v1206, %v1205
        %v1318 = vpack.c.bf16 %v1270, %v1269
        %v1319 = vpack.c.bf16 %v1208, %v1207
        %v1320 = vpack.c.bf16 %v1272, %v1271
        %v1321 = vpack.c.bf16 %v1210, %v1209
        %v1322 = vpack.c.bf16 %v1274, %v1273
        %v1323 = vpack.c.bf16 %v1212, %v1211
        %v1324 = vpack.c.bf16 %v1276, %v1275
        %v1325 = vpack.c.bf16 %v1230, %v1229
        %v1326 = vpack.c.bf16 %v1294, %v1293
        %v1327 = vpack.c.bf16 %v1232, %v1231
        %v1328 = vpack.c.bf16 %v1296, %v1295
        %v1329 = vpack.c.bf16 %v1234, %v1233
        %v1330 = vpack.c.bf16 %v1298, %v1297
        %v1331 = vpack.c.bf16 %v1236, %v1235
        %v1332 = vpack.c.bf16 %v1300, %v1299
        %v1333 = vpack.c.bf16 %v1238, %v1237
        %v1334 = vpack.c.bf16 %v1302, %v1301
        %v1335 = vpack.c.bf16 %v1240, %v1239
        %v1336 = vpack.c.bf16 %v1304, %v1303
        %v1337 = vpack.c.bf16 %v1242, %v1241
        %v1338 = vpack.c.bf16 %v1306, %v1305
        %v1339 = vpack.c.bf16 %v1244, %v1243
        %v1340 = vpack.c.bf16 %v1308, %v1307
        %1357 = vrot.lane.b32.xlu0 %v650, 80
        %v1358 = vpop.permute.xlu0 %1357
        %1359 = vrot.lane.b32.xlu0 %v651, 80
        %v1360 = vpop.permute.xlu0 %1359
        %1361 = vrot.lane.b32.xlu0 %v652, 80
        %v1362 = vpop.permute.xlu0 %1361
        %1363 = vrot.lane.b32.xlu0 %v653, 80
        %v1364 = vpop.permute.xlu0 %1363
        %1365 = vrot.lane.b32.xlu0 %v654, 80
        %v1366 = vpop.permute.xlu0 %1365
        %1367 = vrot.lane.b32.xlu0 %v655, 80
        %v1368 = vpop.permute.xlu0 %1367
        %1369 = vrot.lane.b32.xlu0 %v656, 80
        %v1370 = vpop.permute.xlu0 %1369
        %1371 = vrot.lane.b32.xlu0 %v657, 80
        %v1372 = vpop.permute.xlu0 %1371
        %1373 = vrot.lane.b32.xlu0 %v658, 80
        %v1374 = vpop.permute.xlu0 %1373
        %1375 = vrot.lane.b32.xlu0 %v659, 80
        %v1376 = vpop.permute.xlu0 %1375
        %1377 = vrot.lane.b32.xlu0 %v660, 80
        %v1378 = vpop.permute.xlu0 %1377
        %1379 = vrot.lane.b32.xlu0 %v661, 80
        %v1380 = vpop.permute.xlu0 %1379
        %1381 = vrot.lane.b32.xlu0 %v662, 80
        %v1382 = vpop.permute.xlu0 %1381
        %1383 = vrot.lane.b32.xlu0 %v663, 80
        %v1384 = vpop.permute.xlu0 %1383
        %1385 = vrot.lane.b32.xlu0 %v664, 80
        %v1386 = vpop.permute.xlu0 %1385
        %1387 = vrot.lane.b32.xlu0 %v665, 80
        %v1388 = vpop.permute.xlu0 %1387
        %1405 = vmatpush.bf16.msra.mxu0 %v1372
        %1406 = vmatpush.bf16.msra.mxu0 %v1370
        %1407 = vmatpush.bf16.msra.mxu0 %v1368
        %1408 = vmatpush.bf16.msra.mxu0 %v1366
        %1409 = vmatpush.bf16.msra.mxu0 %v1364
        %1410 = vmatpush.bf16.msra.mxu0 %v1362
        %1411 = vmatpush.bf16.msra.mxu0 %v1360
        %1412 = vmatpush.bf16.msra.mxu0 %v1358
        %1413 = vmatmul.bf16.gmra.mxu0 %v1149
        %v1414 = vpop.f32.mrf.mxu0
        %v1415 = vadd.f32 0.0, %v1414
        %v1416 = vpop.f32.mrf.mxu0
        %v1417 = vadd.f32 0.0, %v1416
        %1418 = vmatmul.bf16.gmra.mxu0 %v1151
        %v1419 = vpop.f32.mrf.mxu0
        %v1420 = vadd.f32 0.0, %v1419
        %v1421 = vpop.f32.mrf.mxu0
        %v1422 = vadd.f32 0.0, %v1421
        %1423 = vmatmul.bf16.gmra.mxu0 %v1153
        %v1424 = vpop.f32.mrf.mxu0
        %v1425 = vadd.f32 0.0, %v1424
        %v1426 = vpop.f32.mrf.mxu0
        %v1427 = vadd.f32 0.0, %v1426
        %1428 = vmatmul.bf16.gmra.mxu0 %v1155
        %v1429 = vpop.f32.mrf.mxu0
        %v1430 = vadd.f32 0.0, %v1429
        %v1431 = vpop.f32.mrf.mxu0
        %v1432 = vadd.f32 0.0, %v1431
        %1433 = vmatmul.bf16.gmra.mxu0 %v1157
        %v1434 = vpop.f32.mrf.mxu0
        %v1435 = vadd.f32 0.0, %v1434
        %v1436 = vpop.f32.mrf.mxu0
        %v1437 = vadd.f32 0.0, %v1436
        %1438 = vmatmul.bf16.gmra.mxu0 %v1159
        %v1439 = vpop.f32.mrf.mxu0
        %v1440 = vadd.f32 0.0, %v1439
        %v1441 = vpop.f32.mrf.mxu0
        %v1442 = vadd.f32 0.0, %v1441
        %1443 = vmatmul.bf16.gmra.mxu0 %v1161
        %v1444 = vpop.f32.mrf.mxu0
        %v1445 = vadd.f32 0.0, %v1444
        %v1446 = vpop.f32.mrf.mxu0
        %v1447 = vadd.f32 0.0, %v1446
        %1448 = vmatmul.bf16.gmra.mxu0 %v1163
        %v1449 = vpop.f32.mrf.mxu0
        %v1450 = vadd.f32 0.0, %v1449
        %v1451 = vpop.f32.mrf.mxu0
        %v1452 = vadd.f32 0.0, %v1451
        %1453 = vmatmul.bf16.gmra.mxu0 %v1165
        %v1454 = vpop.f32.mrf.mxu0
        %v1455 = vadd.f32 0.0, %v1454
        %v1456 = vpop.f32.mrf.mxu0
        %v1457 = vadd.f32 0.0, %v1456
        %1458 = vmatmul.bf16.gmra.mxu0 %v1167
        %v1459 = vpop.f32.mrf.mxu0
        %v1460 = vadd.f32 0.0, %v1459
        %v1461 = vpop.f32.mrf.mxu0
        %v1462 = vadd.f32 0.0, %v1461
        %1463 = vmatmul.bf16.gmra.mxu0 %v1169
        %v1464 = vpop.f32.mrf.mxu0
        %v1465 = vadd.f32 0.0, %v1464
        %v1466 = vpop.f32.mrf.mxu0
        %v1467 = vadd.f32 0.0, %v1466
        %1468 = vmatmul.bf16.gmra.mxu0 %v1171
        %v1469 = vpop.f32.mrf.mxu0
        %v1470 = vadd.f32 0.0, %v1469
        %v1471 = vpop.f32.mrf.mxu0
        %v1472 = vadd.f32 0.0, %v1471
        %1473 = vmatmul.bf16.gmra.mxu0 %v1173
        %v1474 = vpop.f32.mrf.mxu0
        %v1475 = vadd.f32 0.0, %v1474
        %v1476 = vpop.f32.mrf.mxu0
        %v1477 = vadd.f32 0.0, %v1476
        %1478 = vmatmul.bf16.gmra.mxu0 %v1175
        %v1479 = vpop.f32.mrf.mxu0
        %v1480 = vadd.f32 0.0, %v1479
        %v1481 = vpop.f32.mrf.mxu0
        %v1482 = vadd.f32 0.0, %v1481
        %1483 = vmatmul.bf16.gmra.mxu0 %v1177
        %v1484 = vpop.f32.mrf.mxu0
        %v1485 = vadd.f32 0.0, %v1484
        %v1486 = vpop.f32.mrf.mxu0
        %v1487 = vadd.f32 0.0, %v1486
        %1488 = vmatmul.bf16.gmra.mxu0 %v1179
        %v1489 = vpop.f32.mrf.mxu0
        %v1490 = vadd.f32 0.0, %v1489
        %v1491 = vpop.f32.mrf.mxu0
        %v1492 = vadd.f32 0.0, %v1491
        %1493 = vdwg.mxu0
        %1494 = vmatpush.bf16.msra.mxu0 %v1388
        %1495 = vmatpush.bf16.msra.mxu0 %v1386
        %1496 = vmatpush.bf16.msra.mxu0 %v1384
        %1497 = vmatpush.bf16.msra.mxu0 %v1382
        %1498 = vmatpush.bf16.msra.mxu0 %v1380
        %1499 = vmatpush.bf16.msra.mxu0 %v1378
        %1500 = vmatpush.bf16.msra.mxu0 %v1376
        %1501 = vmatpush.bf16.msra.mxu0 %v1374
        %1502 = vmatmul.bf16.gmra.mxu0 %v1150
        %v1503 = vpop.f32.mrf.mxu0
        %v1504 = vadd.f32 %v1415, %v1503
        %v1505 = vpop.f32.mrf.mxu0
        %v1506 = vadd.f32 %v1417, %v1505
        %1507 = vmatmul.bf16.gmra.mxu0 %v1152
        %v1508 = vpop.f32.mrf.mxu0
        %v1509 = vadd.f32 %v1420, %v1508
        %v1510 = vpop.f32.mrf.mxu0
        %v1511 = vadd.f32 %v1422, %v1510
        %1512 = vmatmul.bf16.gmra.mxu0 %v1154
        %v1513 = vpop.f32.mrf.mxu0
        %v1514 = vadd.f32 %v1425, %v1513
        %v1515 = vpop.f32.mrf.mxu0
        %v1516 = vadd.f32 %v1427, %v1515
        %1517 = vmatmul.bf16.gmra.mxu0 %v1156
        %v1518 = vpop.f32.mrf.mxu0
        %v1519 = vadd.f32 %v1430, %v1518
        %v1520 = vpop.f32.mrf.mxu0
        %v1521 = vadd.f32 %v1432, %v1520
        %1522 = vmatmul.bf16.gmra.mxu0 %v1158
        %v1523 = vpop.f32.mrf.mxu0
        %v1524 = vadd.f32 %v1435, %v1523
        %v1525 = vpop.f32.mrf.mxu0
        %v1526 = vadd.f32 %v1437, %v1525
        %1527 = vmatmul.bf16.gmra.mxu0 %v1160
        %v1528 = vpop.f32.mrf.mxu0
        %v1529 = vadd.f32 %v1440, %v1528
        %v1530 = vpop.f32.mrf.mxu0
        %v1531 = vadd.f32 %v1442, %v1530
        %1532 = vmatmul.bf16.gmra.mxu0 %v1162
        %v1533 = vpop.f32.mrf.mxu0
        %v1534 = vadd.f32 %v1445, %v1533
        %v1535 = vpop.f32.mrf.mxu0
        %v1536 = vadd.f32 %v1447, %v1535
        %1537 = vmatmul.bf16.gmra.mxu0 %v1164
        %v1538 = vpop.f32.mrf.mxu0
        %v1539 = vadd.f32 %v1450, %v1538
        %v1540 = vpop.f32.mrf.mxu0
        %v1541 = vadd.f32 %v1452, %v1540
        %1542 = vmatmul.bf16.gmra.mxu0 %v1166
        %v1543 = vpop.f32.mrf.mxu0
        %v1544 = vadd.f32 %v1455, %v1543
        %v1545 = vpop.f32.mrf.mxu0
        %v1546 = vadd.f32 %v1457, %v1545
        %1547 = vmatmul.bf16.gmra.mxu0 %v1168
        %v1548 = vpop.f32.mrf.mxu0
        %v1549 = vadd.f32 %v1460, %v1548
        %v1550 = vpop.f32.mrf.mxu0
        %v1551 = vadd.f32 %v1462, %v1550
        %1552 = vmatmul.bf16.gmra.mxu0 %v1170
        %v1553 = vpop.f32.mrf.mxu0
        %v1554 = vadd.f32 %v1465, %v1553
        %v1555 = vpop.f32.mrf.mxu0
        %v1556 = vadd.f32 %v1467, %v1555
        %1557 = vmatmul.bf16.gmra.mxu0 %v1172
        %v1558 = vpop.f32.mrf.mxu0
        %v1559 = vadd.f32 %v1470, %v1558
        %v1560 = vpop.f32.mrf.mxu0
        %v1561 = vadd.f32 %v1472, %v1560
        %1562 = vmatmul.bf16.gmra.mxu0 %v1174
        %v1563 = vpop.f32.mrf.mxu0
        %v1564 = vadd.f32 %v1475, %v1563
        %v1565 = vpop.f32.mrf.mxu0
        %v1566 = vadd.f32 %v1477, %v1565
        %1567 = vmatmul.bf16.gmra.mxu0 %v1176
        %v1568 = vpop.f32.mrf.mxu0
        %v1569 = vadd.f32 %v1480, %v1568
        %v1570 = vpop.f32.mrf.mxu0
        %v1571 = vadd.f32 %v1482, %v1570
        %1572 = vmatmul.bf16.gmra.mxu0 %v1178
        %v1573 = vpop.f32.mrf.mxu0
        %v1574 = vadd.f32 %v1485, %v1573
        %v1575 = vpop.f32.mrf.mxu0
        %v1576 = vadd.f32 %v1487, %v1575
        %1577 = vmatmul.bf16.gmra.mxu0 %v1180
        %v1578 = vpop.f32.mrf.mxu0
        %v1579 = vadd.f32 %v1490, %v1578
        %v1580 = vpop.f32.mrf.mxu0
        %v1581 = vadd.f32 %v1492, %v1580
        %1582 = vdwg.mxu0
        %1615 = vrot.lane.b32.xlu0 %v1504, 32
        %v1616 = vpop.permute.xlu0 %1615
        %1617 = vrot.lane.b32.xlu0 %v1506, 32
        %v1618 = vpop.permute.xlu0 %1617
        %1619 = vrot.lane.b32.xlu0 %v1509, 32
        %v1620 = vpop.permute.xlu0 %1619
        %1621 = vrot.lane.b32.xlu0 %v1511, 32
        %v1622 = vpop.permute.xlu0 %1621
        %1623 = vrot.lane.b32.xlu0 %v1514, 32
        %v1624 = vpop.permute.xlu0 %1623
        %1625 = vrot.lane.b32.xlu0 %v1516, 32
        %v1626 = vpop.permute.xlu0 %1625
        %1627 = vrot.lane.b32.xlu0 %v1519, 32
        %v1628 = vpop.permute.xlu0 %1627
        %1629 = vrot.lane.b32.xlu0 %v1521, 32
        %v1630 = vpop.permute.xlu0 %1629
        %1631 = vrot.lane.b32.xlu0 %v1524, 32
        %v1632 = vpop.permute.xlu0 %1631
        %1633 = vrot.lane.b32.xlu0 %v1526, 32
        %v1634 = vpop.permute.xlu0 %1633
        %1635 = vrot.lane.b32.xlu0 %v1529, 32
        %v1636 = vpop.permute.xlu0 %1635
        %1637 = vrot.lane.b32.xlu0 %v1531, 32
        %v1638 = vpop.permute.xlu0 %1637
        %1639 = vrot.lane.b32.xlu0 %v1534, 32
        %v1640 = vpop.permute.xlu0 %1639
        %1641 = vrot.lane.b32.xlu0 %v1536, 32
        %v1642 = vpop.permute.xlu0 %1641
        %1643 = vrot.lane.b32.xlu0 %v1539, 32
        %v1644 = vpop.permute.xlu0 %1643
        %1645 = vrot.lane.b32.xlu0 %v1541, 32
        %v1646 = vpop.permute.xlu0 %1645
        %1647 = vrot.lane.b32.xlu0 %v1544, 32
        %v1648 = vpop.permute.xlu0 %1647
        %1649 = vrot.lane.b32.xlu0 %v1546, 32
        %v1650 = vpop.permute.xlu0 %1649
        %1651 = vrot.lane.b32.xlu0 %v1549, 32
        %v1652 = vpop.permute.xlu0 %1651
        %1653 = vrot.lane.b32.xlu0 %v1551, 32
        %v1654 = vpop.permute.xlu0 %1653
        %1655 = vrot.lane.b32.xlu0 %v1554, 32
        %v1656 = vpop.permute.xlu0 %1655
        %1657 = vrot.lane.b32.xlu0 %v1556, 32
        %v1658 = vpop.permute.xlu0 %1657
        %1659 = vrot.lane.b32.xlu0 %v1559, 32
        %v1660 = vpop.permute.xlu0 %1659
        %1661 = vrot.lane.b32.xlu0 %v1561, 32
        %v1662 = vpop.permute.xlu0 %1661
        %1663 = vrot.lane.b32.xlu0 %v1564, 32
        %v1664 = vpop.permute.xlu0 %1663
        %1665 = vrot.lane.b32.xlu0 %v1566, 32
        %v1666 = vpop.permute.xlu0 %1665
        %1667 = vrot.lane.b32.xlu0 %v1569, 32
        %v1668 = vpop.permute.xlu0 %1667
        %1669 = vrot.lane.b32.xlu0 %v1571, 32
        %v1670 = vpop.permute.xlu0 %1669
        %1671 = vrot.lane.b32.xlu0 %v1574, 32
        %v1672 = vpop.permute.xlu0 %1671
        %1673 = vrot.lane.b32.xlu0 %v1576, 32
        %v1674 = vpop.permute.xlu0 %1673
        %1675 = vrot.lane.b32.xlu0 %v1579, 32
        %v1676 = vpop.permute.xlu0 %1675
        %1677 = vrot.lane.b32.xlu0 %v1581, 32
        %v1678 = vpop.permute.xlu0 %1677
        %v1711 = vadd.f32 %v571, %v1616
        %v1712 = vadd.f32 %v573, %v1618
        %v1713 = vadd.f32 %v576, %v1620
        %v1714 = vadd.f32 %v578, %v1622
        %v1715 = vadd.f32 %v581, %v1624
        %v1716 = vadd.f32 %v583, %v1626
        %v1717 = vadd.f32 %v586, %v1628
        %v1718 = vadd.f32 %v588, %v1630
        %v1719 = vadd.f32 %v591, %v1632
        %v1720 = vadd.f32 %v593, %v1634
        %v1721 = vadd.f32 %v596, %v1636
        %v1722 = vadd.f32 %v598, %v1638
        %v1723 = vadd.f32 %v601, %v1640
        %v1724 = vadd.f32 %v603, %v1642
        %v1725 = vadd.f32 %v606, %v1644
        %v1726 = vadd.f32 %v608, %v1646
        %v1727 = vadd.f32 %v611, %v1648
        %v1728 = vadd.f32 %v613, %v1650
        %v1729 = vadd.f32 %v616, %v1652
        %v1730 = vadd.f32 %v618, %v1654
        %v1731 = vadd.f32 %v621, %v1656
        %v1732 = vadd.f32 %v623, %v1658
        %v1733 = vadd.f32 %v626, %v1660
        %v1734 = vadd.f32 %v628, %v1662
        %v1735 = vadd.f32 %v631, %v1664
        %v1736 = vadd.f32 %v633, %v1666
        %v1737 = vadd.f32 %v636, %v1668
        %v1738 = vadd.f32 %v638, %v1670
        %v1739 = vadd.f32 %v641, %v1672
        %v1740 = vadd.f32 %v643, %v1674
        %v1741 = vadd.f32 %v646, %v1676
        %v1742 = vadd.f32 %v648, %v1678
        %v1743 = vmax.f32 %v1711, 0.0
        %v1744 = vmax.f32 %v1712, 0.0
        %v1745 = vmax.f32 %v1713, 0.0
        %v1746 = vmax.f32 %v1714, 0.0
        %v1747 = vmax.f32 %v1715, 0.0
        %v1748 = vmax.f32 %v1716, 0.0
        %v1749 = vmax.f32 %v1717, 0.0
        %v1750 = vmax.f32 %v1718, 0.0
        %v1751 = vmax.f32 %v1719, 0.0
        %v1752 = vmax.f32 %v1720, 0.0
        %v1753 = vmax.f32 %v1721, 0.0
        %v1754 = vmax.f32 %v1722, 0.0
        %v1755 = vmax.f32 %v1723, 0.0
        %v1756 = vmax.f32 %v1724, 0.0
        %v1757 = vmax.f32 %v1725, 0.0
        %v1758 = vmax.f32 %v1726, 0.0
        %v1759 = vmax.f32 %v1727, 0.0
        %v1760 = vmax.f32 %v1728, 0.0
        %v1761 = vmax.f32 %v1729, 0.0
        %v1762 = vmax.f32 %v1730, 0.0
        %v1763 = vmax.f32 %v1731, 0.0
        %v1764 = vmax.f32 %v1732, 0.0
        %v1765 = vmax.f32 %v1733, 0.0
        %v1766 = vmax.f32 %v1734, 0.0
        %v1767 = vmax.f32 %v1735, 0.0
        %v1768 = vmax.f32 %v1736, 0.0
        %v1769 = vmax.f32 %v1737, 0.0
        %v1770 = vmax.f32 %v1738, 0.0
        %v1771 = vmax.f32 %v1739, 0.0
        %v1772 = vmax.f32 %v1740, 0.0
        %v1773 = vmax.f32 %v1741, 0.0
        %v1774 = vmax.f32 %v1742, 0.0
        %1775 = vrot.lane.b32.xlu0 %v650, 96
        %v1776 = vpop.permute.xlu0 %1775
        %1777 = vrot.lane.b32.xlu0 %v651, 96
        %v1778 = vpop.permute.xlu0 %1777
        %1779 = vrot.lane.b32.xlu0 %v652, 96
        %v1780 = vpop.permute.xlu0 %1779
        %1781 = vrot.lane.b32.xlu0 %v653, 96
        %v1782 = vpop.permute.xlu0 %1781
        %1783 = vrot.lane.b32.xlu0 %v654, 96
        %v1784 = vpop.permute.xlu0 %1783
        %1785 = vrot.lane.b32.xlu0 %v655, 96
        %v1786 = vpop.permute.xlu0 %1785
        %1787 = vrot.lane.b32.xlu0 %v656, 96
        %v1788 = vpop.permute.xlu0 %1787
        %1789 = vrot.lane.b32.xlu0 %v657, 96
        %v1790 = vpop.permute.xlu0 %1789
        %1791 = vrot.lane.b32.xlu0 %v658, 96
        %v1792 = vpop.permute.xlu0 %1791
        %1793 = vrot.lane.b32.xlu0 %v659, 96
        %v1794 = vpop.permute.xlu0 %1793
        %1795 = vrot.lane.b32.xlu0 %v660, 96
        %v1796 = vpop.permute.xlu0 %1795
        %1797 = vrot.lane.b32.xlu0 %v661, 96
        %v1798 = vpop.permute.xlu0 %1797
        %1799 = vrot.lane.b32.xlu0 %v662, 96
        %v1800 = vpop.permute.xlu0 %1799
        %1801 = vrot.lane.b32.xlu0 %v663, 96
        %v1802 = vpop.permute.xlu0 %1801
        %1803 = vrot.lane.b32.xlu0 %v664, 96
        %v1804 = vpop.permute.xlu0 %1803
        %1805 = vrot.lane.b32.xlu0 %v665, 96
        %v1806 = vpop.permute.xlu0 %1805
        %1823 = vmatpush.bf16.msra.mxu0 %v1790
        %1824 = vmatpush.bf16.msra.mxu0 %v1788
        %1825 = vmatpush.bf16.msra.mxu0 %v1786
        %1826 = vmatpush.bf16.msra.mxu0 %v1784
        %1827 = vmatpush.bf16.msra.mxu0 %v1782
        %1828 = vmatpush.bf16.msra.mxu0 %v1780
        %1829 = vmatpush.bf16.msra.mxu0 %v1778
        %1830 = vmatpush.bf16.msra.mxu0 %v1776
        %1831 = vmatmul.bf16.gmra.mxu0 %v1309
        %v1832 = vpop.f32.mrf.mxu0
        %v1833 = vadd.f32 0.0, %v1832
        %v1834 = vpop.f32.mrf.mxu0
        %v1835 = vadd.f32 0.0, %v1834
        %1836 = vmatmul.bf16.gmra.mxu0 %v1311
        %v1837 = vpop.f32.mrf.mxu0
        %v1838 = vadd.f32 0.0, %v1837
        %v1839 = vpop.f32.mrf.mxu0
        %v1840 = vadd.f32 0.0, %v1839
        %1841 = vmatmul.bf16.gmra.mxu0 %v1313
        %v1842 = vpop.f32.mrf.mxu0
        %v1843 = vadd.f32 0.0, %v1842
        %v1844 = vpop.f32.mrf.mxu0
        %v1845 = vadd.f32 0.0, %v1844
        %1846 = vmatmul.bf16.gmra.mxu0 %v1315
        %v1847 = vpop.f32.mrf.mxu0
        %v1848 = vadd.f32 0.0, %v1847
        %v1849 = vpop.f32.mrf.mxu0
        %v1850 = vadd.f32 0.0, %v1849
        %1851 = vmatmul.bf16.gmra.mxu0 %v1317
        %v1852 = vpop.f32.mrf.mxu0
        %v1853 = vadd.f32 0.0, %v1852
        %v1854 = vpop.f32.mrf.mxu0
        %v1855 = vadd.f32 0.0, %v1854
        %1856 = vmatmul.bf16.gmra.mxu0 %v1319
        %v1857 = vpop.f32.mrf.mxu0
        %v1858 = vadd.f32 0.0, %v1857
        %v1859 = vpop.f32.mrf.mxu0
        %v1860 = vadd.f32 0.0, %v1859
        %1861 = vmatmul.bf16.gmra.mxu0 %v1321
        %v1862 = vpop.f32.mrf.mxu0
        %v1863 = vadd.f32 0.0, %v1862
        %v1864 = vpop.f32.mrf.mxu0
        %v1865 = vadd.f32 0.0, %v1864
        %1866 = vmatmul.bf16.gmra.mxu0 %v1323
        %v1867 = vpop.f32.mrf.mxu0
        %v1868 = vadd.f32 0.0, %v1867
        %v1869 = vpop.f32.mrf.mxu0
        %v1870 = vadd.f32 0.0, %v1869
        %1871 = vmatmul.bf16.gmra.mxu0 %v1325
        %v1872 = vpop.f32.mrf.mxu0
        %v1873 = vadd.f32 0.0, %v1872
        %v1874 = vpop.f32.mrf.mxu0
        %v1875 = vadd.f32 0.0, %v1874
        %1876 = vmatmul.bf16.gmra.mxu0 %v1327
        %v1877 = vpop.f32.mrf.mxu0
        %v1878 = vadd.f32 0.0, %v1877
        %v1879 = vpop.f32.mrf.mxu0
        %v1880 = vadd.f32 0.0, %v1879
        %1881 = vmatmul.bf16.gmra.mxu0 %v1329
        %v1882 = vpop.f32.mrf.mxu0
        %v1883 = vadd.f32 0.0, %v1882
        %v1884 = vpop.f32.mrf.mxu0
        %v1885 = vadd.f32 0.0, %v1884
        %1886 = vmatmul.bf16.gmra.mxu0 %v1331
        %v1887 = vpop.f32.mrf.mxu0
        %v1888 = vadd.f32 0.0, %v1887
        %v1889 = vpop.f32.mrf.mxu0
        %v1890 = vadd.f32 0.0, %v1889
        %1891 = vmatmul.bf16.gmra.mxu0 %v1333
        %v1892 = vpop.f32.mrf.mxu0
        %v1893 = vadd.f32 0.0, %v1892
        %v1894 = vpop.f32.mrf.mxu0
        %v1895 = vadd.f32 0.0, %v1894
        %1896 = vmatmul.bf16.gmra.mxu0 %v1335
        %v1897 = vpop.f32.mrf.mxu0
        %v1898 = vadd.f32 0.0, %v1897
        %v1899 = vpop.f32.mrf.mxu0
        %v1900 = vadd.f32 0.0, %v1899
        %1901 = vmatmul.bf16.gmra.mxu0 %v1337
        %v1902 = vpop.f32.mrf.mxu0
        %v1903 = vadd.f32 0.0, %v1902
        %v1904 = vpop.f32.mrf.mxu0
        %v1905 = vadd.f32 0.0, %v1904
        %1906 = vmatmul.bf16.gmra.mxu0 %v1339
        %v1907 = vpop.f32.mrf.mxu0
        %v1908 = vadd.f32 0.0, %v1907
        %v1909 = vpop.f32.mrf.mxu0
        %v1910 = vadd.f32 0.0, %v1909
        %1911 = vdwg.mxu0
        %1912 = vmatpush.bf16.msra.mxu0 %v1806
        %1913 = vmatpush.bf16.msra.mxu0 %v1804
        %1914 = vmatpush.bf16.msra.mxu0 %v1802
        %1915 = vmatpush.bf16.msra.mxu0 %v1800
        %1916 = vmatpush.bf16.msra.mxu0 %v1798
        %1917 = vmatpush.bf16.msra.mxu0 %v1796
        %1918 = vmatpush.bf16.msra.mxu0 %v1794
        %1919 = vmatpush.bf16.msra.mxu0 %v1792
        %1920 = vmatmul.bf16.gmra.mxu0 %v1310
        %v1921 = vpop.f32.mrf.mxu0
        %v1922 = vadd.f32 %v1833, %v1921
        %v1923 = vpop.f32.mrf.mxu0
        %v1924 = vadd.f32 %v1835, %v1923
        %1925 = vmatmul.bf16.gmra.mxu0 %v1312
        %v1926 = vpop.f32.mrf.mxu0
        %v1927 = vadd.f32 %v1838, %v1926
        %v1928 = vpop.f32.mrf.mxu0
        %v1929 = vadd.f32 %v1840, %v1928
        %1930 = vmatmul.bf16.gmra.mxu0 %v1314
        %v1931 = vpop.f32.mrf.mxu0
        %v1932 = vadd.f32 %v1843, %v1931
        %v1933 = vpop.f32.mrf.mxu0
        %v1934 = vadd.f32 %v1845, %v1933
        %1935 = vmatmul.bf16.gmra.mxu0 %v1316
        %v1936 = vpop.f32.mrf.mxu0
        %v1937 = vadd.f32 %v1848, %v1936
        %v1938 = vpop.f32.mrf.mxu0
        %v1939 = vadd.f32 %v1850, %v1938
        %1940 = vmatmul.bf16.gmra.mxu0 %v1318
        %v1941 = vpop.f32.mrf.mxu0
        %v1942 = vadd.f32 %v1853, %v1941
        %v1943 = vpop.f32.mrf.mxu0
        %v1944 = vadd.f32 %v1855, %v1943
        %1945 = vmatmul.bf16.gmra.mxu0 %v1320
        %v1946 = vpop.f32.mrf.mxu0
        %v1947 = vadd.f32 %v1858, %v1946
        %v1948 = vpop.f32.mrf.mxu0
        %v1949 = vadd.f32 %v1860, %v1948
        %1950 = vmatmul.bf16.gmra.mxu0 %v1322
        %v1951 = vpop.f32.mrf.mxu0
        %v1952 = vadd.f32 %v1863, %v1951
        %v1953 = vpop.f32.mrf.mxu0
        %v1954 = vadd.f32 %v1865, %v1953
        %1955 = vmatmul.bf16.gmra.mxu0 %v1324
        %v1956 = vpop.f32.mrf.mxu0
        %v1957 = vadd.f32 %v1868, %v1956
        %v1958 = vpop.f32.mrf.mxu0
        %v1959 = vadd.f32 %v1870, %v1958
        %1960 = vmatmul.bf16.gmra.mxu0 %v1326
        %v1961 = vpop.f32.mrf.mxu0
        %v1962 = vadd.f32 %v1873, %v1961
        %v1963 = vpop.f32.mrf.mxu0
        %v1964 = vadd.f32 %v1875, %v1963
        %1965 = vmatmul.bf16.gmra.mxu0 %v1328
        %v1966 = vpop.f32.mrf.mxu0
        %v1967 = vadd.f32 %v1878, %v1966
        %v1968 = vpop.f32.mrf.mxu0
        %v1969 = vadd.f32 %v1880, %v1968
        %1970 = vmatmul.bf16.gmra.mxu0 %v1330
        %v1971 = vpop.f32.mrf.mxu0
        %v1972 = vadd.f32 %v1883, %v1971
        %v1973 = vpop.f32.mrf.mxu0
        %v1974 = vadd.f32 %v1885, %v1973
        %1975 = vmatmul.bf16.gmra.mxu0 %v1332
        %v1976 = vpop.f32.mrf.mxu0
        %v1977 = vadd.f32 %v1888, %v1976
        %v1978 = vpop.f32.mrf.mxu0
        %v1979 = vadd.f32 %v1890, %v1978
        %1980 = vmatmul.bf16.gmra.mxu0 %v1334
        %v1981 = vpop.f32.mrf.mxu0
        %v1982 = vadd.f32 %v1893, %v1981
        %v1983 = vpop.f32.mrf.mxu0
        %v1984 = vadd.f32 %v1895, %v1983
        %1985 = vmatmul.bf16.gmra.mxu0 %v1336
        %v1986 = vpop.f32.mrf.mxu0
        %v1987 = vadd.f32 %v1898, %v1986
        %v1988 = vpop.f32.mrf.mxu0
        %v1989 = vadd.f32 %v1900, %v1988
        %1990 = vmatmul.bf16.gmra.mxu0 %v1338
        %v1991 = vpop.f32.mrf.mxu0
        %v1992 = vadd.f32 %v1903, %v1991
        %v1993 = vpop.f32.mrf.mxu0
        %v1994 = vadd.f32 %v1905, %v1993
        %1995 = vmatmul.bf16.gmra.mxu0 %v1340
        %v1996 = vpop.f32.mrf.mxu0
        %v1997 = vadd.f32 %v1908, %v1996
        %v1998 = vpop.f32.mrf.mxu0
        %v1999 = vadd.f32 %v1910, %v1998
        %2000 = vdwg.mxu0
        %2033 = vrot.lane.b32.xlu0 %v1922, 48
        %v2034 = vpop.permute.xlu0 %2033
        %2035 = vrot.lane.b32.xlu0 %v1924, 48
        %v2036 = vpop.permute.xlu0 %2035
        %2037 = vrot.lane.b32.xlu0 %v1927, 48
        %v2038 = vpop.permute.xlu0 %2037
        %2039 = vrot.lane.b32.xlu0 %v1929, 48
        %v2040 = vpop.permute.xlu0 %2039
        %2041 = vrot.lane.b32.xlu0 %v1932, 48
        %v2042 = vpop.permute.xlu0 %2041
        %2043 = vrot.lane.b32.xlu0 %v1934, 48
        %v2044 = vpop.permute.xlu0 %2043
        %2045 = vrot.lane.b32.xlu0 %v1937, 48
        %v2046 = vpop.permute.xlu0 %2045
        %2047 = vrot.lane.b32.xlu0 %v1939, 48
        %v2048 = vpop.permute.xlu0 %2047
        %2049 = vrot.lane.b32.xlu0 %v1942, 48
        %v2050 = vpop.permute.xlu0 %2049
        %2051 = vrot.lane.b32.xlu0 %v1944, 48
        %v2052 = vpop.permute.xlu0 %2051
        %2053 = vrot.lane.b32.xlu0 %v1947, 48
        %v2054 = vpop.permute.xlu0 %2053
        %2055 = vrot.lane.b32.xlu0 %v1949, 48
        %v2056 = vpop.permute.xlu0 %2055
        %2057 = vrot.lane.b32.xlu0 %v1952, 48
        %v2058 = vpop.permute.xlu0 %2057
        %2059 = vrot.lane.b32.xlu0 %v1954, 48
        %v2060 = vpop.permute.xlu0 %2059
        %2061 = vrot.lane.b32.xlu0 %v1957, 48
        %v2062 = vpop.permute.xlu0 %2061
        %2063 = vrot.lane.b32.xlu0 %v1959, 48
        %v2064 = vpop.permute.xlu0 %2063
        %2065 = vrot.lane.b32.xlu0 %v1962, 48
        %v2066 = vpop.permute.xlu0 %2065
        %2067 = vrot.lane.b32.xlu0 %v1964, 48
        %v2068 = vpop.permute.xlu0 %2067
        %2069 = vrot.lane.b32.xlu0 %v1967, 48
        %v2070 = vpop.permute.xlu0 %2069
        %2071 = vrot.lane.b32.xlu0 %v1969, 48
        %v2072 = vpop.permute.xlu0 %2071
        %2073 = vrot.lane.b32.xlu0 %v1972, 48
        %v2074 = vpop.permute.xlu0 %2073
        %2075 = vrot.lane.b32.xlu0 %v1974, 48
        %v2076 = vpop.permute.xlu0 %2075
        %2077 = vrot.lane.b32.xlu0 %v1977, 48
        %v2078 = vpop.permute.xlu0 %2077
        %2079 = vrot.lane.b32.xlu0 %v1979, 48
        %v2080 = vpop.permute.xlu0 %2079
        %2081 = vrot.lane.b32.xlu0 %v1982, 48
        %v2082 = vpop.permute.xlu0 %2081
        %2083 = vrot.lane.b32.xlu0 %v1984, 48
        %v2084 = vpop.permute.xlu0 %2083
        %2085 = vrot.lane.b32.xlu0 %v1987, 48
        %v2086 = vpop.permute.xlu0 %2085
        %2087 = vrot.lane.b32.xlu0 %v1989, 48
        %v2088 = vpop.permute.xlu0 %2087
        %2089 = vrot.lane.b32.xlu0 %v1992, 48
        %v2090 = vpop.permute.xlu0 %2089
        %2091 = vrot.lane.b32.xlu0 %v1994, 48
        %v2092 = vpop.permute.xlu0 %2091
        %2093 = vrot.lane.b32.xlu0 %v1997, 48
        %v2094 = vpop.permute.xlu0 %2093
        %2095 = vrot.lane.b32.xlu0 %v1999, 48
        %v2096 = vpop.permute.xlu0 %2095
        %v2129 = vadd.f32 %v571, %v2034
        %v2130 = vadd.f32 %v573, %v2036
        %v2131 = vadd.f32 %v576, %v2038
        %v2132 = vadd.f32 %v578, %v2040
        %v2133 = vadd.f32 %v581, %v2042
        %v2134 = vadd.f32 %v583, %v2044
        %v2135 = vadd.f32 %v586, %v2046
        %v2136 = vadd.f32 %v588, %v2048
        %v2137 = vadd.f32 %v591, %v2050
        %v2138 = vadd.f32 %v593, %v2052
        %v2139 = vadd.f32 %v596, %v2054
        %v2140 = vadd.f32 %v598, %v2056
        %v2141 = vadd.f32 %v601, %v2058
        %v2142 = vadd.f32 %v603, %v2060
        %v2143 = vadd.f32 %v606, %v2062
        %v2144 = vadd.f32 %v608, %v2064
        %v2145 = vadd.f32 %v611, %v2066
        %v2146 = vadd.f32 %v613, %v2068
        %v2147 = vadd.f32 %v616, %v2070
        %v2148 = vadd.f32 %v618, %v2072
        %v2149 = vadd.f32 %v621, %v2074
        %v2150 = vadd.f32 %v623, %v2076
        %v2151 = vadd.f32 %v626, %v2078
        %v2152 = vadd.f32 %v628, %v2080
        %v2153 = vadd.f32 %v631, %v2082
        %v2154 = vadd.f32 %v633, %v2084
        %v2155 = vadd.f32 %v636, %v2086
        %v2156 = vadd.f32 %v638, %v2088
        %v2157 = vadd.f32 %v641, %v2090
        %v2158 = vadd.f32 %v643, %v2092
        %v2159 = vadd.f32 %v646, %v2094
        %v2160 = vadd.f32 %v648, %v2096
        %v2161 = vmax.f32 %v2129, 0.0
        %v2162 = vmax.f32 %v2130, 0.0
        %v2163 = vmax.f32 %v2131, 0.0
        %v2164 = vmax.f32 %v2132, 0.0
        %v2165 = vmax.f32 %v2133, 0.0
        %v2166 = vmax.f32 %v2134, 0.0
        %v2167 = vmax.f32 %v2135, 0.0
        %v2168 = vmax.f32 %v2136, 0.0
        %v2169 = vmax.f32 %v2137, 0.0
        %v2170 = vmax.f32 %v2138, 0.0
        %v2171 = vmax.f32 %v2139, 0.0
        %v2172 = vmax.f32 %v2140, 0.0
        %v2173 = vmax.f32 %v2141, 0.0
        %v2174 = vmax.f32 %v2142, 0.0
        %v2175 = vmax.f32 %v2143, 0.0
        %v2176 = vmax.f32 %v2144, 0.0
        %v2177 = vmax.f32 %v2145, 0.0
        %v2178 = vmax.f32 %v2146, 0.0
        %v2179 = vmax.f32 %v2147, 0.0
        %v2180 = vmax.f32 %v2148, 0.0
        %v2181 = vmax.f32 %v2149, 0.0
        %v2182 = vmax.f32 %v2150, 0.0
        %v2183 = vmax.f32 %v2151, 0.0
        %v2184 = vmax.f32 %v2152, 0.0
        %v2185 = vmax.f32 %v2153, 0.0
        %v2186 = vmax.f32 %v2154, 0.0
        %v2187 = vmax.f32 %v2155, 0.0
        %v2188 = vmax.f32 %v2156, 0.0
        %v2189 = vmax.f32 %v2157, 0.0
        %v2190 = vmax.f32 %v2158, 0.0
        %v2191 = vmax.f32 %v2159, 0.0
        %v2192 = vmax.f32 %v2160, 0.0
        %v2193 = vld [vmem:[%s4] sm:$0x1]
        %v2194 = vld [vmem:[%s5] sm:$0x1]
        %v2196 = vperm.slane %v2193, 0
        %2197 = vrot.lane.b32.xlu0 %v2196, 32
        %v2198 = vpop.permute.xlu0 %2197
        %v2200 = vmul.f32 %v1743, %v2198
        %v2201 = vmul.f32 %v1744, %v2198
        %v2202 = vmul.f32 %v1745, %v2198
        %v2203 = vmul.f32 %v1746, %v2198
        %v2204 = vmul.f32 %v1747, %v2198
        %v2205 = vmul.f32 %v1748, %v2198
        %v2206 = vmul.f32 %v1749, %v2198
        %v2207 = vmul.f32 %v1750, %v2198
        %v2208 = vmul.f32 %v1751, %v2198
        %v2209 = vmul.f32 %v1752, %v2198
        %v2210 = vmul.f32 %v1753, %v2198
        %v2211 = vmul.f32 %v1754, %v2198
        %v2212 = vmul.f32 %v1755, %v2198
        %v2213 = vmul.f32 %v1756, %v2198
        %v2214 = vmul.f32 %v1757, %v2198
        %v2215 = vmul.f32 %v1758, %v2198
        %v2216 = vmul.f32 %v1759, %v2198
        %v2217 = vmul.f32 %v1760, %v2198
        %v2218 = vmul.f32 %v1761, %v2198
        %v2219 = vmul.f32 %v1762, %v2198
        %v2220 = vmul.f32 %v1763, %v2198
        %v2221 = vmul.f32 %v1764, %v2198
        %v2222 = vmul.f32 %v1765, %v2198
        %v2223 = vmul.f32 %v1766, %v2198
        %v2224 = vmul.f32 %v1767, %v2198
        %v2225 = vmul.f32 %v1768, %v2198
        %v2226 = vmul.f32 %v1769, %v2198
        %v2227 = vmul.f32 %v1770, %v2198
        %v2228 = vmul.f32 %v1771, %v2198
        %v2229 = vmul.f32 %v1772, %v2198
        %v2230 = vmul.f32 %v1773, %v2198
        %v2231 = vmul.f32 %v1774, %v2198
        %2264 = vrot.lane.b32.xlu0 %v2200, 96
        %v2265 = vpop.permute.xlu0 %2264
        %2266 = vrot.lane.b32.xlu0 %v2201, 96
        %v2267 = vpop.permute.xlu0 %2266
        %2268 = vrot.lane.b32.xlu0 %v2202, 96
        %v2269 = vpop.permute.xlu0 %2268
        %2270 = vrot.lane.b32.xlu0 %v2203, 96
        %v2271 = vpop.permute.xlu0 %2270
        %2272 = vrot.lane.b32.xlu0 %v2204, 96
        %v2273 = vpop.permute.xlu0 %2272
        %2274 = vrot.lane.b32.xlu0 %v2205, 96
        %v2275 = vpop.permute.xlu0 %2274
        %2276 = vrot.lane.b32.xlu0 %v2206, 96
        %v2277 = vpop.permute.xlu0 %2276
        %2278 = vrot.lane.b32.xlu0 %v2207, 96
        %v2279 = vpop.permute.xlu0 %2278
        %2280 = vrot.lane.b32.xlu0 %v2208, 96
        %v2281 = vpop.permute.xlu0 %2280
        %2282 = vrot.lane.b32.xlu0 %v2209, 96
        %v2283 = vpop.permute.xlu0 %2282
        %2284 = vrot.lane.b32.xlu0 %v2210, 96
        %v2285 = vpop.permute.xlu0 %2284
        %2286 = vrot.lane.b32.xlu0 %v2211, 96
        %v2287 = vpop.permute.xlu0 %2286
        %2288 = vrot.lane.b32.xlu0 %v2212, 96
        %v2289 = vpop.permute.xlu0 %2288
        %2290 = vrot.lane.b32.xlu0 %v2213, 96
        %v2291 = vpop.permute.xlu0 %2290
        %2292 = vrot.lane.b32.xlu0 %v2214, 96
        %v2293 = vpop.permute.xlu0 %2292
        %2294 = vrot.lane.b32.xlu0 %v2215, 96
        %v2295 = vpop.permute.xlu0 %2294
        %2296 = vrot.lane.b32.xlu0 %v2216, 96
        %v2297 = vpop.permute.xlu0 %2296
        %2298 = vrot.lane.b32.xlu0 %v2217, 96
        %v2299 = vpop.permute.xlu0 %2298
        %2300 = vrot.lane.b32.xlu0 %v2218, 96
        %v2301 = vpop.permute.xlu0 %2300
        %2302 = vrot.lane.b32.xlu0 %v2219, 96
        %v2303 = vpop.permute.xlu0 %2302
        %2304 = vrot.lane.b32.xlu0 %v2220, 96
        %v2305 = vpop.permute.xlu0 %2304
        %2306 = vrot.lane.b32.xlu0 %v2221, 96
        %v2307 = vpop.permute.xlu0 %2306
        %2308 = vrot.lane.b32.xlu0 %v2222, 96
        %v2309 = vpop.permute.xlu0 %2308
        %2310 = vrot.lane.b32.xlu0 %v2223, 96
        %v2311 = vpop.permute.xlu0 %2310
        %2312 = vrot.lane.b32.xlu0 %v2224, 96
        %v2313 = vpop.permute.xlu0 %2312
        %2314 = vrot.lane.b32.xlu0 %v2225, 96
        %v2315 = vpop.permute.xlu0 %2314
        %2316 = vrot.lane.b32.xlu0 %v2226, 96
        %v2317 = vpop.permute.xlu0 %2316
        %2318 = vrot.lane.b32.xlu0 %v2227, 96
        %v2319 = vpop.permute.xlu0 %2318
        %2320 = vrot.lane.b32.xlu0 %v2228, 96
        %v2321 = vpop.permute.xlu0 %2320
        %2322 = vrot.lane.b32.xlu0 %v2229, 96
        %v2323 = vpop.permute.xlu0 %2322
        %2324 = vrot.lane.b32.xlu0 %v2230, 96
        %v2325 = vpop.permute.xlu0 %2324
        %2326 = vrot.lane.b32.xlu0 %v2231, 96
        %v2327 = vpop.permute.xlu0 %2326
        %vm2360 = vcmask 130048
        %v2361 = vsel %vm2360, %v2265, 0.0
        %2362 = vadd.xlane.f32.xlu0 %v2361
        %v2363 = vpop.xlane.xlu0 %2362
        %v2364 = vsel %vm2360, %v2267, 0.0
        %2365 = vadd.xlane.f32.xlu0 %v2364
        %v2366 = vpop.xlane.xlu0 %2365
        %v2367 = vsel %vm2360, %v2269, 0.0
        %2368 = vadd.xlane.f32.xlu0 %v2367
        %v2369 = vpop.xlane.xlu0 %2368
        %v2370 = vsel %vm2360, %v2271, 0.0
        %2371 = vadd.xlane.f32.xlu0 %v2370
        %v2372 = vpop.xlane.xlu0 %2371
        %v2373 = vsel %vm2360, %v2273, 0.0
        %2374 = vadd.xlane.f32.xlu0 %v2373
        %v2375 = vpop.xlane.xlu0 %2374
        %v2376 = vsel %vm2360, %v2275, 0.0
        %2377 = vadd.xlane.f32.xlu0 %v2376
        %v2378 = vpop.xlane.xlu0 %2377
        %v2379 = vsel %vm2360, %v2277, 0.0
        %2380 = vadd.xlane.f32.xlu0 %v2379
        %v2381 = vpop.xlane.xlu0 %2380
        %v2382 = vsel %vm2360, %v2279, 0.0
        %2383 = vadd.xlane.f32.xlu0 %v2382
        %v2384 = vpop.xlane.xlu0 %2383
        %v2385 = vsel %vm2360, %v2281, 0.0
        %2386 = vadd.xlane.f32.xlu0 %v2385
        %v2387 = vpop.xlane.xlu0 %2386
        %v2388 = vsel %vm2360, %v2283, 0.0
        %2389 = vadd.xlane.f32.xlu0 %v2388
        %v2390 = vpop.xlane.xlu0 %2389
        %v2391 = vsel %vm2360, %v2285, 0.0
        %2392 = vadd.xlane.f32.xlu0 %v2391
        %v2393 = vpop.xlane.xlu0 %2392
        %v2394 = vsel %vm2360, %v2287, 0.0
        %2395 = vadd.xlane.f32.xlu0 %v2394
        %v2396 = vpop.xlane.xlu0 %2395
        %v2397 = vsel %vm2360, %v2289, 0.0
        %2398 = vadd.xlane.f32.xlu0 %v2397
        %v2399 = vpop.xlane.xlu0 %2398
        %v2400 = vsel %vm2360, %v2291, 0.0
        %2401 = vadd.xlane.f32.xlu0 %v2400
        %v2402 = vpop.xlane.xlu0 %2401
        %v2403 = vsel %vm2360, %v2293, 0.0
        %2404 = vadd.xlane.f32.xlu0 %v2403
        %v2405 = vpop.xlane.xlu0 %2404
        %v2406 = vsel %vm2360, %v2295, 0.0
        %2407 = vadd.xlane.f32.xlu0 %v2406
        %v2408 = vpop.xlane.xlu0 %2407
        %v2409 = vsel %vm2360, %v2297, 0.0
        %2410 = vadd.xlane.f32.xlu0 %v2409
        %v2411 = vpop.xlane.xlu0 %2410
        %v2412 = vsel %vm2360, %v2299, 0.0
        %2413 = vadd.xlane.f32.xlu0 %v2412
        %v2414 = vpop.xlane.xlu0 %2413
        %v2415 = vsel %vm2360, %v2301, 0.0
        %2416 = vadd.xlane.f32.xlu0 %v2415
        %v2417 = vpop.xlane.xlu0 %2416
        %v2418 = vsel %vm2360, %v2303, 0.0
        %2419 = vadd.xlane.f32.xlu0 %v2418
        %v2420 = vpop.xlane.xlu0 %2419
        %v2421 = vsel %vm2360, %v2305, 0.0
        %2422 = vadd.xlane.f32.xlu0 %v2421
        %v2423 = vpop.xlane.xlu0 %2422
        %v2424 = vsel %vm2360, %v2307, 0.0
        %2425 = vadd.xlane.f32.xlu0 %v2424
        %v2426 = vpop.xlane.xlu0 %2425
        %v2427 = vsel %vm2360, %v2309, 0.0
        %2428 = vadd.xlane.f32.xlu0 %v2427
        %v2429 = vpop.xlane.xlu0 %2428
        %v2430 = vsel %vm2360, %v2311, 0.0
        %2431 = vadd.xlane.f32.xlu0 %v2430
        %v2432 = vpop.xlane.xlu0 %2431
        %v2433 = vsel %vm2360, %v2313, 0.0
        %2434 = vadd.xlane.f32.xlu0 %v2433
        %v2435 = vpop.xlane.xlu0 %2434
        %v2436 = vsel %vm2360, %v2315, 0.0
        %2437 = vadd.xlane.f32.xlu0 %v2436
        %v2438 = vpop.xlane.xlu0 %2437
        %v2439 = vsel %vm2360, %v2317, 0.0
        %2440 = vadd.xlane.f32.xlu0 %v2439
        %v2441 = vpop.xlane.xlu0 %2440
        %v2442 = vsel %vm2360, %v2319, 0.0
        %2443 = vadd.xlane.f32.xlu0 %v2442
        %v2444 = vpop.xlane.xlu0 %2443
        %v2445 = vsel %vm2360, %v2321, 0.0
        %2446 = vadd.xlane.f32.xlu0 %v2445
        %v2447 = vpop.xlane.xlu0 %2446
        %v2448 = vsel %vm2360, %v2323, 0.0
        %2449 = vadd.xlane.f32.xlu0 %v2448
        %v2450 = vpop.xlane.xlu0 %2449
        %v2451 = vsel %vm2360, %v2325, 0.0
        %2452 = vadd.xlane.f32.xlu0 %v2451
        %v2453 = vpop.xlane.xlu0 %2452
        %v2454 = vsel %vm2360, %v2327, 0.0
        %2455 = vadd.xlane.f32.xlu0 %v2454
        %v2456 = vpop.xlane.xlu0 %2455
        %v2458 = vperm.slane %v2194, 0
        %2459 = vrot.lane.b32.xlu0 %v2458, 48
        %v2460 = vpop.permute.xlu0 %2459
        %v2462 = vmul.f32 %v2161, %v2460
        %v2463 = vmul.f32 %v2162, %v2460
        %v2464 = vmul.f32 %v2163, %v2460
        %v2465 = vmul.f32 %v2164, %v2460
        %v2466 = vmul.f32 %v2165, %v2460
        %v2467 = vmul.f32 %v2166, %v2460
        %v2468 = vmul.f32 %v2167, %v2460
        %v2469 = vmul.f32 %v2168, %v2460
        %v2470 = vmul.f32 %v2169, %v2460
        %v2471 = vmul.f32 %v2170, %v2460
        %v2472 = vmul.f32 %v2171, %v2460
        %v2473 = vmul.f32 %v2172, %v2460
        %v2474 = vmul.f32 %v2173, %v2460
        %v2475 = vmul.f32 %v2174, %v2460
        %v2476 = vmul.f32 %v2175, %v2460
        %v2477 = vmul.f32 %v2176, %v2460
        %v2478 = vmul.f32 %v2177, %v2460
        %v2479 = vmul.f32 %v2178, %v2460
        %v2480 = vmul.f32 %v2179, %v2460
        %v2481 = vmul.f32 %v2180, %v2460
        %v2482 = vmul.f32 %v2181, %v2460
        %v2483 = vmul.f32 %v2182, %v2460
        %v2484 = vmul.f32 %v2183, %v2460
        %v2485 = vmul.f32 %v2184, %v2460
        %v2486 = vmul.f32 %v2185, %v2460
        %v2487 = vmul.f32 %v2186, %v2460
        %v2488 = vmul.f32 %v2187, %v2460
        %v2489 = vmul.f32 %v2188, %v2460
        %v2490 = vmul.f32 %v2189, %v2460
        %v2491 = vmul.f32 %v2190, %v2460
        %v2492 = vmul.f32 %v2191, %v2460
        %v2493 = vmul.f32 %v2192, %v2460
        %2526 = vrot.lane.b32.xlu0 %v2462, 80
        %v2527 = vpop.permute.xlu0 %2526
        %2528 = vrot.lane.b32.xlu0 %v2463, 80
        %v2529 = vpop.permute.xlu0 %2528
        %2530 = vrot.lane.b32.xlu0 %v2464, 80
        %v2531 = vpop.permute.xlu0 %2530
        %2532 = vrot.lane.b32.xlu0 %v2465, 80
        %v2533 = vpop.permute.xlu0 %2532
        %2534 = vrot.lane.b32.xlu0 %v2466, 80
        %v2535 = vpop.permute.xlu0 %2534
        %2536 = vrot.lane.b32.xlu0 %v2467, 80
        %v2537 = vpop.permute.xlu0 %2536
        %2538 = vrot.lane.b32.xlu0 %v2468, 80
        %v2539 = vpop.permute.xlu0 %2538
        %2540 = vrot.lane.b32.xlu0 %v2469, 80
        %v2541 = vpop.permute.xlu0 %2540
        %2542 = vrot.lane.b32.xlu0 %v2470, 80
        %v2543 = vpop.permute.xlu0 %2542
        %2544 = vrot.lane.b32.xlu0 %v2471, 80
        %v2545 = vpop.permute.xlu0 %2544
        %2546 = vrot.lane.b32.xlu0 %v2472, 80
        %v2547 = vpop.permute.xlu0 %2546
        %2548 = vrot.lane.b32.xlu0 %v2473, 80
        %v2549 = vpop.permute.xlu0 %2548
        %2550 = vrot.lane.b32.xlu0 %v2474, 80
        %v2551 = vpop.permute.xlu0 %2550
        %2552 = vrot.lane.b32.xlu0 %v2475, 80
        %v2553 = vpop.permute.xlu0 %2552
        %2554 = vrot.lane.b32.xlu0 %v2476, 80
        %v2555 = vpop.permute.xlu0 %2554
        %2556 = vrot.lane.b32.xlu0 %v2477, 80
        %v2557 = vpop.permute.xlu0 %2556
        %2558 = vrot.lane.b32.xlu0 %v2478, 80
        %v2559 = vpop.permute.xlu0 %2558
        %2560 = vrot.lane.b32.xlu0 %v2479, 80
        %v2561 = vpop.permute.xlu0 %2560
        %2562 = vrot.lane.b32.xlu0 %v2480, 80
        %v2563 = vpop.permute.xlu0 %2562
        %2564 = vrot.lane.b32.xlu0 %v2481, 80
        %v2565 = vpop.permute.xlu0 %2564
        %2566 = vrot.lane.b32.xlu0 %v2482, 80
        %v2567 = vpop.permute.xlu0 %2566
        %2568 = vrot.lane.b32.xlu0 %v2483, 80
        %v2569 = vpop.permute.xlu0 %2568
        %2570 = vrot.lane.b32.xlu0 %v2484, 80
        %v2571 = vpop.permute.xlu0 %2570
        %2572 = vrot.lane.b32.xlu0 %v2485, 80
        %v2573 = vpop.permute.xlu0 %2572
        %2574 = vrot.lane.b32.xlu0 %v2486, 80
        %v2575 = vpop.permute.xlu0 %2574
        %2576 = vrot.lane.b32.xlu0 %v2487, 80
        %v2577 = vpop.permute.xlu0 %2576
        %2578 = vrot.lane.b32.xlu0 %v2488, 80
        %v2579 = vpop.permute.xlu0 %2578
        %2580 = vrot.lane.b32.xlu0 %v2489, 80
        %v2581 = vpop.permute.xlu0 %2580
        %2582 = vrot.lane.b32.xlu0 %v2490, 80
        %v2583 = vpop.permute.xlu0 %2582
        %2584 = vrot.lane.b32.xlu0 %v2491, 80
        %v2585 = vpop.permute.xlu0 %2584
        %2586 = vrot.lane.b32.xlu0 %v2492, 80
        %v2587 = vpop.permute.xlu0 %2586
        %2588 = vrot.lane.b32.xlu0 %v2493, 80
        %v2589 = vpop.permute.xlu0 %2588
        %v2622 = vsel %vm2360, %v2527, 0.0
        %2623 = vadd.xlane.f32.xlu0 %v2622
        %v2624 = vpop.xlane.xlu0 %2623
        %v2625 = vsel %vm2360, %v2529, 0.0
        %2626 = vadd.xlane.f32.xlu0 %v2625
        %v2627 = vpop.xlane.xlu0 %2626
        %v2628 = vsel %vm2360, %v2531, 0.0
        %2629 = vadd.xlane.f32.xlu0 %v2628
        %v2630 = vpop.xlane.xlu0 %2629
        %v2631 = vsel %vm2360, %v2533, 0.0
        %2632 = vadd.xlane.f32.xlu0 %v2631
        %v2633 = vpop.xlane.xlu0 %2632
        %v2634 = vsel %vm2360, %v2535, 0.0
        %2635 = vadd.xlane.f32.xlu0 %v2634
        %v2636 = vpop.xlane.xlu0 %2635
        %v2637 = vsel %vm2360, %v2537, 0.0
        %2638 = vadd.xlane.f32.xlu0 %v2637
        %v2639 = vpop.xlane.xlu0 %2638
        %v2640 = vsel %vm2360, %v2539, 0.0
        %2641 = vadd.xlane.f32.xlu0 %v2640
        %v2642 = vpop.xlane.xlu0 %2641
        %v2643 = vsel %vm2360, %v2541, 0.0
        %2644 = vadd.xlane.f32.xlu0 %v2643
        %v2645 = vpop.xlane.xlu0 %2644
        %v2646 = vsel %vm2360, %v2543, 0.0
        %2647 = vadd.xlane.f32.xlu0 %v2646
        %v2648 = vpop.xlane.xlu0 %2647
        %v2649 = vsel %vm2360, %v2545, 0.0
        %2650 = vadd.xlane.f32.xlu0 %v2649
        %v2651 = vpop.xlane.xlu0 %2650
        %v2652 = vsel %vm2360, %v2547, 0.0
        %2653 = vadd.xlane.f32.xlu0 %v2652
        %v2654 = vpop.xlane.xlu0 %2653
        %v2655 = vsel %vm2360, %v2549, 0.0
        %2656 = vadd.xlane.f32.xlu0 %v2655
        %v2657 = vpop.xlane.xlu0 %2656
        %v2658 = vsel %vm2360, %v2551, 0.0
        %2659 = vadd.xlane.f32.xlu0 %v2658
        %v2660 = vpop.xlane.xlu0 %2659
        %v2661 = vsel %vm2360, %v2553, 0.0
        %2662 = vadd.xlane.f32.xlu0 %v2661
        %v2663 = vpop.xlane.xlu0 %2662
        %v2664 = vsel %vm2360, %v2555, 0.0
        %2665 = vadd.xlane.f32.xlu0 %v2664
        %v2666 = vpop.xlane.xlu0 %2665
        %v2667 = vsel %vm2360, %v2557, 0.0
        %2668 = vadd.xlane.f32.xlu0 %v2667
        %v2669 = vpop.xlane.xlu0 %2668
        %v2670 = vsel %vm2360, %v2559, 0.0
        %2671 = vadd.xlane.f32.xlu0 %v2670
        %v2672 = vpop.xlane.xlu0 %2671
        %v2673 = vsel %vm2360, %v2561, 0.0
        %2674 = vadd.xlane.f32.xlu0 %v2673
        %v2675 = vpop.xlane.xlu0 %2674
        %v2676 = vsel %vm2360, %v2563, 0.0
        %2677 = vadd.xlane.f32.xlu0 %v2676
        %v2678 = vpop.xlane.xlu0 %2677
        %v2679 = vsel %vm2360, %v2565, 0.0
        %2680 = vadd.xlane.f32.xlu0 %v2679
        %v2681 = vpop.xlane.xlu0 %2680
        %v2682 = vsel %vm2360, %v2567, 0.0
        %2683 = vadd.xlane.f32.xlu0 %v2682
        %v2684 = vpop.xlane.xlu0 %2683
        %v2685 = vsel %vm2360, %v2569, 0.0
        %2686 = vadd.xlane.f32.xlu0 %v2685
        %v2687 = vpop.xlane.xlu0 %2686
        %v2688 = vsel %vm2360, %v2571, 0.0
        %2689 = vadd.xlane.f32.xlu0 %v2688
        %v2690 = vpop.xlane.xlu0 %2689
        %v2691 = vsel %vm2360, %v2573, 0.0
        %2692 = vadd.xlane.f32.xlu0 %v2691
        %v2693 = vpop.xlane.xlu0 %2692
        %v2694 = vsel %vm2360, %v2575, 0.0
        %2695 = vadd.xlane.f32.xlu0 %v2694
        %v2696 = vpop.xlane.xlu0 %2695
        %v2697 = vsel %vm2360, %v2577, 0.0
        %2698 = vadd.xlane.f32.xlu0 %v2697
        %v2699 = vpop.xlane.xlu0 %2698
        %v2700 = vsel %vm2360, %v2579, 0.0
        %2701 = vadd.xlane.f32.xlu0 %v2700
        %v2702 = vpop.xlane.xlu0 %2701
        %v2703 = vsel %vm2360, %v2581, 0.0
        %2704 = vadd.xlane.f32.xlu0 %v2703
        %v2705 = vpop.xlane.xlu0 %2704
        %v2706 = vsel %vm2360, %v2583, 0.0
        %2707 = vadd.xlane.f32.xlu0 %v2706
        %v2708 = vpop.xlane.xlu0 %2707
        %v2709 = vsel %vm2360, %v2585, 0.0
        %2710 = vadd.xlane.f32.xlu0 %v2709
        %v2711 = vpop.xlane.xlu0 %2710
        %v2712 = vsel %vm2360, %v2587, 0.0
        %2713 = vadd.xlane.f32.xlu0 %v2712
        %v2714 = vpop.xlane.xlu0 %2713
        %v2715 = vsel %vm2360, %v2589, 0.0
        %2716 = vadd.xlane.f32.xlu0 %v2715
        %v2717 = vpop.xlane.xlu0 %2716
        %2782 = vset.pattern.permute.xlu0 0
        %2783 = vperm.xlu0 %2782, %v2363
        %v2784 = vpop.permute.xlu0 %2783
        %2785 = vset.pattern.permute.xlu0 0
        %2786 = vperm.xlu0 %2785, %v2366
        %v2787 = vpop.permute.xlu0 %2786
        %2788 = vset.pattern.permute.xlu0 0
        %2789 = vperm.xlu0 %2788, %v2369
        %v2790 = vpop.permute.xlu0 %2789
        %2791 = vset.pattern.permute.xlu0 0
        %2792 = vperm.xlu0 %2791, %v2372
        %v2793 = vpop.permute.xlu0 %2792
        %2794 = vset.pattern.permute.xlu0 0
        %2795 = vperm.xlu0 %2794, %v2375
        %v2796 = vpop.permute.xlu0 %2795
        %2797 = vset.pattern.permute.xlu0 0
        %2798 = vperm.xlu0 %2797, %v2378
        %v2799 = vpop.permute.xlu0 %2798
        %2800 = vset.pattern.permute.xlu0 0
        %2801 = vperm.xlu0 %2800, %v2381
        %v2802 = vpop.permute.xlu0 %2801
        %2803 = vset.pattern.permute.xlu0 0
        %2804 = vperm.xlu0 %2803, %v2384
        %v2805 = vpop.permute.xlu0 %2804
        %2806 = vset.pattern.permute.xlu0 0
        %2807 = vperm.xlu0 %2806, %v2387
        %v2808 = vpop.permute.xlu0 %2807
        %2809 = vset.pattern.permute.xlu0 0
        %2810 = vperm.xlu0 %2809, %v2390
        %v2811 = vpop.permute.xlu0 %2810
        %2812 = vset.pattern.permute.xlu0 0
        %2813 = vperm.xlu0 %2812, %v2393
        %v2814 = vpop.permute.xlu0 %2813
        %2815 = vset.pattern.permute.xlu0 0
        %2816 = vperm.xlu0 %2815, %v2396
        %v2817 = vpop.permute.xlu0 %2816
        %2818 = vset.pattern.permute.xlu0 0
        %2819 = vperm.xlu0 %2818, %v2399
        %v2820 = vpop.permute.xlu0 %2819
        %2821 = vset.pattern.permute.xlu0 0
        %2822 = vperm.xlu0 %2821, %v2402
        %v2823 = vpop.permute.xlu0 %2822
        %2824 = vset.pattern.permute.xlu0 0
        %2825 = vperm.xlu0 %2824, %v2405
        %v2826 = vpop.permute.xlu0 %2825
        %2827 = vset.pattern.permute.xlu0 0
        %2828 = vperm.xlu0 %2827, %v2408
        %v2829 = vpop.permute.xlu0 %2828
        %2830 = vset.pattern.permute.xlu0 0
        %2831 = vperm.xlu0 %2830, %v2411
        %v2832 = vpop.permute.xlu0 %2831
        %2833 = vset.pattern.permute.xlu0 0
        %2834 = vperm.xlu0 %2833, %v2414
        %v2835 = vpop.permute.xlu0 %2834
        %2836 = vset.pattern.permute.xlu0 0
        %2837 = vperm.xlu0 %2836, %v2417
        %v2838 = vpop.permute.xlu0 %2837
        %2839 = vset.pattern.permute.xlu0 0
        %2840 = vperm.xlu0 %2839, %v2420
        %v2841 = vpop.permute.xlu0 %2840
        %2842 = vset.pattern.permute.xlu0 0
        %2843 = vperm.xlu0 %2842, %v2423
        %v2844 = vpop.permute.xlu0 %2843
        %2845 = vset.pattern.permute.xlu0 0
        %2846 = vperm.xlu0 %2845, %v2426
        %v2847 = vpop.permute.xlu0 %2846
        %2848 = vset.pattern.permute.xlu0 0
        %2849 = vperm.xlu0 %2848, %v2429
        %v2850 = vpop.permute.xlu0 %2849
        %2851 = vset.pattern.permute.xlu0 0
        %2852 = vperm.xlu0 %2851, %v2432
        %v2853 = vpop.permute.xlu0 %2852
        %2854 = vset.pattern.permute.xlu0 0
        %2855 = vperm.xlu0 %2854, %v2435
        %v2856 = vpop.permute.xlu0 %2855
        %2857 = vset.pattern.permute.xlu0 0
        %2858 = vperm.xlu0 %2857, %v2438
        %v2859 = vpop.permute.xlu0 %2858
        %2860 = vset.pattern.permute.xlu0 0
        %2861 = vperm.xlu0 %2860, %v2441
        %v2862 = vpop.permute.xlu0 %2861
        %2863 = vset.pattern.permute.xlu0 0
        %2864 = vperm.xlu0 %2863, %v2444
        %v2865 = vpop.permute.xlu0 %2864
        %2866 = vset.pattern.permute.xlu0 0
        %2867 = vperm.xlu0 %2866, %v2447
        %v2868 = vpop.permute.xlu0 %2867
        %2869 = vset.pattern.permute.xlu0 0
        %2870 = vperm.xlu0 %2869, %v2450
        %v2871 = vpop.permute.xlu0 %2870
        %2872 = vset.pattern.permute.xlu0 0
        %2873 = vperm.xlu0 %2872, %v2453
        %v2874 = vpop.permute.xlu0 %2873
        %2875 = vset.pattern.permute.xlu0 0
        %2876 = vperm.xlu0 %2875, %v2456
        %v2877 = vpop.permute.xlu0 %2876
        %2878 = vset.pattern.permute.xlu0 0
        %2879 = vperm.xlu0 %2878, %v2624
        %v2880 = vpop.permute.xlu0 %2879
        %2881 = vset.pattern.permute.xlu0 0
        %2882 = vperm.xlu0 %2881, %v2627
        %v2883 = vpop.permute.xlu0 %2882
        %2884 = vset.pattern.permute.xlu0 0
        %2885 = vperm.xlu0 %2884, %v2630
        %v2886 = vpop.permute.xlu0 %2885
        %2887 = vset.pattern.permute.xlu0 0
        %2888 = vperm.xlu0 %2887, %v2633
        %v2889 = vpop.permute.xlu0 %2888
        %2890 = vset.pattern.permute.xlu0 0
        %2891 = vperm.xlu0 %2890, %v2636
        %v2892 = vpop.permute.xlu0 %2891
        %2893 = vset.pattern.permute.xlu0 0
        %2894 = vperm.xlu0 %2893, %v2639
        %v2895 = vpop.permute.xlu0 %2894
        %2896 = vset.pattern.permute.xlu0 0
        %2897 = vperm.xlu0 %2896, %v2642
        %v2898 = vpop.permute.xlu0 %2897
        %2899 = vset.pattern.permute.xlu0 0
        %2900 = vperm.xlu0 %2899, %v2645
        %v2901 = vpop.permute.xlu0 %2900
        %2902 = vset.pattern.permute.xlu0 0
        %2903 = vperm.xlu0 %2902, %v2648
        %v2904 = vpop.permute.xlu0 %2903
        %2905 = vset.pattern.permute.xlu0 0
        %2906 = vperm.xlu0 %2905, %v2651
        %v2907 = vpop.permute.xlu0 %2906
        %2908 = vset.pattern.permute.xlu0 0
        %2909 = vperm.xlu0 %2908, %v2654
        %v2910 = vpop.permute.xlu0 %2909
        %2911 = vset.pattern.permute.xlu0 0
        %2912 = vperm.xlu0 %2911, %v2657
        %v2913 = vpop.permute.xlu0 %2912
        %2914 = vset.pattern.permute.xlu0 0
        %2915 = vperm.xlu0 %2914, %v2660
        %v2916 = vpop.permute.xlu0 %2915
        %2917 = vset.pattern.permute.xlu0 0
        %2918 = vperm.xlu0 %2917, %v2663
        %v2919 = vpop.permute.xlu0 %2918
        %2920 = vset.pattern.permute.xlu0 0
        %2921 = vperm.xlu0 %2920, %v2666
        %v2922 = vpop.permute.xlu0 %2921
        %2923 = vset.pattern.permute.xlu0 0
        %2924 = vperm.xlu0 %2923, %v2669
        %v2925 = vpop.permute.xlu0 %2924
        %2926 = vset.pattern.permute.xlu0 0
        %2927 = vperm.xlu0 %2926, %v2672
        %v2928 = vpop.permute.xlu0 %2927
        %2929 = vset.pattern.permute.xlu0 0
        %2930 = vperm.xlu0 %2929, %v2675
        %v2931 = vpop.permute.xlu0 %2930
        %2932 = vset.pattern.permute.xlu0 0
        %2933 = vperm.xlu0 %2932, %v2678
        %v2934 = vpop.permute.xlu0 %2933
        %2935 = vset.pattern.permute.xlu0 0
        %2936 = vperm.xlu0 %2935, %v2681
        %v2937 = vpop.permute.xlu0 %2936
        %2938 = vset.pattern.permute.xlu0 0
        %2939 = vperm.xlu0 %2938, %v2684
        %v2940 = vpop.permute.xlu0 %2939
        %2941 = vset.pattern.permute.xlu0 0
        %2942 = vperm.xlu0 %2941, %v2687
        %v2943 = vpop.permute.xlu0 %2942
        %2944 = vset.pattern.permute.xlu0 0
        %2945 = vperm.xlu0 %2944, %v2690
        %v2946 = vpop.permute.xlu0 %2945
        %2947 = vset.pattern.permute.xlu0 0
        %2948 = vperm.xlu0 %2947, %v2693
        %v2949 = vpop.permute.xlu0 %2948
        %2950 = vset.pattern.permute.xlu0 0
        %2951 = vperm.xlu0 %2950, %v2696
        %v2952 = vpop.permute.xlu0 %2951
        %2953 = vset.pattern.permute.xlu0 0
        %2954 = vperm.xlu0 %2953, %v2699
        %v2955 = vpop.permute.xlu0 %2954
        %2956 = vset.pattern.permute.xlu0 0
        %2957 = vperm.xlu0 %2956, %v2702
        %v2958 = vpop.permute.xlu0 %2957
        %2959 = vset.pattern.permute.xlu0 0
        %2960 = vperm.xlu0 %2959, %v2705
        %v2961 = vpop.permute.xlu0 %2960
        %2962 = vset.pattern.permute.xlu0 0
        %2963 = vperm.xlu0 %2962, %v2708
        %v2964 = vpop.permute.xlu0 %2963
        %2965 = vset.pattern.permute.xlu0 0
        %2966 = vperm.xlu0 %2965, %v2711
        %v2967 = vpop.permute.xlu0 %2966
        %2968 = vset.pattern.permute.xlu0 0
        %2969 = vperm.xlu0 %2968, %v2714
        %v2970 = vpop.permute.xlu0 %2969
        %2971 = vset.pattern.permute.xlu0 0
        %2972 = vperm.xlu0 %2971, %v2717
        %v2973 = vpop.permute.xlu0 %2972
        %v2974 = vlaneseq
        %v2975 = vand.u32 %v2974, 127
        %v2976 = vperm.slane %v2784, %v2975
        %v2977 = vperm.slane %v2787, %v2975
        %v2978 = vperm.slane %v2790, %v2975
        %v2979 = vperm.slane %v2793, %v2975
        %v2980 = vperm.slane %v2796, %v2975
        %v2981 = vperm.slane %v2799, %v2975
        %v2982 = vperm.slane %v2802, %v2975
        %v2983 = vperm.slane %v2805, %v2975
        %v2984 = vperm.slane %v2808, %v2975
        %v2985 = vperm.slane %v2811, %v2975
        %v2986 = vperm.slane %v2814, %v2975
        %v2987 = vperm.slane %v2817, %v2975
        %v2988 = vperm.slane %v2820, %v2975
        %v2989 = vperm.slane %v2823, %v2975
        %v2990 = vperm.slane %v2826, %v2975
        %v2991 = vperm.slane %v2829, %v2975
        %v2992 = vperm.slane %v2832, %v2975
        %v2993 = vperm.slane %v2835, %v2975
        %v2994 = vperm.slane %v2838, %v2975
        %v2995 = vperm.slane %v2841, %v2975
        %v2996 = vperm.slane %v2844, %v2975
        %v2997 = vperm.slane %v2847, %v2975
        %v2998 = vperm.slane %v2850, %v2975
        %v2999 = vperm.slane %v2853, %v2975
        %v3000 = vperm.slane %v2856, %v2975
        %v3001 = vperm.slane %v2859, %v2975
        %v3002 = vperm.slane %v2862, %v2975
        %v3003 = vperm.slane %v2865, %v2975
        %v3004 = vperm.slane %v2868, %v2975
        %v3005 = vperm.slane %v2871, %v2975
        %v3006 = vperm.slane %v2874, %v2975
        %v3007 = vperm.slane %v2877, %v2975
        %v3008 = vperm.slane %v2880, %v2975
        %v3009 = vperm.slane %v2883, %v2975
        %v3010 = vperm.slane %v2886, %v2975
        %v3011 = vperm.slane %v2889, %v2975
        %v3012 = vperm.slane %v2892, %v2975
        %v3013 = vperm.slane %v2895, %v2975
        %v3014 = vperm.slane %v2898, %v2975
        %v3015 = vperm.slane %v2901, %v2975
        %v3016 = vperm.slane %v2904, %v2975
        %v3017 = vperm.slane %v2907, %v2975
        %v3018 = vperm.slane %v2910, %v2975
        %v3019 = vperm.slane %v2913, %v2975
        %v3020 = vperm.slane %v2916, %v2975
        %v3021 = vperm.slane %v2919, %v2975
        %v3022 = vperm.slane %v2922, %v2975
        %v3023 = vperm.slane %v2925, %v2975
        %v3024 = vperm.slane %v2928, %v2975
        %v3025 = vperm.slane %v2931, %v2975
        %v3026 = vperm.slane %v2934, %v2975
        %v3027 = vperm.slane %v2937, %v2975
        %v3028 = vperm.slane %v2940, %v2975
        %v3029 = vperm.slane %v2943, %v2975
        %v3030 = vperm.slane %v2946, %v2975
        %v3031 = vperm.slane %v2949, %v2975
        %v3032 = vperm.slane %v2952, %v2975
        %v3033 = vperm.slane %v2955, %v2975
        %v3034 = vperm.slane %v2958, %v2975
        %v3035 = vperm.slane %v2961, %v2975
        %v3036 = vperm.slane %v2964, %v2975
        %v3037 = vperm.slane %v2967, %v2975
        %v3038 = vperm.slane %v2970, %v2975
        %v3039 = vperm.slane %v2973, %v2975
        %vm3040 = vcmask 1041409
        %v3041 = vsel %vm3040, %v2977, %v2976
        %vm3042 = vcmask 1042434
        %v3043 = vsel %vm3042, %v2978, %v3041
        %vm3044 = vcmask 1043459
        %v3045 = vsel %vm3044, %v2979, %v3043
        %vm3046 = vcmask 1044484
        %v3047 = vsel %vm3046, %v2980, %v3045
        %vm3048 = vcmask 1045509
        %v3049 = vsel %vm3048, %v2981, %v3047
        %vm3050 = vcmask 1046534
        %v3051 = vsel %vm3050, %v2982, %v3049
        %vm3052 = vcmask 1047559
        %v3053 = vsel %vm3052, %v2983, %v3051
        %v3054 = vsel %vm3040, %v2985, %v2984
        %v3055 = vsel %vm3042, %v2986, %v3054
        %v3056 = vsel %vm3044, %v2987, %v3055
        %v3057 = vsel %vm3046, %v2988, %v3056
        %v3058 = vsel %vm3048, %v2989, %v3057
        %v3059 = vsel %vm3050, %v2990, %v3058
        %v3060 = vsel %vm3052, %v2991, %v3059
        %v3061 = vsel %vm3040, %v2993, %v2992
        %v3062 = vsel %vm3042, %v2994, %v3061
        %v3063 = vsel %vm3044, %v2995, %v3062
        %v3064 = vsel %vm3046, %v2996, %v3063
        %v3065 = vsel %vm3048, %v2997, %v3064
        %v3066 = vsel %vm3050, %v2998, %v3065
        %v3067 = vsel %vm3052, %v2999, %v3066
        %v3068 = vsel %vm3040, %v3001, %v3000
        %v3069 = vsel %vm3042, %v3002, %v3068
        %v3070 = vsel %vm3044, %v3003, %v3069
        %v3071 = vsel %vm3046, %v3004, %v3070
        %v3072 = vsel %vm3048, %v3005, %v3071
        %v3073 = vsel %vm3050, %v3006, %v3072
        %v3074 = vsel %vm3052, %v3007, %v3073
        %v3075 = vsel %vm3040, %v3009, %v3008
        %v3076 = vsel %vm3042, %v3010, %v3075
        %v3077 = vsel %vm3044, %v3011, %v3076
        %v3078 = vsel %vm3046, %v3012, %v3077
        %v3079 = vsel %vm3048, %v3013, %v3078
        %v3080 = vsel %vm3050, %v3014, %v3079
        %v3081 = vsel %vm3052, %v3015, %v3080
        %v3082 = vsel %vm3040, %v3017, %v3016
        %v3083 = vsel %vm3042, %v3018, %v3082
        %v3084 = vsel %vm3044, %v3019, %v3083
        %v3085 = vsel %vm3046, %v3020, %v3084
        %v3086 = vsel %vm3048, %v3021, %v3085
        %v3087 = vsel %vm3050, %v3022, %v3086
        %v3088 = vsel %vm3052, %v3023, %v3087
        %v3089 = vsel %vm3040, %v3025, %v3024
        %v3090 = vsel %vm3042, %v3026, %v3089
        %v3091 = vsel %vm3044, %v3027, %v3090
        %v3092 = vsel %vm3046, %v3028, %v3091
        %v3093 = vsel %vm3048, %v3029, %v3092
        %v3094 = vsel %vm3050, %v3030, %v3093
        %v3095 = vsel %vm3052, %v3031, %v3094
        %v3096 = vsel %vm3040, %v3033, %v3032
        %v3097 = vsel %vm3042, %v3034, %v3096
        %v3098 = vsel %vm3044, %v3035, %v3097
        %v3099 = vsel %vm3046, %v3036, %v3098
        %v3100 = vsel %vm3048, %v3037, %v3099
        %v3101 = vsel %vm3050, %v3038, %v3100
        %v3102 = vsel %vm3052, %v3039, %v3101
        %vm3111 = vcmask 64512
        %v3112 = vsel %vm3111, %v3053, -inf
        %3113 = vmax.xlane.f32.xlu0 %v3112
        %v3114 = vpop.xlane.xlu0 %3113
        %v3115 = vsel %vm3111, %v3060, -inf
        %3116 = vmax.xlane.f32.xlu0 %v3115
        %v3117 = vpop.xlane.xlu0 %3116
        %v3118 = vsel %vm3111, %v3067, -inf
        %3119 = vmax.xlane.f32.xlu0 %v3118
        %v3120 = vpop.xlane.xlu0 %3119
        %v3121 = vsel %vm3111, %v3074, -inf
        %3122 = vmax.xlane.f32.xlu0 %v3121
        %v3123 = vpop.xlane.xlu0 %3122
        %v3124 = vsel %vm3111, %v3081, -inf
        %3125 = vmax.xlane.f32.xlu0 %v3124
        %v3126 = vpop.xlane.xlu0 %3125
        %v3127 = vsel %vm3111, %v3088, -inf
        %3128 = vmax.xlane.f32.xlu0 %v3127
        %v3129 = vpop.xlane.xlu0 %3128
        %v3130 = vsel %vm3111, %v3095, -inf
        %3131 = vmax.xlane.f32.xlu0 %v3130
        %v3132 = vpop.xlane.xlu0 %3131
        %v3133 = vsel %vm3111, %v3102, -inf
        %3134 = vmax.xlane.f32.xlu0 %v3133
        %v3135 = vpop.xlane.xlu0 %3134
        %v3144 = vperm.slane %v3114, 0
        %v3145 = vperm.slane %v3114, 1
        %v3146 = vperm.slane %v3114, 2
        %v3147 = vperm.slane %v3114, 3
        %v3148 = vperm.slane %v3114, 4
        %v3149 = vperm.slane %v3114, 5
        %v3150 = vperm.slane %v3114, 6
        %v3151 = vperm.slane %v3114, 7
        %v3152 = vperm.slane %v3117, 0
        %v3153 = vperm.slane %v3117, 1
        %v3154 = vperm.slane %v3117, 2
        %v3155 = vperm.slane %v3117, 3
        %v3156 = vperm.slane %v3117, 4
        %v3157 = vperm.slane %v3117, 5
        %v3158 = vperm.slane %v3117, 6
        %v3159 = vperm.slane %v3117, 7
        %v3160 = vperm.slane %v3120, 0
        %v3161 = vperm.slane %v3120, 1
        %v3162 = vperm.slane %v3120, 2
        %v3163 = vperm.slane %v3120, 3
        %v3164 = vperm.slane %v3120, 4
        %v3165 = vperm.slane %v3120, 5
        %v3166 = vperm.slane %v3120, 6
        %v3167 = vperm.slane %v3120, 7
        %v3168 = vperm.slane %v3123, 0
        %v3169 = vperm.slane %v3123, 1
        %v3170 = vperm.slane %v3123, 2
        %v3171 = vperm.slane %v3123, 3
        %v3172 = vperm.slane %v3123, 4
        %v3173 = vperm.slane %v3123, 5
        %v3174 = vperm.slane %v3123, 6
        %v3175 = vperm.slane %v3123, 7
        %v3176 = vperm.slane %v3126, 0
        %v3177 = vperm.slane %v3126, 1
        %v3178 = vperm.slane %v3126, 2
        %v3179 = vperm.slane %v3126, 3
        %v3180 = vperm.slane %v3126, 4
        %v3181 = vperm.slane %v3126, 5
        %v3182 = vperm.slane %v3126, 6
        %v3183 = vperm.slane %v3126, 7
        %v3184 = vperm.slane %v3129, 0
        %v3185 = vperm.slane %v3129, 1
        %v3186 = vperm.slane %v3129, 2
        %v3187 = vperm.slane %v3129, 3
        %v3188 = vperm.slane %v3129, 4
        %v3189 = vperm.slane %v3129, 5
        %v3190 = vperm.slane %v3129, 6
        %v3191 = vperm.slane %v3129, 7
        %v3192 = vperm.slane %v3132, 0
        %v3193 = vperm.slane %v3132, 1
        %v3194 = vperm.slane %v3132, 2
        %v3195 = vperm.slane %v3132, 3
        %v3196 = vperm.slane %v3132, 4
        %v3197 = vperm.slane %v3132, 5
        %v3198 = vperm.slane %v3132, 6
        %v3199 = vperm.slane %v3132, 7
        %v3200 = vperm.slane %v3135, 0
        %v3201 = vperm.slane %v3135, 1
        %v3202 = vperm.slane %v3135, 2
        %v3203 = vperm.slane %v3135, 3
        %v3204 = vperm.slane %v3135, 4
        %v3205 = vperm.slane %v3135, 5
        %v3206 = vperm.slane %v3135, 6
        %v3207 = vperm.slane %v3135, 7
        %v3272 = vsub.f32 %v2363, %v3144
        %v3273 = vsub.f32 %v2366, %v3145
        %v3274 = vsub.f32 %v2369, %v3146
        %v3275 = vsub.f32 %v2372, %v3147
        %v3276 = vsub.f32 %v2375, %v3148
        %v3277 = vsub.f32 %v2378, %v3149
        %v3278 = vsub.f32 %v2381, %v3150
        %v3279 = vsub.f32 %v2384, %v3151
        %v3280 = vsub.f32 %v2387, %v3152
        %v3281 = vsub.f32 %v2390, %v3153
        %v3282 = vsub.f32 %v2393, %v3154
        %v3283 = vsub.f32 %v2396, %v3155
        %v3284 = vsub.f32 %v2399, %v3156
        %v3285 = vsub.f32 %v2402, %v3157
        %v3286 = vsub.f32 %v2405, %v3158
        %v3287 = vsub.f32 %v2408, %v3159
        %v3288 = vsub.f32 %v2411, %v3160
        %v3289 = vsub.f32 %v2414, %v3161
        %v3290 = vsub.f32 %v2417, %v3162
        %v3291 = vsub.f32 %v2420, %v3163
        %v3292 = vsub.f32 %v2423, %v3164
        %v3293 = vsub.f32 %v2426, %v3165
        %v3294 = vsub.f32 %v2429, %v3166
        %v3295 = vsub.f32 %v2432, %v3167
        %v3296 = vsub.f32 %v2435, %v3168
        %v3297 = vsub.f32 %v2438, %v3169
        %v3298 = vsub.f32 %v2441, %v3170
        %v3299 = vsub.f32 %v2444, %v3171
        %v3300 = vsub.f32 %v2447, %v3172
        %v3301 = vsub.f32 %v2450, %v3173
        %v3302 = vsub.f32 %v2453, %v3174
        %v3303 = vsub.f32 %v2456, %v3175
        %v3304 = vsub.f32 %v2624, %v3176
        %v3305 = vsub.f32 %v2627, %v3177
        %v3306 = vsub.f32 %v2630, %v3178
        %v3307 = vsub.f32 %v2633, %v3179
        %v3308 = vsub.f32 %v2636, %v3180
        %v3309 = vsub.f32 %v2639, %v3181
        %v3310 = vsub.f32 %v2642, %v3182
        %v3311 = vsub.f32 %v2645, %v3183
        %v3312 = vsub.f32 %v2648, %v3184
        %v3313 = vsub.f32 %v2651, %v3185
        %v3314 = vsub.f32 %v2654, %v3186
        %v3315 = vsub.f32 %v2657, %v3187
        %v3316 = vsub.f32 %v2660, %v3188
        %v3317 = vsub.f32 %v2663, %v3189
        %v3318 = vsub.f32 %v2666, %v3190
        %v3319 = vsub.f32 %v2669, %v3191
        %v3320 = vsub.f32 %v2672, %v3192
        %v3321 = vsub.f32 %v2675, %v3193
        %v3322 = vsub.f32 %v2678, %v3194
        %v3323 = vsub.f32 %v2681, %v3195
        %v3324 = vsub.f32 %v2684, %v3196
        %v3325 = vsub.f32 %v2687, %v3197
        %v3326 = vsub.f32 %v2690, %v3198
        %v3327 = vsub.f32 %v2693, %v3199
        %v3328 = vsub.f32 %v2696, %v3200
        %v3329 = vsub.f32 %v2699, %v3201
        %v3330 = vsub.f32 %v2702, %v3202
        %v3331 = vsub.f32 %v2705, %v3203
        %v3332 = vsub.f32 %v2708, %v3204
        %v3333 = vsub.f32 %v2711, %v3205
        %v3334 = vsub.f32 %v2714, %v3206
        %v3335 = vsub.f32 %v2717, %v3207
        %v3336 = vmul.f32 %v3272, 1.442695
        %v3337 = vpow.pop %v3336
        %v3338 = vmul.f32 %v3273, 1.442695
        %v3339 = vpow.pop %v3338
        %v3340 = vmul.f32 %v3274, 1.442695
        %v3341 = vpow.pop %v3340
        %v3342 = vmul.f32 %v3275, 1.442695
        %v3343 = vpow.pop %v3342
        %v3344 = vmul.f32 %v3276, 1.442695
        %v3345 = vpow.pop %v3344
        %v3346 = vmul.f32 %v3277, 1.442695
        %v3347 = vpow.pop %v3346
        %v3348 = vmul.f32 %v3278, 1.442695
        %v3349 = vpow.pop %v3348
        %v3350 = vmul.f32 %v3279, 1.442695
        %v3351 = vpow.pop %v3350
        %v3352 = vmul.f32 %v3280, 1.442695
        %v3353 = vpow.pop %v3352
        %v3354 = vmul.f32 %v3281, 1.442695
        %v3355 = vpow.pop %v3354
        %v3356 = vmul.f32 %v3282, 1.442695
        %v3357 = vpow.pop %v3356
        %v3358 = vmul.f32 %v3283, 1.442695
        %v3359 = vpow.pop %v3358
        %v3360 = vmul.f32 %v3284, 1.442695
        %v3361 = vpow.pop %v3360
        %v3362 = vmul.f32 %v3285, 1.442695
        %v3363 = vpow.pop %v3362
        %v3364 = vmul.f32 %v3286, 1.442695
        %v3365 = vpow.pop %v3364
        %v3366 = vmul.f32 %v3287, 1.442695
        %v3367 = vpow.pop %v3366
        %v3368 = vmul.f32 %v3288, 1.442695
        %v3369 = vpow.pop %v3368
        %v3370 = vmul.f32 %v3289, 1.442695
        %v3371 = vpow.pop %v3370
        %v3372 = vmul.f32 %v3290, 1.442695
        %v3373 = vpow.pop %v3372
        %v3374 = vmul.f32 %v3291, 1.442695
        %v3375 = vpow.pop %v3374
        %v3376 = vmul.f32 %v3292, 1.442695
        %v3377 = vpow.pop %v3376
        %v3378 = vmul.f32 %v3293, 1.442695
        %v3379 = vpow.pop %v3378
        %v3380 = vmul.f32 %v3294, 1.442695
        %v3381 = vpow.pop %v3380
        %v3382 = vmul.f32 %v3295, 1.442695
        %v3383 = vpow.pop %v3382
        %v3384 = vmul.f32 %v3296, 1.442695
        %v3385 = vpow.pop %v3384
        %v3386 = vmul.f32 %v3297, 1.442695
        %v3387 = vpow.pop %v3386
        %v3388 = vmul.f32 %v3298, 1.442695
        %v3389 = vpow.pop %v3388
        %v3390 = vmul.f32 %v3299, 1.442695
        %v3391 = vpow.pop %v3390
        %v3392 = vmul.f32 %v3300, 1.442695
        %v3393 = vpow.pop %v3392
        %v3394 = vmul.f32 %v3301, 1.442695
        %v3395 = vpow.pop %v3394
        %v3396 = vmul.f32 %v3302, 1.442695
        %v3397 = vpow.pop %v3396
        %v3398 = vmul.f32 %v3303, 1.442695
        %v3399 = vpow.pop %v3398
        %v3400 = vmul.f32 %v3304, 1.442695
        %v3401 = vpow.pop %v3400
        %v3402 = vmul.f32 %v3305, 1.442695
        %v3403 = vpow.pop %v3402
        %v3404 = vmul.f32 %v3306, 1.442695
        %v3405 = vpow.pop %v3404
        %v3406 = vmul.f32 %v3307, 1.442695
        %v3407 = vpow.pop %v3406
        %v3408 = vmul.f32 %v3308, 1.442695
        %v3409 = vpow.pop %v3408
        %v3410 = vmul.f32 %v3309, 1.442695
        %v3411 = vpow.pop %v3410
        %v3412 = vmul.f32 %v3310, 1.442695
        %v3413 = vpow.pop %v3412
        %v3414 = vmul.f32 %v3311, 1.442695
        %v3415 = vpow.pop %v3414
        %v3416 = vmul.f32 %v3312, 1.442695
        %v3417 = vpow.pop %v3416
        %v3418 = vmul.f32 %v3313, 1.442695
        %v3419 = vpow.pop %v3418
        %v3420 = vmul.f32 %v3314, 1.442695
        %v3421 = vpow.pop %v3420
        %v3422 = vmul.f32 %v3315, 1.442695
        %v3423 = vpow.pop %v3422
        %v3424 = vmul.f32 %v3316, 1.442695
        %v3425 = vpow.pop %v3424
        %v3426 = vmul.f32 %v3317, 1.442695
        %v3427 = vpow.pop %v3426
        %v3428 = vmul.f32 %v3318, 1.442695
        %v3429 = vpow.pop %v3428
        %v3430 = vmul.f32 %v3319, 1.442695
        %v3431 = vpow.pop %v3430
        %v3432 = vmul.f32 %v3320, 1.442695
        %v3433 = vpow.pop %v3432
        %v3434 = vmul.f32 %v3321, 1.442695
        %v3435 = vpow.pop %v3434
        %v3436 = vmul.f32 %v3322, 1.442695
        %v3437 = vpow.pop %v3436
        %v3438 = vmul.f32 %v3323, 1.442695
        %v3439 = vpow.pop %v3438
        %v3440 = vmul.f32 %v3324, 1.442695
        %v3441 = vpow.pop %v3440
        %v3442 = vmul.f32 %v3325, 1.442695
        %v3443 = vpow.pop %v3442
        %v3444 = vmul.f32 %v3326, 1.442695
        %v3445 = vpow.pop %v3444
        %v3446 = vmul.f32 %v3327, 1.442695
        %v3447 = vpow.pop %v3446
        %v3448 = vmul.f32 %v3328, 1.442695
        %v3449 = vpow.pop %v3448
        %v3450 = vmul.f32 %v3329, 1.442695
        %v3451 = vpow.pop %v3450
        %v3452 = vmul.f32 %v3330, 1.442695
        %v3453 = vpow.pop %v3452
        %v3454 = vmul.f32 %v3331, 1.442695
        %v3455 = vpow.pop %v3454
        %v3456 = vmul.f32 %v3332, 1.442695
        %v3457 = vpow.pop %v3456
        %v3458 = vmul.f32 %v3333, 1.442695
        %v3459 = vpow.pop %v3458
        %v3460 = vmul.f32 %v3334, 1.442695
        %v3461 = vpow.pop %v3460
        %v3462 = vmul.f32 %v3335, 1.442695
        %v3463 = vpow.pop %v3462
        %3528 = vset.pattern.permute.xlu0 0
        %3529 = vperm.xlu0 %3528, %v3337
        %v3530 = vpop.permute.xlu0 %3529
        %3531 = vset.pattern.permute.xlu0 0
        %3532 = vperm.xlu0 %3531, %v3339
        %v3533 = vpop.permute.xlu0 %3532
        %3534 = vset.pattern.permute.xlu0 0
        %3535 = vperm.xlu0 %3534, %v3341
        %v3536 = vpop.permute.xlu0 %3535
        %3537 = vset.pattern.permute.xlu0 0
        %3538 = vperm.xlu0 %3537, %v3343
        %v3539 = vpop.permute.xlu0 %3538
        %3540 = vset.pattern.permute.xlu0 0
        %3541 = vperm.xlu0 %3540, %v3345
        %v3542 = vpop.permute.xlu0 %3541
        %3543 = vset.pattern.permute.xlu0 0
        %3544 = vperm.xlu0 %3543, %v3347
        %v3545 = vpop.permute.xlu0 %3544
        %3546 = vset.pattern.permute.xlu0 0
        %3547 = vperm.xlu0 %3546, %v3349
        %v3548 = vpop.permute.xlu0 %3547
        %3549 = vset.pattern.permute.xlu0 0
        %3550 = vperm.xlu0 %3549, %v3351
        %v3551 = vpop.permute.xlu0 %3550
        %3552 = vset.pattern.permute.xlu0 0
        %3553 = vperm.xlu0 %3552, %v3353
        %v3554 = vpop.permute.xlu0 %3553
        %3555 = vset.pattern.permute.xlu0 0
        %3556 = vperm.xlu0 %3555, %v3355
        %v3557 = vpop.permute.xlu0 %3556
        %3558 = vset.pattern.permute.xlu0 0
        %3559 = vperm.xlu0 %3558, %v3357
        %v3560 = vpop.permute.xlu0 %3559
        %3561 = vset.pattern.permute.xlu0 0
        %3562 = vperm.xlu0 %3561, %v3359
        %v3563 = vpop.permute.xlu0 %3562
        %3564 = vset.pattern.permute.xlu0 0
        %3565 = vperm.xlu0 %3564, %v3361
        %v3566 = vpop.permute.xlu0 %3565
        %3567 = vset.pattern.permute.xlu0 0
        %3568 = vperm.xlu0 %3567, %v3363
        %v3569 = vpop.permute.xlu0 %3568
        %3570 = vset.pattern.permute.xlu0 0
        %3571 = vperm.xlu0 %3570, %v3365
        %v3572 = vpop.permute.xlu0 %3571
        %3573 = vset.pattern.permute.xlu0 0
        %3574 = vperm.xlu0 %3573, %v3367
        %v3575 = vpop.permute.xlu0 %3574
        %3576 = vset.pattern.permute.xlu0 0
        %3577 = vperm.xlu0 %3576, %v3369
        %v3578 = vpop.permute.xlu0 %3577
        %3579 = vset.pattern.permute.xlu0 0
        %3580 = vperm.xlu0 %3579, %v3371
        %v3581 = vpop.permute.xlu0 %3580
        %3582 = vset.pattern.permute.xlu0 0
        %3583 = vperm.xlu0 %3582, %v3373
        %v3584 = vpop.permute.xlu0 %3583
        %3585 = vset.pattern.permute.xlu0 0
        %3586 = vperm.xlu0 %3585, %v3375
        %v3587 = vpop.permute.xlu0 %3586
        %3588 = vset.pattern.permute.xlu0 0
        %3589 = vperm.xlu0 %3588, %v3377
        %v3590 = vpop.permute.xlu0 %3589
        %3591 = vset.pattern.permute.xlu0 0
        %3592 = vperm.xlu0 %3591, %v3379
        %v3593 = vpop.permute.xlu0 %3592
        %3594 = vset.pattern.permute.xlu0 0
        %3595 = vperm.xlu0 %3594, %v3381
        %v3596 = vpop.permute.xlu0 %3595
        %3597 = vset.pattern.permute.xlu0 0
        %3598 = vperm.xlu0 %3597, %v3383
        %v3599 = vpop.permute.xlu0 %3598
        %3600 = vset.pattern.permute.xlu0 0
        %3601 = vperm.xlu0 %3600, %v3385
        %v3602 = vpop.permute.xlu0 %3601
        %3603 = vset.pattern.permute.xlu0 0
        %3604 = vperm.xlu0 %3603, %v3387
        %v3605 = vpop.permute.xlu0 %3604
        %3606 = vset.pattern.permute.xlu0 0
        %3607 = vperm.xlu0 %3606, %v3389
        %v3608 = vpop.permute.xlu0 %3607
        %3609 = vset.pattern.permute.xlu0 0
        %3610 = vperm.xlu0 %3609, %v3391
        %v3611 = vpop.permute.xlu0 %3610
        %3612 = vset.pattern.permute.xlu0 0
        %3613 = vperm.xlu0 %3612, %v3393
        %v3614 = vpop.permute.xlu0 %3613
        %3615 = vset.pattern.permute.xlu0 0
        %3616 = vperm.xlu0 %3615, %v3395
        %v3617 = vpop.permute.xlu0 %3616
        %3618 = vset.pattern.permute.xlu0 0
        %3619 = vperm.xlu0 %3618, %v3397
        %v3620 = vpop.permute.xlu0 %3619
        %3621 = vset.pattern.permute.xlu0 0
        %3622 = vperm.xlu0 %3621, %v3399
        %v3623 = vpop.permute.xlu0 %3622
        %3624 = vset.pattern.permute.xlu0 0
        %3625 = vperm.xlu0 %3624, %v3401
        %v3626 = vpop.permute.xlu0 %3625
        %3627 = vset.pattern.permute.xlu0 0
        %3628 = vperm.xlu0 %3627, %v3403
        %v3629 = vpop.permute.xlu0 %3628
        %3630 = vset.pattern.permute.xlu0 0
        %3631 = vperm.xlu0 %3630, %v3405
        %v3632 = vpop.permute.xlu0 %3631
        %3633 = vset.pattern.permute.xlu0 0
        %3634 = vperm.xlu0 %3633, %v3407
        %v3635 = vpop.permute.xlu0 %3634
        %3636 = vset.pattern.permute.xlu0 0
        %3637 = vperm.xlu0 %3636, %v3409
        %v3638 = vpop.permute.xlu0 %3637
        %3639 = vset.pattern.permute.xlu0 0
        %3640 = vperm.xlu0 %3639, %v3411
        %v3641 = vpop.permute.xlu0 %3640
        %3642 = vset.pattern.permute.xlu0 0
        %3643 = vperm.xlu0 %3642, %v3413
        %v3644 = vpop.permute.xlu0 %3643
        %3645 = vset.pattern.permute.xlu0 0
        %3646 = vperm.xlu0 %3645, %v3415
        %v3647 = vpop.permute.xlu0 %3646
        %3648 = vset.pattern.permute.xlu0 0
        %3649 = vperm.xlu0 %3648, %v3417
        %v3650 = vpop.permute.xlu0 %3649
        %3651 = vset.pattern.permute.xlu0 0
        %3652 = vperm.xlu0 %3651, %v3419
        %v3653 = vpop.permute.xlu0 %3652
        %3654 = vset.pattern.permute.xlu0 0
        %3655 = vperm.xlu0 %3654, %v3421
        %v3656 = vpop.permute.xlu0 %3655
        %3657 = vset.pattern.permute.xlu0 0
        %3658 = vperm.xlu0 %3657, %v3423
        %v3659 = vpop.permute.xlu0 %3658
        %3660 = vset.pattern.permute.xlu0 0
        %3661 = vperm.xlu0 %3660, %v3425
        %v3662 = vpop.permute.xlu0 %3661
        %3663 = vset.pattern.permute.xlu0 0
        %3664 = vperm.xlu0 %3663, %v3427
        %v3665 = vpop.permute.xlu0 %3664
        %3666 = vset.pattern.permute.xlu0 0
        %3667 = vperm.xlu0 %3666, %v3429
        %v3668 = vpop.permute.xlu0 %3667
        %3669 = vset.pattern.permute.xlu0 0
        %3670 = vperm.xlu0 %3669, %v3431
        %v3671 = vpop.permute.xlu0 %3670
        %3672 = vset.pattern.permute.xlu0 0
        %3673 = vperm.xlu0 %3672, %v3433
        %v3674 = vpop.permute.xlu0 %3673
        %3675 = vset.pattern.permute.xlu0 0
        %3676 = vperm.xlu0 %3675, %v3435
        %v3677 = vpop.permute.xlu0 %3676
        %3678 = vset.pattern.permute.xlu0 0
        %3679 = vperm.xlu0 %3678, %v3437
        %v3680 = vpop.permute.xlu0 %3679
        %3681 = vset.pattern.permute.xlu0 0
        %3682 = vperm.xlu0 %3681, %v3439
        %v3683 = vpop.permute.xlu0 %3682
        %3684 = vset.pattern.permute.xlu0 0
        %3685 = vperm.xlu0 %3684, %v3441
        %v3686 = vpop.permute.xlu0 %3685
        %3687 = vset.pattern.permute.xlu0 0
        %3688 = vperm.xlu0 %3687, %v3443
        %v3689 = vpop.permute.xlu0 %3688
        %3690 = vset.pattern.permute.xlu0 0
        %3691 = vperm.xlu0 %3690, %v3445
        %v3692 = vpop.permute.xlu0 %3691
        %3693 = vset.pattern.permute.xlu0 0
        %3694 = vperm.xlu0 %3693, %v3447
        %v3695 = vpop.permute.xlu0 %3694
        %3696 = vset.pattern.permute.xlu0 0
        %3697 = vperm.xlu0 %3696, %v3449
        %v3698 = vpop.permute.xlu0 %3697
        %3699 = vset.pattern.permute.xlu0 0
        %3700 = vperm.xlu0 %3699, %v3451
        %v3701 = vpop.permute.xlu0 %3700
        %3702 = vset.pattern.permute.xlu0 0
        %3703 = vperm.xlu0 %3702, %v3453
        %v3704 = vpop.permute.xlu0 %3703
        %3705 = vset.pattern.permute.xlu0 0
        %3706 = vperm.xlu0 %3705, %v3455
        %v3707 = vpop.permute.xlu0 %3706
        %3708 = vset.pattern.permute.xlu0 0
        %3709 = vperm.xlu0 %3708, %v3457
        %v3710 = vpop.permute.xlu0 %3709
        %3711 = vset.pattern.permute.xlu0 0
        %3712 = vperm.xlu0 %3711, %v3459
        %v3713 = vpop.permute.xlu0 %3712
        %3714 = vset.pattern.permute.xlu0 0
        %3715 = vperm.xlu0 %3714, %v3461
        %v3716 = vpop.permute.xlu0 %3715
        %3717 = vset.pattern.permute.xlu0 0
        %3718 = vperm.xlu0 %3717, %v3463
        %v3719 = vpop.permute.xlu0 %3718
        %v3720 = vperm.slane %v3530, %v2975
        %v3721 = vperm.slane %v3533, %v2975
        %v3722 = vperm.slane %v3536, %v2975
        %v3723 = vperm.slane %v3539, %v2975
        %v3724 = vperm.slane %v3542, %v2975
        %v3725 = vperm.slane %v3545, %v2975
        %v3726 = vperm.slane %v3548, %v2975
        %v3727 = vperm.slane %v3551, %v2975
        %v3728 = vperm.slane %v3554, %v2975
        %v3729 = vperm.slane %v3557, %v2975
        %v3730 = vperm.slane %v3560, %v2975
        %v3731 = vperm.slane %v3563, %v2975
        %v3732 = vperm.slane %v3566, %v2975
        %v3733 = vperm.slane %v3569, %v2975
        %v3734 = vperm.slane %v3572, %v2975
        %v3735 = vperm.slane %v3575, %v2975
        %v3736 = vperm.slane %v3578, %v2975
        %v3737 = vperm.slane %v3581, %v2975
        %v3738 = vperm.slane %v3584, %v2975
        %v3739 = vperm.slane %v3587, %v2975
        %v3740 = vperm.slane %v3590, %v2975
        %v3741 = vperm.slane %v3593, %v2975
        %v3742 = vperm.slane %v3596, %v2975
        %v3743 = vperm.slane %v3599, %v2975
        %v3744 = vperm.slane %v3602, %v2975
        %v3745 = vperm.slane %v3605, %v2975
        %v3746 = vperm.slane %v3608, %v2975
        %v3747 = vperm.slane %v3611, %v2975
        %v3748 = vperm.slane %v3614, %v2975
        %v3749 = vperm.slane %v3617, %v2975
        %v3750 = vperm.slane %v3620, %v2975
        %v3751 = vperm.slane %v3623, %v2975
        %v3752 = vperm.slane %v3626, %v2975
        %v3753 = vperm.slane %v3629, %v2975
        %v3754 = vperm.slane %v3632, %v2975
        %v3755 = vperm.slane %v3635, %v2975
        %v3756 = vperm.slane %v3638, %v2975
        %v3757 = vperm.slane %v3641, %v2975
        %v3758 = vperm.slane %v3644, %v2975
        %v3759 = vperm.slane %v3647, %v2975
        %v3760 = vperm.slane %v3650, %v2975
        %v3761 = vperm.slane %v3653, %v2975
        %v3762 = vperm.slane %v3656, %v2975
        %v3763 = vperm.slane %v3659, %v2975
        %v3764 = vperm.slane %v3662, %v2975
        %v3765 = vperm.slane %v3665, %v2975
        %v3766 = vperm.slane %v3668, %v2975
        %v3767 = vperm.slane %v3671, %v2975
        %v3768 = vperm.slane %v3674, %v2975
        %v3769 = vperm.slane %v3677, %v2975
        %v3770 = vperm.slane %v3680, %v2975
        %v3771 = vperm.slane %v3683, %v2975
        %v3772 = vperm.slane %v3686, %v2975
        %v3773 = vperm.slane %v3689, %v2975
        %v3774 = vperm.slane %v3692, %v2975
        %v3775 = vperm.slane %v3695, %v2975
        %v3776 = vperm.slane %v3698, %v2975
        %v3777 = vperm.slane %v3701, %v2975
        %v3778 = vperm.slane %v3704, %v2975
        %v3779 = vperm.slane %v3707, %v2975
        %v3780 = vperm.slane %v3710, %v2975
        %v3781 = vperm.slane %v3713, %v2975
        %v3782 = vperm.slane %v3716, %v2975
        %v3783 = vperm.slane %v3719, %v2975
        %v3784 = vsel %vm3040, %v3721, %v3720
        %v3785 = vsel %vm3042, %v3722, %v3784
        %v3786 = vsel %vm3044, %v3723, %v3785
        %v3787 = vsel %vm3046, %v3724, %v3786
        %v3788 = vsel %vm3048, %v3725, %v3787
        %v3789 = vsel %vm3050, %v3726, %v3788
        %v3790 = vsel %vm3052, %v3727, %v3789
        %v3791 = vsel %vm3040, %v3729, %v3728
        %v3792 = vsel %vm3042, %v3730, %v3791
        %v3793 = vsel %vm3044, %v3731, %v3792
        %v3794 = vsel %vm3046, %v3732, %v3793
        %v3795 = vsel %vm3048, %v3733, %v3794
        %v3796 = vsel %vm3050, %v3734, %v3795
        %v3797 = vsel %vm3052, %v3735, %v3796
        %v3798 = vsel %vm3040, %v3737, %v3736
        %v3799 = vsel %vm3042, %v3738, %v3798
        %v3800 = vsel %vm3044, %v3739, %v3799
        %v3801 = vsel %vm3046, %v3740, %v3800
        %v3802 = vsel %vm3048, %v3741, %v3801
        %v3803 = vsel %vm3050, %v3742, %v3802
        %v3804 = vsel %vm3052, %v3743, %v3803
        %v3805 = vsel %vm3040, %v3745, %v3744
        %v3806 = vsel %vm3042, %v3746, %v3805
        %v3807 = vsel %vm3044, %v3747, %v3806
        %v3808 = vsel %vm3046, %v3748, %v3807
        %v3809 = vsel %vm3048, %v3749, %v3808
        %v3810 = vsel %vm3050, %v3750, %v3809
        %v3811 = vsel %vm3052, %v3751, %v3810
        %v3812 = vsel %vm3040, %v3753, %v3752
        %v3813 = vsel %vm3042, %v3754, %v3812
        %v3814 = vsel %vm3044, %v3755, %v3813
        %v3815 = vsel %vm3046, %v3756, %v3814
        %v3816 = vsel %vm3048, %v3757, %v3815
        %v3817 = vsel %vm3050, %v3758, %v3816
        %v3818 = vsel %vm3052, %v3759, %v3817
        %v3819 = vsel %vm3040, %v3761, %v3760
        %v3820 = vsel %vm3042, %v3762, %v3819
        %v3821 = vsel %vm3044, %v3763, %v3820
        %v3822 = vsel %vm3046, %v3764, %v3821
        %v3823 = vsel %vm3048, %v3765, %v3822
        %v3824 = vsel %vm3050, %v3766, %v3823
        %v3825 = vsel %vm3052, %v3767, %v3824
        %v3826 = vsel %vm3040, %v3769, %v3768
        %v3827 = vsel %vm3042, %v3770, %v3826
        %v3828 = vsel %vm3044, %v3771, %v3827
        %v3829 = vsel %vm3046, %v3772, %v3828
        %v3830 = vsel %vm3048, %v3773, %v3829
        %v3831 = vsel %vm3050, %v3774, %v3830
        %v3832 = vsel %vm3052, %v3775, %v3831
        %v3833 = vsel %vm3040, %v3777, %v3776
        %v3834 = vsel %vm3042, %v3778, %v3833
        %v3835 = vsel %vm3044, %v3779, %v3834
        %v3836 = vsel %vm3046, %v3780, %v3835
        %v3837 = vsel %vm3048, %v3781, %v3836
        %v3838 = vsel %vm3050, %v3782, %v3837
        %v3839 = vsel %vm3052, %v3783, %v3838
        %v3848 = vsel %vm3111, %v3790, 0.0
        %3849 = vadd.xlane.f32.xlu0 %v3848
        %v3850 = vpop.xlane.xlu0 %3849
        %v3851 = vsel %vm3111, %v3797, 0.0
        %3852 = vadd.xlane.f32.xlu0 %v3851
        %v3853 = vpop.xlane.xlu0 %3852
        %v3854 = vsel %vm3111, %v3804, 0.0
        %3855 = vadd.xlane.f32.xlu0 %v3854
        %v3856 = vpop.xlane.xlu0 %3855
        %v3857 = vsel %vm3111, %v3811, 0.0
        %3858 = vadd.xlane.f32.xlu0 %v3857
        %v3859 = vpop.xlane.xlu0 %3858
        %v3860 = vsel %vm3111, %v3818, 0.0
        %3861 = vadd.xlane.f32.xlu0 %v3860
        %v3862 = vpop.xlane.xlu0 %3861
        %v3863 = vsel %vm3111, %v3825, 0.0
        %3864 = vadd.xlane.f32.xlu0 %v3863
        %v3865 = vpop.xlane.xlu0 %3864
        %v3866 = vsel %vm3111, %v3832, 0.0
        %3867 = vadd.xlane.f32.xlu0 %v3866
        %v3868 = vpop.xlane.xlu0 %3867
        %v3869 = vsel %vm3111, %v3839, 0.0
        %3870 = vadd.xlane.f32.xlu0 %v3869
        %v3871 = vpop.xlane.xlu0 %3870
        %v3872 = vrcp.pop %v3850
        %v3873 = vrcp.pop %v3853
        %v3874 = vrcp.pop %v3856
        %v3875 = vrcp.pop %v3859
        %v3876 = vrcp.pop %v3862
        %v3877 = vrcp.pop %v3865
        %v3878 = vrcp.pop %v3868
        %v3879 = vrcp.pop %v3871
        %v3888 = vperm.slane %v3872, 0
        %v3889 = vperm.slane %v3872, 1
        %v3890 = vperm.slane %v3872, 2
        %v3891 = vperm.slane %v3872, 3
        %v3892 = vperm.slane %v3872, 4
        %v3893 = vperm.slane %v3872, 5
        %v3894 = vperm.slane %v3872, 6
        %v3895 = vperm.slane %v3872, 7
        %v3896 = vperm.slane %v3873, 0
        %v3897 = vperm.slane %v3873, 1
        %v3898 = vperm.slane %v3873, 2
        %v3899 = vperm.slane %v3873, 3
        %v3900 = vperm.slane %v3873, 4
        %v3901 = vperm.slane %v3873, 5
        %v3902 = vperm.slane %v3873, 6
        %v3903 = vperm.slane %v3873, 7
        %v3904 = vperm.slane %v3874, 0
        %v3905 = vperm.slane %v3874, 1
        %v3906 = vperm.slane %v3874, 2
        %v3907 = vperm.slane %v3874, 3
        %v3908 = vperm.slane %v3874, 4
        %v3909 = vperm.slane %v3874, 5
        %v3910 = vperm.slane %v3874, 6
        %v3911 = vperm.slane %v3874, 7
        %v3912 = vperm.slane %v3875, 0
        %v3913 = vperm.slane %v3875, 1
        %v3914 = vperm.slane %v3875, 2
        %v3915 = vperm.slane %v3875, 3
        %v3916 = vperm.slane %v3875, 4
        %v3917 = vperm.slane %v3875, 5
        %v3918 = vperm.slane %v3875, 6
        %v3919 = vperm.slane %v3875, 7
        %v3920 = vperm.slane %v3876, 0
        %v3921 = vperm.slane %v3876, 1
        %v3922 = vperm.slane %v3876, 2
        %v3923 = vperm.slane %v3876, 3
        %v3924 = vperm.slane %v3876, 4
        %v3925 = vperm.slane %v3876, 5
        %v3926 = vperm.slane %v3876, 6
        %v3927 = vperm.slane %v3876, 7
        %v3928 = vperm.slane %v3877, 0
        %v3929 = vperm.slane %v3877, 1
        %v3930 = vperm.slane %v3877, 2
        %v3931 = vperm.slane %v3877, 3
        %v3932 = vperm.slane %v3877, 4
        %v3933 = vperm.slane %v3877, 5
        %v3934 = vperm.slane %v3877, 6
        %v3935 = vperm.slane %v3877, 7
        %v3936 = vperm.slane %v3878, 0
        %v3937 = vperm.slane %v3878, 1
        %v3938 = vperm.slane %v3878, 2
        %v3939 = vperm.slane %v3878, 3
        %v3940 = vperm.slane %v3878, 4
        %v3941 = vperm.slane %v3878, 5
        %v3942 = vperm.slane %v3878, 6
        %v3943 = vperm.slane %v3878, 7
        %v3944 = vperm.slane %v3879, 0
        %v3945 = vperm.slane %v3879, 1
        %v3946 = vperm.slane %v3879, 2
        %v3947 = vperm.slane %v3879, 3
        %v3948 = vperm.slane %v3879, 4
        %v3949 = vperm.slane %v3879, 5
        %v3950 = vperm.slane %v3879, 6
        %v3951 = vperm.slane %v3879, 7
        %v4016 = vmul.f32 %v3337, %v3888
        %v4017 = vmul.f32 %v3339, %v3889
        %v4018 = vmul.f32 %v3341, %v3890
        %v4019 = vmul.f32 %v3343, %v3891
        %v4020 = vmul.f32 %v3345, %v3892
        %v4021 = vmul.f32 %v3347, %v3893
        %v4022 = vmul.f32 %v3349, %v3894
        %v4023 = vmul.f32 %v3351, %v3895
        %v4024 = vmul.f32 %v3353, %v3896
        %v4025 = vmul.f32 %v3355, %v3897
        %v4026 = vmul.f32 %v3357, %v3898
        %v4027 = vmul.f32 %v3359, %v3899
        %v4028 = vmul.f32 %v3361, %v3900
        %v4029 = vmul.f32 %v3363, %v3901
        %v4030 = vmul.f32 %v3365, %v3902
        %v4031 = vmul.f32 %v3367, %v3903
        %v4032 = vmul.f32 %v3369, %v3904
        %v4033 = vmul.f32 %v3371, %v3905
        %v4034 = vmul.f32 %v3373, %v3906
        %v4035 = vmul.f32 %v3375, %v3907
        %v4036 = vmul.f32 %v3377, %v3908
        %v4037 = vmul.f32 %v3379, %v3909
        %v4038 = vmul.f32 %v3381, %v3910
        %v4039 = vmul.f32 %v3383, %v3911
        %v4040 = vmul.f32 %v3385, %v3912
        %v4041 = vmul.f32 %v3387, %v3913
        %v4042 = vmul.f32 %v3389, %v3914
        %v4043 = vmul.f32 %v3391, %v3915
        %v4044 = vmul.f32 %v3393, %v3916
        %v4045 = vmul.f32 %v3395, %v3917
        %v4046 = vmul.f32 %v3397, %v3918
        %v4047 = vmul.f32 %v3399, %v3919
        %v4048 = vmul.f32 %v3401, %v3920
        %v4049 = vmul.f32 %v3403, %v3921
        %v4050 = vmul.f32 %v3405, %v3922
        %v4051 = vmul.f32 %v3407, %v3923
        %v4052 = vmul.f32 %v3409, %v3924
        %v4053 = vmul.f32 %v3411, %v3925
        %v4054 = vmul.f32 %v3413, %v3926
        %v4055 = vmul.f32 %v3415, %v3927
        %v4056 = vmul.f32 %v3417, %v3928
        %v4057 = vmul.f32 %v3419, %v3929
        %v4058 = vmul.f32 %v3421, %v3930
        %v4059 = vmul.f32 %v3423, %v3931
        %v4060 = vmul.f32 %v3425, %v3932
        %v4061 = vmul.f32 %v3427, %v3933
        %v4062 = vmul.f32 %v3429, %v3934
        %v4063 = vmul.f32 %v3431, %v3935
        %v4064 = vmul.f32 %v3433, %v3936
        %v4065 = vmul.f32 %v3435, %v3937
        %v4066 = vmul.f32 %v3437, %v3938
        %v4067 = vmul.f32 %v3439, %v3939
        %v4068 = vmul.f32 %v3441, %v3940
        %v4069 = vmul.f32 %v3443, %v3941
        %v4070 = vmul.f32 %v3445, %v3942
        %v4071 = vmul.f32 %v3447, %v3943
        %v4072 = vmul.f32 %v3449, %v3944
        %v4073 = vmul.f32 %v3451, %v3945
        %v4074 = vmul.f32 %v3453, %v3946
        %v4075 = vmul.f32 %v3455, %v3947
        %v4076 = vmul.f32 %v3457, %v3948
        %v4077 = vmul.f32 %v3459, %v3949
        %v4078 = vmul.f32 %v3461, %v3950
        %v4079 = vmul.f32 %v3463, %v3951
        %4144 = vset.pattern.permute.xlu0 0
        %4145 = vperm.xlu0 %4144, %v4016
        %v4146 = vpop.permute.xlu0 %4145
        %4147 = vset.pattern.permute.xlu0 0
        %4148 = vperm.xlu0 %4147, %v4017
        %v4149 = vpop.permute.xlu0 %4148
        %4150 = vset.pattern.permute.xlu0 0
        %4151 = vperm.xlu0 %4150, %v4018
        %v4152 = vpop.permute.xlu0 %4151
        %4153 = vset.pattern.permute.xlu0 0
        %4154 = vperm.xlu0 %4153, %v4019
        %v4155 = vpop.permute.xlu0 %4154
        %4156 = vset.pattern.permute.xlu0 0
        %4157 = vperm.xlu0 %4156, %v4020
        %v4158 = vpop.permute.xlu0 %4157
        %4159 = vset.pattern.permute.xlu0 0
        %4160 = vperm.xlu0 %4159, %v4021
        %v4161 = vpop.permute.xlu0 %4160
        %4162 = vset.pattern.permute.xlu0 0
        %4163 = vperm.xlu0 %4162, %v4022
        %v4164 = vpop.permute.xlu0 %4163
        %4165 = vset.pattern.permute.xlu0 0
        %4166 = vperm.xlu0 %4165, %v4023
        %v4167 = vpop.permute.xlu0 %4166
        %4168 = vset.pattern.permute.xlu0 0
        %4169 = vperm.xlu0 %4168, %v4024
        %v4170 = vpop.permute.xlu0 %4169
        %4171 = vset.pattern.permute.xlu0 0
        %4172 = vperm.xlu0 %4171, %v4025
        %v4173 = vpop.permute.xlu0 %4172
        %4174 = vset.pattern.permute.xlu0 0
        %4175 = vperm.xlu0 %4174, %v4026
        %v4176 = vpop.permute.xlu0 %4175
        %4177 = vset.pattern.permute.xlu0 0
        %4178 = vperm.xlu0 %4177, %v4027
        %v4179 = vpop.permute.xlu0 %4178
        %4180 = vset.pattern.permute.xlu0 0
        %4181 = vperm.xlu0 %4180, %v4028
        %v4182 = vpop.permute.xlu0 %4181
        %4183 = vset.pattern.permute.xlu0 0
        %4184 = vperm.xlu0 %4183, %v4029
        %v4185 = vpop.permute.xlu0 %4184
        %4186 = vset.pattern.permute.xlu0 0
        %4187 = vperm.xlu0 %4186, %v4030
        %v4188 = vpop.permute.xlu0 %4187
        %4189 = vset.pattern.permute.xlu0 0
        %4190 = vperm.xlu0 %4189, %v4031
        %v4191 = vpop.permute.xlu0 %4190
        %4192 = vset.pattern.permute.xlu0 0
        %4193 = vperm.xlu0 %4192, %v4032
        %v4194 = vpop.permute.xlu0 %4193
        %4195 = vset.pattern.permute.xlu0 0
        %4196 = vperm.xlu0 %4195, %v4033
        %v4197 = vpop.permute.xlu0 %4196
        %4198 = vset.pattern.permute.xlu0 0
        %4199 = vperm.xlu0 %4198, %v4034
        %v4200 = vpop.permute.xlu0 %4199
        %4201 = vset.pattern.permute.xlu0 0
        %4202 = vperm.xlu0 %4201, %v4035
        %v4203 = vpop.permute.xlu0 %4202
        %4204 = vset.pattern.permute.xlu0 0
        %4205 = vperm.xlu0 %4204, %v4036
        %v4206 = vpop.permute.xlu0 %4205
        %4207 = vset.pattern.permute.xlu0 0
        %4208 = vperm.xlu0 %4207, %v4037
        %v4209 = vpop.permute.xlu0 %4208
        %4210 = vset.pattern.permute.xlu0 0
        %4211 = vperm.xlu0 %4210, %v4038
        %v4212 = vpop.permute.xlu0 %4211
        %4213 = vset.pattern.permute.xlu0 0
        %4214 = vperm.xlu0 %4213, %v4039
        %v4215 = vpop.permute.xlu0 %4214
        %4216 = vset.pattern.permute.xlu0 0
        %4217 = vperm.xlu0 %4216, %v4040
        %v4218 = vpop.permute.xlu0 %4217
        %4219 = vset.pattern.permute.xlu0 0
        %4220 = vperm.xlu0 %4219, %v4041
        %v4221 = vpop.permute.xlu0 %4220
        %4222 = vset.pattern.permute.xlu0 0
        %4223 = vperm.xlu0 %4222, %v4042
        %v4224 = vpop.permute.xlu0 %4223
        %4225 = vset.pattern.permute.xlu0 0
        %4226 = vperm.xlu0 %4225, %v4043
        %v4227 = vpop.permute.xlu0 %4226
        %4228 = vset.pattern.permute.xlu0 0
        %4229 = vperm.xlu0 %4228, %v4044
        %v4230 = vpop.permute.xlu0 %4229
        %4231 = vset.pattern.permute.xlu0 0
        %4232 = vperm.xlu0 %4231, %v4045
        %v4233 = vpop.permute.xlu0 %4232
        %4234 = vset.pattern.permute.xlu0 0
        %4235 = vperm.xlu0 %4234, %v4046
        %v4236 = vpop.permute.xlu0 %4235
        %4237 = vset.pattern.permute.xlu0 0
        %4238 = vperm.xlu0 %4237, %v4047
        %v4239 = vpop.permute.xlu0 %4238
        %4240 = vset.pattern.permute.xlu0 0
        %4241 = vperm.xlu0 %4240, %v4048
        %v4242 = vpop.permute.xlu0 %4241
        %4243 = vset.pattern.permute.xlu0 0
        %4244 = vperm.xlu0 %4243, %v4049
        %v4245 = vpop.permute.xlu0 %4244
        %4246 = vset.pattern.permute.xlu0 0
        %4247 = vperm.xlu0 %4246, %v4050
        %v4248 = vpop.permute.xlu0 %4247
        %4249 = vset.pattern.permute.xlu0 0
        %4250 = vperm.xlu0 %4249, %v4051
        %v4251 = vpop.permute.xlu0 %4250
        %4252 = vset.pattern.permute.xlu0 0
        %4253 = vperm.xlu0 %4252, %v4052
        %v4254 = vpop.permute.xlu0 %4253
        %4255 = vset.pattern.permute.xlu0 0
        %4256 = vperm.xlu0 %4255, %v4053
        %v4257 = vpop.permute.xlu0 %4256
        %4258 = vset.pattern.permute.xlu0 0
        %4259 = vperm.xlu0 %4258, %v4054
        %v4260 = vpop.permute.xlu0 %4259
        %4261 = vset.pattern.permute.xlu0 0
        %4262 = vperm.xlu0 %4261, %v4055
        %v4263 = vpop.permute.xlu0 %4262
        %4264 = vset.pattern.permute.xlu0 0
        %4265 = vperm.xlu0 %4264, %v4056
        %v4266 = vpop.permute.xlu0 %4265
        %4267 = vset.pattern.permute.xlu0 0
        %4268 = vperm.xlu0 %4267, %v4057
        %v4269 = vpop.permute.xlu0 %4268
        %4270 = vset.pattern.permute.xlu0 0
        %4271 = vperm.xlu0 %4270, %v4058
        %v4272 = vpop.permute.xlu0 %4271
        %4273 = vset.pattern.permute.xlu0 0
        %4274 = vperm.xlu0 %4273, %v4059
        %v4275 = vpop.permute.xlu0 %4274
        %4276 = vset.pattern.permute.xlu0 0
        %4277 = vperm.xlu0 %4276, %v4060
        %v4278 = vpop.permute.xlu0 %4277
        %4279 = vset.pattern.permute.xlu0 0
        %4280 = vperm.xlu0 %4279, %v4061
        %v4281 = vpop.permute.xlu0 %4280
        %4282 = vset.pattern.permute.xlu0 0
        %4283 = vperm.xlu0 %4282, %v4062
        %v4284 = vpop.permute.xlu0 %4283
        %4285 = vset.pattern.permute.xlu0 0
        %4286 = vperm.xlu0 %4285, %v4063
        %v4287 = vpop.permute.xlu0 %4286
        %4288 = vset.pattern.permute.xlu0 0
        %4289 = vperm.xlu0 %4288, %v4064
        %v4290 = vpop.permute.xlu0 %4289
        %4291 = vset.pattern.permute.xlu0 0
        %4292 = vperm.xlu0 %4291, %v4065
        %v4293 = vpop.permute.xlu0 %4292
        %4294 = vset.pattern.permute.xlu0 0
        %4295 = vperm.xlu0 %4294, %v4066
        %v4296 = vpop.permute.xlu0 %4295
        %4297 = vset.pattern.permute.xlu0 0
        %4298 = vperm.xlu0 %4297, %v4067
        %v4299 = vpop.permute.xlu0 %4298
        %4300 = vset.pattern.permute.xlu0 0
        %4301 = vperm.xlu0 %4300, %v4068
        %v4302 = vpop.permute.xlu0 %4301
        %4303 = vset.pattern.permute.xlu0 0
        %4304 = vperm.xlu0 %4303, %v4069
        %v4305 = vpop.permute.xlu0 %4304
        %4306 = vset.pattern.permute.xlu0 0
        %4307 = vperm.xlu0 %4306, %v4070
        %v4308 = vpop.permute.xlu0 %4307
        %4309 = vset.pattern.permute.xlu0 0
        %4310 = vperm.xlu0 %4309, %v4071
        %v4311 = vpop.permute.xlu0 %4310
        %4312 = vset.pattern.permute.xlu0 0
        %4313 = vperm.xlu0 %4312, %v4072
        %v4314 = vpop.permute.xlu0 %4313
        %4315 = vset.pattern.permute.xlu0 0
        %4316 = vperm.xlu0 %4315, %v4073
        %v4317 = vpop.permute.xlu0 %4316
        %4318 = vset.pattern.permute.xlu0 0
        %4319 = vperm.xlu0 %4318, %v4074
        %v4320 = vpop.permute.xlu0 %4319
        %4321 = vset.pattern.permute.xlu0 0
        %4322 = vperm.xlu0 %4321, %v4075
        %v4323 = vpop.permute.xlu0 %4322
        %4324 = vset.pattern.permute.xlu0 0
        %4325 = vperm.xlu0 %4324, %v4076
        %v4326 = vpop.permute.xlu0 %4325
        %4327 = vset.pattern.permute.xlu0 0
        %4328 = vperm.xlu0 %4327, %v4077
        %v4329 = vpop.permute.xlu0 %4328
        %4330 = vset.pattern.permute.xlu0 0
        %4331 = vperm.xlu0 %4330, %v4078
        %v4332 = vpop.permute.xlu0 %4331
        %4333 = vset.pattern.permute.xlu0 0
        %4334 = vperm.xlu0 %4333, %v4079
        %v4335 = vpop.permute.xlu0 %4334
        %v4336 = vperm.slane %v4146, %v2975
        %v4337 = vperm.slane %v4149, %v2975
        %v4338 = vperm.slane %v4152, %v2975
        %v4339 = vperm.slane %v4155, %v2975
        %v4340 = vperm.slane %v4158, %v2975
        %v4341 = vperm.slane %v4161, %v2975
        %v4342 = vperm.slane %v4164, %v2975
        %v4343 = vperm.slane %v4167, %v2975
        %v4344 = vperm.slane %v4170, %v2975
        %v4345 = vperm.slane %v4173, %v2975
        %v4346 = vperm.slane %v4176, %v2975
        %v4347 = vperm.slane %v4179, %v2975
        %v4348 = vperm.slane %v4182, %v2975
        %v4349 = vperm.slane %v4185, %v2975
        %v4350 = vperm.slane %v4188, %v2975
        %v4351 = vperm.slane %v4191, %v2975
        %v4352 = vperm.slane %v4194, %v2975
        %v4353 = vperm.slane %v4197, %v2975
        %v4354 = vperm.slane %v4200, %v2975
        %v4355 = vperm.slane %v4203, %v2975
        %v4356 = vperm.slane %v4206, %v2975
        %v4357 = vperm.slane %v4209, %v2975
        %v4358 = vperm.slane %v4212, %v2975
        %v4359 = vperm.slane %v4215, %v2975
        %v4360 = vperm.slane %v4218, %v2975
        %v4361 = vperm.slane %v4221, %v2975
        %v4362 = vperm.slane %v4224, %v2975
        %v4363 = vperm.slane %v4227, %v2975
        %v4364 = vperm.slane %v4230, %v2975
        %v4365 = vperm.slane %v4233, %v2975
        %v4366 = vperm.slane %v4236, %v2975
        %v4367 = vperm.slane %v4239, %v2975
        %v4368 = vperm.slane %v4242, %v2975
        %v4369 = vperm.slane %v4245, %v2975
        %v4370 = vperm.slane %v4248, %v2975
        %v4371 = vperm.slane %v4251, %v2975
        %v4372 = vperm.slane %v4254, %v2975
        %v4373 = vperm.slane %v4257, %v2975
        %v4374 = vperm.slane %v4260, %v2975
        %v4375 = vperm.slane %v4263, %v2975
        %v4376 = vperm.slane %v4266, %v2975
        %v4377 = vperm.slane %v4269, %v2975
        %v4378 = vperm.slane %v4272, %v2975
        %v4379 = vperm.slane %v4275, %v2975
        %v4380 = vperm.slane %v4278, %v2975
        %v4381 = vperm.slane %v4281, %v2975
        %v4382 = vperm.slane %v4284, %v2975
        %v4383 = vperm.slane %v4287, %v2975
        %v4384 = vperm.slane %v4290, %v2975
        %v4385 = vperm.slane %v4293, %v2975
        %v4386 = vperm.slane %v4296, %v2975
        %v4387 = vperm.slane %v4299, %v2975
        %v4388 = vperm.slane %v4302, %v2975
        %v4389 = vperm.slane %v4305, %v2975
        %v4390 = vperm.slane %v4308, %v2975
        %v4391 = vperm.slane %v4311, %v2975
        %v4392 = vperm.slane %v4314, %v2975
        %v4393 = vperm.slane %v4317, %v2975
        %v4394 = vperm.slane %v4320, %v2975
        %v4395 = vperm.slane %v4323, %v2975
        %v4396 = vperm.slane %v4326, %v2975
        %v4397 = vperm.slane %v4329, %v2975
        %v4398 = vperm.slane %v4332, %v2975
        %v4399 = vperm.slane %v4335, %v2975
        %v4400 = vsel %vm3040, %v4337, %v4336
        %v4401 = vsel %vm3042, %v4338, %v4400
        %v4402 = vsel %vm3044, %v4339, %v4401
        %v4403 = vsel %vm3046, %v4340, %v4402
        %v4404 = vsel %vm3048, %v4341, %v4403
        %v4405 = vsel %vm3050, %v4342, %v4404
        %v4406 = vsel %vm3052, %v4343, %v4405
        %v4407 = vsel %vm3040, %v4345, %v4344
        %v4408 = vsel %vm3042, %v4346, %v4407
        %v4409 = vsel %vm3044, %v4347, %v4408
        %v4410 = vsel %vm3046, %v4348, %v4409
        %v4411 = vsel %vm3048, %v4349, %v4410
        %v4412 = vsel %vm3050, %v4350, %v4411
        %v4413 = vsel %vm3052, %v4351, %v4412
        %v4414 = vsel %vm3040, %v4353, %v4352
        %v4415 = vsel %vm3042, %v4354, %v4414
        %v4416 = vsel %vm3044, %v4355, %v4415
        %v4417 = vsel %vm3046, %v4356, %v4416
        %v4418 = vsel %vm3048, %v4357, %v4417
        %v4419 = vsel %vm3050, %v4358, %v4418
        %v4420 = vsel %vm3052, %v4359, %v4419
        %v4421 = vsel %vm3040, %v4361, %v4360
        %v4422 = vsel %vm3042, %v4362, %v4421
        %v4423 = vsel %vm3044, %v4363, %v4422
        %v4424 = vsel %vm3046, %v4364, %v4423
        %v4425 = vsel %vm3048, %v4365, %v4424
        %v4426 = vsel %vm3050, %v4366, %v4425
        %v4427 = vsel %vm3052, %v4367, %v4426
        %v4428 = vsel %vm3040, %v4369, %v4368
        %v4429 = vsel %vm3042, %v4370, %v4428
        %v4430 = vsel %vm3044, %v4371, %v4429
        %v4431 = vsel %vm3046, %v4372, %v4430
        %v4432 = vsel %vm3048, %v4373, %v4431
        %v4433 = vsel %vm3050, %v4374, %v4432
        %v4434 = vsel %vm3052, %v4375, %v4433
        %v4435 = vsel %vm3040, %v4377, %v4376
        %v4436 = vsel %vm3042, %v4378, %v4435
        %v4437 = vsel %vm3044, %v4379, %v4436
        %v4438 = vsel %vm3046, %v4380, %v4437
        %v4439 = vsel %vm3048, %v4381, %v4438
        %v4440 = vsel %vm3050, %v4382, %v4439
        %v4441 = vsel %vm3052, %v4383, %v4440
        %v4442 = vsel %vm3040, %v4385, %v4384
        %v4443 = vsel %vm3042, %v4386, %v4442
        %v4444 = vsel %vm3044, %v4387, %v4443
        %v4445 = vsel %vm3046, %v4388, %v4444
        %v4446 = vsel %vm3048, %v4389, %v4445
        %v4447 = vsel %vm3050, %v4390, %v4446
        %v4448 = vsel %vm3052, %v4391, %v4447
        %v4449 = vsel %vm3040, %v4393, %v4392
        %v4450 = vsel %vm3042, %v4394, %v4449
        %v4451 = vsel %vm3044, %v4395, %v4450
        %v4452 = vsel %vm3046, %v4396, %v4451
        %v4453 = vsel %vm3048, %v4397, %v4452
        %v4454 = vsel %vm3050, %v4398, %v4453
        %v4455 = vsel %vm3052, %v4399, %v4454
        %4464 = vst.msk [vmem:[%s257] sm:$0xff] %vm3111, %v4406
        %4465 = vst.msk [vmem:[%s257 + $0x8] sm:$0xff] %vm3111, %v4413
        %4466 = vst.msk [vmem:[%s257 + $0x10] sm:$0xff] %vm3111, %v4420
        %4467 = vst.msk [vmem:[%s257 + $0x18] sm:$0xff] %vm3111, %v4427
        %4468 = vst.msk [vmem:[%s257 + $0x20] sm:$0xff] %vm3111, %v4434
        %4469 = vst.msk [vmem:[%s257 + $0x28] sm:$0xff] %vm3111, %v4441
        %4470 = vst.msk [vmem:[%s257 + $0x30] sm:$0xff] %vm3111, %v4448
        %4471 = vst.msk [vmem:[%s257 + $0x38] sm:$0xff] %vm3111, %v4455
        %s4472 = sand.u32 %s161, 1
        %s4473 = sand.u32 %s161, 1
        %s4474 = smul.addr %s4473, 64
        %s4475 = scalar_lea.vmem [#allocation2], %s4474
        // Predicated region
        $region45: #{tpu_custom_call.1} parent=43 // pred_check
          %p4476 = pneg %p171
        $region46: #{tpu_custom_call.1} parent=43 // pred_check_branch
          %4478 = sbr.rel (%p4476) target = $region48
        $region47: #{tpu_custom_call.1} parent=43 // pred_region
          %s4479 = smul.u32 4, %s17
          %s4480 = smul.addr %s4479, 8
          %s4481 = scalar_lea.vmem %s6, %s4480
          // Predicated region
          $region49: #{tpu_custom_call.1} parent=47 // pred_check
            _
          $region50: #{tpu_custom_call.1} parent=47 // pred_check_branch
            %4483 = sbr.rel (0) target = $region52
          $region51: #{tpu_custom_call.1} parent=47 // pred_region
            // Predicated region
            $region53: #{tpu_custom_call.1} parent=51 // pred_check
              _
            $region54: #{tpu_custom_call.1} parent=51 // pred_check_branch
              %4485 = sbr.rel (0) target = $region56
            $region55: #{tpu_custom_call.1} parent=51 // pred_region
              // Predicated region
              $region68: #{tpu_custom_call.1} parent=55 // pred_check
                _
              $region69: #{tpu_custom_call.1} parent=55 // pred_check_branch
                %4515 = sbr.rel (0) target = $region71
              $region70: #{tpu_custom_call.1} parent=55 // pred_region
                loop: start=0, step=1, limit=1
                $region72: #{tpu_custom_call.1} parent=70 // loop_pre_header
                  _
                $region73: #{tpu_custom_call.1} parent=70 // loop_header
                  %s4517 = sphi 0, %s4521
                  %p4518 = scmp.ge.s32.totalorder %s4517, 1
                  %s4522 = sphi %s4475, %s4475
                  %s4523 = sphi %s4481, %s4481
                $region74: #{tpu_custom_call.1} parent=70 // loop_header_branch
                  %4520 = sbr.rel (%p4518) target = $region78
                $region75: #{tpu_custom_call.1} parent=70 // loop_body
                  %v4524 = vld [vmem:[%s4522] sm:$0xff]
                  %4525 = vst [vmem:[%s4523] sm:$0xff] %v4524
                  %v4526 = vld [vmem:[%s4522 + $0x8] sm:$0xff]
                  %4527 = vst [vmem:[%s4523 + $0x8] sm:$0xff] %v4526
                  %v4528 = vld [vmem:[%s4522 + $0x10] sm:$0xff]
                  %4529 = vst [vmem:[%s4523 + $0x10] sm:$0xff] %v4528
                  %v4530 = vld [vmem:[%s4522 + $0x18] sm:$0xff]
                  %4531 = vst [vmem:[%s4523 + $0x18] sm:$0xff] %v4530
                  %v4532 = vld [vmem:[%s4522 + $0x20] sm:$0xff]
                  %4533 = vst [vmem:[%s4523 + $0x80] sm:$0xff] %v4532
                  %v4534 = vld [vmem:[%s4522 + $0x28] sm:$0xff]
                  %4535 = vst [vmem:[%s4523 + $0x88] sm:$0xff] %v4534
                  %v4536 = vld [vmem:[%s4522 + $0x30] sm:$0xff]
                  %4537 = vst [vmem:[%s4523 + $0x90] sm:$0xff] %v4536
                  %v4538 = vld [vmem:[%s4522 + $0x38] sm:$0xff]
                  %4539 = vst [vmem:[%s4523 + $0x98] sm:$0xff] %v4538
                $region76: #{tpu_custom_call.1} parent=70 // loop_footer
                  %s4521 = sadd.s32 1, %s4517
                $region77: #{tpu_custom_call.1} parent=70 // loop_footer_branch
                  %4516 = sbr.rel target = $region73
                $region78: #{tpu_custom_call.1} parent=70 // loop_exit
                  _
              $region71: #{tpu_custom_call.1} parent=55 // pred_fallthru
                _
              // Predicated region
              $region79: #{tpu_custom_call.1} parent=55 // pred_check
                _
              $region80: #{tpu_custom_call.1} parent=55 // pred_check_branch
                %4541 = sbr.rel target = $region82
              $region81: #{tpu_custom_call.1} parent=55 // pred_region
                _
              $region82: #{tpu_custom_call.1} parent=55 // pred_fallthru
                _
            $region56: #{tpu_custom_call.1} parent=51 // pred_fallthru
              _
            // Predicated region
            $region57: #{tpu_custom_call.1} parent=51 // pred_check
              _
            $region58: #{tpu_custom_call.1} parent=51 // pred_check_branch
              %4487 = sbr.rel target = $region60
            $region59: #{tpu_custom_call.1} parent=51 // pred_region
              %s4489 = ssub.s32 256, 1
              loop: start=0, step=1, limit=1
              $region61: #{tpu_custom_call.1} parent=59 // loop_pre_header
                _
              $region62: #{tpu_custom_call.1} parent=59 // loop_header
                %s4491 = sphi 0, %s4495
                %p4492 = scmp.ge.s32.totalorder %s4491, 1
                %s4496 = sphi %s4475, %s4475
                %s4497 = sphi %s4481, %s4481
              $region63: #{tpu_custom_call.1} parent=59 // loop_header_branch
                %4494 = sbr.rel (%p4492) target = $region67
              $region64: #{tpu_custom_call.1} parent=59 // loop_body
                %v4498 = vld [vmem:[%s4496] sm:%s4489]
                %4499 = vst [vmem:[%s4497] sm:%s4489] %v4498
                %v4500 = vld [vmem:[%s4496 + $0x8] sm:%s4489]
                %4501 = vst [vmem:[%s4497 + $0x8] sm:%s4489] %v4500
                %v4502 = vld [vmem:[%s4496 + $0x10] sm:%s4489]
                %4503 = vst [vmem:[%s4497 + $0x10] sm:%s4489] %v4502
                %v4504 = vld [vmem:[%s4496 + $0x18] sm:%s4489]
                %4505 = vst [vmem:[%s4497 + $0x18] sm:%s4489] %v4504
                %v4506 = vld [vmem:[%s4496 + $0x20] sm:%s4489]
                %4507 = vst [vmem:[%s4497 + $0x80] sm:%s4489] %v4506
                %v4508 = vld [vmem:[%s4496 + $0x28] sm:%s4489]
                %4509 = vst [vmem:[%s4497 + $0x88] sm:%s4489] %v4508
                %v4510 = vld [vmem:[%s4496 + $0x30] sm:%s4489]
                %4511 = vst [vmem:[%s4497 + $0x90] sm:%s4489] %v4510
                %v4512 = vld [vmem:[%s4496 + $0x38] sm:%s4489]
                %4513 = vst [vmem:[%s4497 + $0x98] sm:%s4489] %v4512
              $region65: #{tpu_custom_call.1} parent=59 // loop_footer
                %s4495 = sadd.s32 1, %s4491
              $region66: #{tpu_custom_call.1} parent=59 // loop_footer_branch
                %4490 = sbr.rel target = $region62
              $region67: #{tpu_custom_call.1} parent=59 // loop_exit
                _
            $region60: #{tpu_custom_call.1} parent=51 // pred_fallthru
              _
          $region52: #{tpu_custom_call.1} parent=47 // pred_fallthru
            _
          %4542 = vnop
        $region48: #{tpu_custom_call.1} parent=43 // pred_fallthru
          _
      $region44: #{tpu_custom_call.1} parent=5 // pred_fallthru
        _
      %p4543 = scmp.le.s32.totalorder 2, %s12
      // Predicated region
      $region83: #{tpu_custom_call.1} parent=5 // pred_check
        %p4544 = pneg %p4543
      $region84: #{tpu_custom_call.1} parent=5 // pred_check_branch
        %4546 = sbr.rel (%p4544) target = $region86
      $region85: #{tpu_custom_call.1} parent=5 // pred_region
        %s4547 = ssub.s32 %s12, 2
        // Predicated region
        $region87: #{tpu_custom_call.1} parent=85 // pred_check
          %p4548 = pneg %p177
        $region88: #{tpu_custom_call.1} parent=85 // pred_check_branch
          %4550 = sbr.rel (%p4548) target = $region90
        $region89: #{tpu_custom_call.1} parent=85 // pred_region
          %s4551 = sand.u32 %s162, 1
          %s4552 = sand.u32 %s162, 1
          %s4553 = smul.addr %s4552, 64
          %s4554 = scalar_lea.vmem [#allocation2], %s4553
        $region90: #{tpu_custom_call.1} parent=85 // pred_fallthru
          _
      $region86: #{tpu_custom_call.1} parent=5 // pred_fallthru
        _
    $region6: #{tpu_custom_call.1} parent=1 // loop_footer
      %s16 = sadd.s32 1, %s12
    $region7: #{tpu_custom_call.1} parent=1 // loop_footer_branch
      %11 = sbr.rel target = $region3
    $region8: #{tpu_custom_call.1} parent=1 // loop_exit
      _

</llo_original>
